<compile_context>
chip_gen: v7x
topology: tpu7x:2x2x1
jax: 0.10.0
libtpu: 0.0.40
codegen_flags: <defaults>
</compile_context>

<pallas_src>
import jax
import jax.numpy as jnp
from jax.experimental import pallas as pl
from jax.experimental.pallas import tpu as pltpu


_SQRT2_INV = 0.7071067811865475
_LN_EPS = 1e-6
_VMEM_LIMIT = 48 * 1024 * 1024


# -----------------------------------------------------------------------------
# small helpers
# -----------------------------------------------------------------------------
def _gelu(y):
    # exact GELU (matches torch.nn.GELU default); f32 math.
    return 0.5 * y * (1.0 + jax.lax.erf(y * _SQRT2_INV))


def _apply_act(y, act):
    if act == "relu":
        return jnp.maximum(y, 0.0)
    if act == "gelu":
        return _gelu(y)
    return y


def _pick_tile(M, bytes_per_row, target=2 * 1024 * 1024):
    """Pick a row-tile: divisor of M, multiple of 8, roughly `target` bytes."""
    cap = max(8, target // max(bytes_per_row, 1))
    if M <= cap or M % 8 != 0:
        return M
    for cand in (4096, 2048, 1024, 512, 256, 128, 64, 32, 16, 8):
        if cand <= cap and M % cand == 0:
            return cand
    return M


def _pick_row_chunk(H, W, Cin, Cout, target=2 * 1024 * 1024):
    """Row-chunk height for the conv3x3 kernel (divisor of H)."""
    best = H
    for cand in (H, 256, 128, 64, 32, 16, 8):
        if cand <= H and H % cand == 0:
            need = 2 * ((cand + 2) * (W + 2) * Cin * 2 + cand * W * Cout * 4)
            best = cand
            if need <= target:
                return cand
    return best


def _cparams(n_axes):
    return pltpu.CompilerParams(
        dimension_semantics=("parallel",) * n_axes,
        vmem_limit_bytes=_VMEM_LIMIT)


# -----------------------------------------------------------------------------
# Pallas kernels
# -----------------------------------------------------------------------------
def pallas_linear(x, w, b, *, act="none", ln=None):
    """y = act(LN?(x @ w + b)).  x:(M,K) f32, w:(K,N), b:(N,).

    Row-tiled over M ("parallel"), bf16 operands, f32 accumulation.  Optional
    LayerNorm (over N, eps=1e-6, affine) fused into the epilogue before `act`.
    """
    M, K = x.shape
    N = w.shape[1]
    TM = _pick_tile(M, 2 * (K * 2 + N * 4))
    has_ln = ln is not None

    def kernel(*refs):
        if has_ln:
            x_ref, w_ref, b_ref, g_ref, be_ref, o_ref = refs
        else:
            x_ref, w_ref, b_ref, o_ref = refs
        y = jnp.dot(x_ref[...], w_ref[...], preferred_element_type=jnp.float32)
        y = y + b_ref[...]
        if has_ln:
            mu = jnp.mean(y, axis=-1, keepdims=True)
            yc = y - mu
            var = jnp.mean(yc * yc, axis=-1, keepdims=True)
            y = yc * jax.lax.rsqrt(var + _LN_EPS) * g_ref[...] + be_ref[...]
        o_ref[...] = _apply_act(y, act).astype(o_ref.dtype)

    in_specs = [
        pl.BlockSpec((TM, K), lambda i: (i, 0)),
        pl.BlockSpec((K, N), lambda i: (0, 0)),
        pl.BlockSpec((1, N), lambda i: (0, 0)),
    ]
    args = [x.astype(jnp.bfloat16), w.astype(jnp.bfloat16), b.reshape(1, N)]
    if has_ln:
        g, be = ln
        in_specs += [pl.BlockSpec((1, N), lambda i: (0, 0)),
                     pl.BlockSpec((1, N), lambda i: (0, 0))]
        args += [g.reshape(1, N), be.reshape(1, N)]

    cost = pl.CostEstimate(
        flops=2 * M * K * N,
        transcendentals=(M * N) if (act == "gelu" or has_ln) else 0,
        bytes_accessed=M * K * 2 + K * N * 2 + M * N * 4)

    return pl.pallas_call(
        kernel,
        out_shape=jax.ShapeDtypeStruct((M, N), jnp.float32),
        grid=(M // TM,),
        in_specs=in_specs,
        out_specs=pl.BlockSpec((TM, N), lambda i: (i, 0)),
        compiler_params=_cparams(1),
        cost_estimate=cost,
    )(*args)


def pallas_upsample_block(x2d, p, *, final_gelu):
    """Fused ConvT(2,2) -> LayerNorm2d -> GELU -> ConvT(2,2) [-> GELU].

    x2d: (M, C) = flattened NHWC pixels.  Output: (M, 16*C8) packed with column
    layout [kh1, kw1, kh2, kw2, c8] (unpacked to (B,4H,4W,C8) in the wrapper).
    """
    (w1, b1) = p["ct1"]
    (g, be) = p["ln"]
    (w2, b2) = p["ct2"]
    C, C4 = w1.shape[0], w1.shape[1]
    C8 = w2.shape[1]
    M = x2d.shape[0]
    Nout = 16 * C8
    w1t = jnp.transpose(w1, (2, 3, 0, 1)).reshape(4, C, C4).astype(jnp.bfloat16)
    w2t = jnp.transpose(w2, (2, 3, 0, 1)).reshape(4, C4, C8).astype(jnp.bfloat16)
    TM = _pick_tile(M, 2 * (C * 2 + Nout * 4))

    def kernel(x_ref, w1_ref, b1_ref, g_ref, be_ref, w2_ref, b2_ref, o_ref):
        x = x_ref[...]
        outs = []
        for j in range(4):                      # first ConvT tap (kh1, kw1)
            y = jnp.dot(x, w1_ref[j], preferred_element_type=jnp.float32)
            y = y + b1_ref[...]
            mu = jnp.mean(y, axis=-1, keepdims=True)
            yc = y - mu
            var = jnp.mean(yc * yc, axis=-1, keepdims=True)
            y = yc * jax.lax.rsqrt(var + _LN_EPS) * g_ref[...] + be_ref[...]
            yb = _gelu(y).astype(jnp.bfloat16)
            for k in range(4):                  # second ConvT tap (kh2, kw2)
                z = jnp.dot(yb, w2_ref[k], preferred_element_type=jnp.float32)
                z = z + b2_ref[...]
                if final_gelu:
                    z = _gelu(z)
                outs.append(z)
        # one lane-dense store of the whole packed tile
        o_ref[...] = jnp.concatenate(outs, axis=-1).astype(o_ref.dtype)

    cost = pl.CostEstimate(
        flops=2 * M * (4 * C * C4 + 16 * C4 * C8),
        transcendentals=M * (4 * C4 + (Nout if final_gelu else 0)),
        bytes_accessed=M * C * 2 + (4 * C * C4 + 16 * C4 * C8) * 2 + M * Nout * 4)

    return pl.pallas_call(
        kernel,
        out_shape=jax.ShapeDtypeStruct((M, Nout), jnp.float32),
        grid=(M // TM,),
        in_specs=[
            pl.BlockSpec((TM, C), lambda i: (i, 0)),
            pl.BlockSpec((4, C, C4), lambda i: (0, 0, 0)),
            pl.BlockSpec((1, C4), lambda i: (0, 0)),
            pl.BlockSpec((1, C4), lambda i: (0, 0)),
            pl.BlockSpec((1, C4), lambda i: (0, 0)),
            pl.BlockSpec((4, C4, C8), lambda i: (0, 0, 0)),
            pl.BlockSpec((1, C8), lambda i: (0, 0)),
        ],
        out_specs=pl.BlockSpec((TM, Nout), lambda i: (i, 0)),
        compiler_params=_cparams(1),
        cost_estimate=cost,
    )(x2d.astype(jnp.bfloat16), w1t, b1.reshape(1, C4), g.reshape(1, C4),
      be.reshape(1, C4), w2t, b2.reshape(1, C8))


def _unpack_upsampled(packed, B, H, W, C8):
    """(B*H*W, 16*C8) packed [kh1,kw1,kh2,kw2,c8] -> NHWC (B, 4H, 4W, C8)."""
    y = packed.reshape(B, H, W, 2, 2, 2, 2, C8)
    y = jnp.transpose(y, (0, 1, 3, 5, 2, 4, 6, 7))
    return y.reshape(B, 4 * H, 4 * W, C8)


def conv3x3_nhwc(x, w, b, *, ln=None, act="none"):
    """Conv2d(k=3, s=1, p=1) on NHWC input, 9-tap accumulation in-kernel.

    Optional fused LayerNorm2d(+act) epilogue.  Tiled over (batch, row-chunks).
    """
    B, H, W, Cin = x.shape
    Cout = w.shape[0]
    wt = jnp.transpose(w, (2, 3, 1, 0)).reshape(9, Cin, Cout).astype(jnp.bfloat16)
    xpad = jnp.pad(x, ((0, 0), (1, 1), (1, 1), (0, 0))).astype(jnp.bfloat16)
    TH = _pick_row_chunk(H, W, Cin, Cout)
    nH = H // TH
    # row chunks with a 2-row halo (tiny overlap; avoids the 9x im2col blow-up)
    chunks = jnp.stack([xpad[:, r * TH:r * TH + TH + 2] for r in range(nH)],
                       axis=1)                              # (B,nH,TH+2,W+2,Cin)
    has_ln = ln is not None

    def kernel(*refs):
        if has_ln:
            x_ref, w_ref, b_ref, g_ref, be_ref, o_ref = refs
        else:
            x_ref, w_ref, b_ref, o_ref = refs
        acc = jnp.zeros((TH * W, Cout), jnp.float32)
        for kh in range(3):
            for kw in range(3):
                xs = x_ref[0, 0, kh:kh + TH, kw:kw + W, :]   # (TH, W, Cin)
                xs = xs.reshape(TH * W, Cin)
                acc = acc + jnp.dot(xs, w_ref[kh * 3 + kw],
                                    preferred_element_type=jnp.float32)
        y = acc + b_ref[...]
        if has_ln:
            mu = jnp.mean(y, axis=-1, keepdims=True)
            yc = y - mu
            var = jnp.mean(yc * yc, axis=-1, keepdims=True)
            y = yc * jax.lax.rsqrt(var + _LN_EPS) * g_ref[...] + be_ref[...]
        o_ref[0] = _apply_act(y, act).astype(o_ref.dtype)

    in_specs = [
        pl.BlockSpec((1, 1, TH + 2, W + 2, Cin), lambda bi, r: (bi, r, 0, 0, 0)),
        pl.BlockSpec((9, Cin, Cout), lambda bi, r: (0, 0, 0)),
        pl.BlockSpec((1, Cout), lambda bi, r: (0, 0)),
    ]
    args = [chunks, wt, b.reshape(1, Cout)]
    if has_ln:
        g, be = ln
        in_specs += [pl.BlockSpec((1, Cout), lambda bi, r: (0, 0)),
                     pl.BlockSpec((1, Cout), lambda bi, r: (0, 0))]
        args += [g.reshape(1, Cout), be.reshape(1, Cout)]

    out = pl.pallas_call(
        kernel,
        out_shape=jax.ShapeDtypeStruct((B, H * W, Cout), jnp.float32),
        grid=(B, nH),
        in_specs=in_specs,
        out_specs=pl.BlockSpec((1, TH * W, Cout), lambda bi, r: (bi, r, 0)),
        compiler_params=_cparams(2),
    )(*args)
    return out.reshape(B, H, W, Cout)


def pallas_mlp3_heads(x, layers):
    """Multi-head 3-layer MLP (ReLU, ReLU, none), one call, grid over heads.

    x: (Hh, B, K0); layers: [(w:(Hh,Ki,Ki+1), b:(Hh,Ki+1)) x 3] -> (Hh, B, N3).
    """
    Hh, B, K0 = x.shape
    (w1, b1), (w2, b2), (w3, b3) = layers
    N1, N2, N3 = w1.shape[2], w2.shape[2], w3.shape[2]

    def kernel(x_ref, w1_ref, b1_ref, w2_ref, b2_ref, w3_ref, b3_ref, o_ref):
        h = jnp.dot(x_ref[0], w1_ref[0], preferred_element_type=jnp.float32)
        h = jnp.maximum(h + b1_ref[0], 0.0).astype(jnp.bfloat16)
        h = jnp.dot(h, w2_ref[0], preferred_element_type=jnp.float32)
        h = jnp.maximum(h + b2_ref[0], 0.0).astype(jnp.bfloat16)
        y = jnp.dot(h, w3_ref[0], preferred_element_type=jnp.float32) + b3_ref[0]
        o_ref[0] = y.astype(o_ref.dtype)

    return pl.pallas_call(
        kernel,
        out_shape=jax.ShapeDtypeStruct((Hh, B, N3), jnp.float32),
        grid=(Hh,),
        in_specs=[
            pl.BlockSpec((1, B, K0), lambda i: (i, 0, 0)),
            pl.BlockSpec((1, K0, N1), lambda i: (i, 0, 0)),
            pl.BlockSpec((1, 1, N1), lambda i: (i, 0, 0)),
            pl.BlockSpec((1, N1, N2), lambda i: (i, 0, 0)),
            pl.BlockSpec((1, 1, N2), lambda i: (i, 0, 0)),
            pl.BlockSpec((1, N2, N3), lambda i: (i, 0, 0)),
            pl.BlockSpec((1, 1, N3), lambda i: (i, 0, 0)),
        ],
        out_specs=pl.BlockSpec((1, B, N3), lambda i: (i, 0, 0)),
        compiler_params=_cparams(1),
    )(x.astype(jnp.bfloat16),
      w1.astype(jnp.bfloat16), b1.reshape(Hh, 1, N1),
      w2.astype(jnp.bfloat16), b2.reshape(Hh, 1, N2),
      w3.astype(jnp.bfloat16), b3.reshape(Hh, 1, N3))


def pallas_masks(hyper_in, up_sam, up_ours):
    """masks[b] = [hyper[:4] @ up_sam[b]^T ; hyper[4:] @ up_ours[b]^T].

    hyper_in: (B, 5, C8); up_*: (B, HW, C8) NHWC-flat.  Output (B, 5, HW),
    grid over (batch, HW tiles) so the lane axis of every store is the HW tile.
    """
    B, NT, C8 = hyper_in.shape
    HW = up_sam.shape[1]
    T = _pick_tile(HW, 2 * (2 * C8 * 2 + NT * 4))
    nT = HW // T
    dn = (((1,), (1,)), ((), ()))

    def kernel(h_ref, us_ref, uo_ref, o_ref):
        h = h_ref[0]
        m_sam = jax.lax.dot_general(h[:NT - 1], us_ref[0], dn,
                                    preferred_element_type=jnp.float32)
        m_ours = jax.lax.dot_general(h[NT - 1:], uo_ref[0], dn,
                                     preferred_element_type=jnp.float32)
        o_ref[0] = jnp.concatenate([m_sam, m_ours], axis=0).astype(o_ref.dtype)

    return pl.pallas_call(
        kernel,
        out_shape=jax.ShapeDtypeStruct((B, NT, HW), jnp.float32),
        grid=(B, nT),
        in_specs=[
            pl.BlockSpec((1, NT, C8), lambda b, t: (b, 0, 0)),
            pl.BlockSpec((1, T, C8), lambda b, t: (b, t, 0)),
            pl.BlockSpec((1, T, C8), lambda b, t: (b, t, 0)),
        ],
        out_specs=pl.BlockSpec((1, NT, T), lambda b, t: (b, 0, t)),
        compiler_params=_cparams(2),
    )(hyper_in.astype(jnp.bfloat16), up_sam.astype(jnp.bfloat16),
      up_ours.astype(jnp.bfloat16))


# -----------------------------------------------------------------------------
# NHWC wrappers
# -----------------------------------------------------------------------------
def _space_to_depth2(x):
    """NHWC (B,H,W,C) -> (B*H/2*W/2, 4*C), column order (kh, kw, c)."""
    B, H, W, C = x.shape
    x = x.reshape(B, H // 2, 2, W // 2, 2, C).transpose(0, 1, 3, 2, 4, 5)
    return x.reshape(B * (H // 2) * (W // 2), 4 * C)


def upsample_block_nhwc(p, x_nhwc, *, final_gelu):
    B, H, W, C = x_nhwc.shape
    C8 = p["ct2"][0].shape[1]
    packed = pallas_upsample_block(x_nhwc.reshape(B * H * W, C), p,
                                   final_gelu=final_gelu)
    return _unpack_upsampled(packed, B, H, W, C8)


def _embedding_maskfeature_nhwc(p, x):
    w1, b1 = p["c1"]
    g, be = p["ln"]
    w2, b2 = p["c2"]
    x = conv3x3_nhwc(x, w1, b1, ln=(g, be), act="gelu")
    return conv3x3_nhwc(x, w2, b2)


def _guiding_conv_nhwc(p, img_nhwc):
    w1, b1 = p["c1"]
    g1, be1 = p["ln1"]
    w2, b2 = p["c2"]
    g2, be2 = p["ln2"]
    w3, b3 = p["c3"]
    B, H, W, Cin = img_nhwc.shape
    C4, C = w1.shape[0], w2.shape[0]

    x = _space_to_depth2(img_nhwc)                                  # (M1, 4*Cin)
    wm1 = jnp.transpose(w1, (2, 3, 1, 0)).reshape(4 * Cin, C4)
    x = pallas_linear(x, wm1, b1, ln=(g1, be1), act="gelu")         # fused LN+GELU
    x = _space_to_depth2(x.reshape(B, H // 2, W // 2, C4))          # (M2, 4*C4)
    wm2 = jnp.transpose(w2, (2, 3, 1, 0)).reshape(4 * C4, C)
    x = pallas_linear(x, wm2, b2, ln=(g2, be2), act="gelu")
    wm3 = w3.reshape(C, C).T
    x = pallas_linear(x, wm3, b3)
    return x.reshape(B, H // 4, W // 4, C)


def _image_grad(img):
    # TODO(synk): misc.generalized_image_grad is an external helper; approximated
    # here as the finite-difference gradient magnitude accumulated over channels.
    gy = jnp.diff(img, axis=1, prepend=img[:, :1, :])
    gx = jnp.diff(img, axis=2, prepend=img[:, :, :1])
    return jnp.sqrt(jnp.sum(gx * gx + gy * gy, axis=0))


# -----------------------------------------------------------------------------
# Parameter init (deterministic, synthetic)
# -----------------------------------------------------------------------------
def _lin(key, fi, fo):
    k1, k2 = jax.random.split(key)
    return (0.02 * jax.random.normal(k1, (fi, fo), jnp.float32),
            0.02 * jax.random.normal(k2, (fo,), jnp.float32))


def _conv(key, cout, cin, kh, kw):
    k1, k2 = jax.random.split(key)
    return (0.02 * jax.random.normal(k1, (cout, cin, kh, kw), jnp.float32),
            0.02 * jax.random.normal(k2, (cout,), jnp.float32))


def _convT(key, cin, cout, kh, kw):
    k1, k2 = jax.random.split(key)
    return (0.02 * jax.random.normal(k1, (cin, cout, kh, kw), jnp.float32),
            0.02 * jax.random.normal(k2, (cout,), jnp.float32))


def _ln(c):
    return (jnp.ones((c,), jnp.float32), jnp.zeros((c,), jnp.float32))


def _mlp(key, fi, fh, fo, n):
    dims = [fi] + [fh] * (n - 1) + [fo]
    keys = jax.random.split(key, n)
    return [_lin(keys[i], dims[i], dims[i + 1]) for i in range(n)]


def init_params(key, td=32, vit_dim=64, num_multimask_outputs=3,
                iou_head_hidden_dim=32, iou_head_depth=3):
    keys = jax.random.split(key, 32)
    nmt0 = num_multimask_outputs + 1          # 4 (before hf token)
    p = {"td": td, "num_mask_tokens": nmt0 + 1}
    p["iou_token"] = 0.02 * jax.random.normal(keys[0], (1, td), jnp.float32)
    p["mask_tokens"] = 0.02 * jax.random.normal(keys[1], (nmt0, td), jnp.float32)
    p["hf_token"] = 0.02 * jax.random.normal(keys[2], (1, td), jnp.float32)
    p["output_upscaling"] = {
        "ct1": _convT(keys[3], td, td // 4, 2, 2), "ln": _ln(td // 4),
        "ct2": _convT(keys[4], td // 4, td // 8, 2, 2)}
    p["embedding_encoder"] = {
        "ct1": _convT(keys[5], td, td // 4, 2, 2), "ln": _ln(td // 4),
        "ct2": _convT(keys[6], td // 4, td // 8, 2, 2)}
    p["compress_vit_feat"] = {
        "ct1": _convT(keys[7], vit_dim, td, 2, 2), "ln": _ln(td),
        "ct2": _convT(keys[8], td, td // 8, 2, 2)}
    p["embedding_maskfeature"] = {
        "c1": _conv(keys[9], td // 4, td // 8, 3, 3), "ln": _ln(td // 4),
        "c2": _conv(keys[10], td // 8, td // 4, 3, 3)}
    p["guiding_conv"] = {
        "c1": _conv(keys[11], td // 4, 4, 2, 2), "ln1": _ln(td // 4),
        "c2": _conv(keys[12], td, td // 4, 2, 2), "ln2": _ln(td),
        "c3": _conv(keys[13], td, td, 1, 1)}
    p["hyper_mlps"] = [_mlp(keys[14 + i], td, td, td // 8, 3) for i in range(nmt0)]
    p["hf_mlp"] = _mlp(keys[20], td, td, td // 8, 3)
    p["iou_head"] = _mlp(keys[21], td, iou_head_hidden_dim, nmt0, iou_head_depth)
    # TODO(synk): PromptAdapater params (uncertain/refined tokens+MLPs, cross-attn)
    # live inside the externally-injected transformer; not instantiated here.
    return p


# -----------------------------------------------------------------------------
# Module forward (glue in JAX, hot paths in Pallas)
# -----------------------------------------------------------------------------
def predict_masks(params, image_emb_nhwc, image_pe_nhwc, sparse, dense_nhwc,
                  hq_feature_nhwc, guiding_embedding):
    nmt = params["num_mask_tokens"]                 # 5
    output_tokens = jnp.concatenate(
        [params["iou_token"], params["mask_tokens"], params["hf_token"]], axis=0)
    B = sparse.shape[0]
    output_tokens = jnp.broadcast_to(
        output_tokens[None], (B,) + output_tokens.shape)
    tokens = jnp.concatenate([output_tokens, sparse], axis=1)

    # broadcast instead of repeat_interleave
    src = image_emb_nhwc + dense_nhwc               # (B, h, w, td) NHWC

    # TODO(synk): self.transformer (two-way transformer + PromptAdapater) and
    # prompt_encoder are externally-injected modules not defined in this file;
    # substituted with a shape-preserving identity pass-through of the tokens.
    hs = tokens
    iou_token_out = hs[:, 0, :]
    mask_tokens_out = hs[:, 1:1 + nmt, :]

    upscaled_sam = upsample_block_nhwc(params["output_upscaling"], src,
                                       final_gelu=True)            # (B,4h,4w,C8)
    upscaled_ours = (_embedding_maskfeature_nhwc(params["embedding_maskfeature"],
                                                 upscaled_sam)
                     + hq_feature_nhwc)             # broadcast over batch

    # 5 hyper-MLP heads (4 x output_hypernetworks + hf_mlp) fused into one call
    heads = params["hyper_mlps"] + [params["hf_mlp"]]
    w1 = jnp.stack([hp[0][0] for hp in heads])
    b1 = jnp.stack([hp[0][1] for hp in heads])
    w2 = jnp.stack([hp[1][0] for hp in heads])
    b2 = jnp.stack([hp[1][1] for hp in heads])
    w3 = jnp.stack([hp[2][0] for hp in heads])
    b3 = jnp.stack([hp[2][1] for hp in heads])
    hyper_in = pallas_mlp3_heads(jnp.transpose(mask_tokens_out, (1, 0, 2)),
                                 [(w1, b1), (w2, b2), (w3, b3)])
    hyper_in = jnp.transpose(hyper_in, (1, 0, 2))   # (B, 5, C8)

    bb, hh, ww, cc = upscaled_sam.shape
    masks = pallas_masks(hyper_in,
                         upscaled_sam.reshape(bb, hh * ww, cc),
                         upscaled_ours.reshape(bb, hh * ww, cc))
    masks = masks.reshape(bb, nmt, hh, ww)

    (iw1, ib1), (iw2, ib2), (iw3, ib3) = params["iou_head"]
    iou_pred = pallas_mlp3_heads(
        iou_token_out[None],
        [(iw1[None], ib1[None]), (iw2[None], ib2[None]), (iw3[None], ib3[None])])[0]
    return masks, iou_pred, None


def mask_decoder_pa_forward(params, image_embeddings, image_pe,
                            sparse_prompt_embeddings, dense_prompt_embeddings,
                            multimask_output, interm_embeddings,
                            hq_token_only, input_images):
    nmt = params["num_mask_tokens"]

    # one-time NCHW -> NHWC conversion at the module boundary
    img_emb_nhwc = jnp.transpose(image_embeddings, (0, 2, 3, 1))
    image_pe_nhwc = jnp.transpose(image_pe, (0, 2, 3, 1))
    dense_nhwc = jnp.transpose(dense_prompt_embeddings, (0, 2, 3, 1))
    vit_nhwc = interm_embeddings[0]                 # already NHWC

    B0, h, w, td = img_emb_nhwc.shape
    C8 = td // 8

    # hq_features = embedding_encoder(image_emb) + compress_vit_feat(vit);
    # both upsample blocks emit the same packed layout, so add before unpacking.
    pk1 = pallas_upsample_block(img_emb_nhwc.reshape(B0 * h * w, td),
                                params["embedding_encoder"], final_gelu=False)
    pk2 = pallas_upsample_block(vit_nhwc.reshape(B0 * h * w, vit_nhwc.shape[-1]),
                                params["compress_vit_feat"], final_gelu=False)
    hq_features = _unpack_upsampled(pk1 + pk2, B0, h, w, C8)   # (1, 4h, 4w, C8)

    # NOTE: the reference hardcodes a 256x256 resize (-> 64x64 guiding map);
    # scaled here to 4x the embedding resolution to keep shapes consistent.
    Hs, Ws = 4 * h, 4 * w
    imgs = jax.image.resize(
        input_images,
        (input_images.shape[0], input_images.shape[1], Hs, Ws), method="bilinear")
    img = imgs[0]                                       # squeeze(0) -> (3,Hs,Ws)
    grad = _image_grad(img)[None] / 255.0
    image_with_grad = jnp.concatenate([img, grad], axis=0)[None]    # (1,4,Hs,Ws)
    guiding_embedding = _guiding_conv_nhwc(
        params["guiding_conv"], jnp.transpose(image_with_grad, (0, 2, 3, 1)))

    masks, iou_pred, _ = predict_masks(
        params, img_emb_nhwc, image_pe_nhwc, sparse_prompt_embeddings,
        dense_nhwc, hq_features, guiding_embedding)

    if multimask_output:
        iou_sel = iou_pred[:, 1:nmt - 1]
        max_idx = jnp.argmax(iou_sel, axis=1)
        iou_out = jnp.max(iou_sel, axis=1, keepdims=True)
        masks_multi = masks[:, 1:nmt - 1, :, :]
        masks_sam = jnp.take_along_axis(
            masks_multi, max_idx[:, None, None, None], axis=1)
    else:
        iou_out = iou_pred[:, 0:1]
        masks_sam = masks[:, 0:1]

    masks_hq = masks[:, nmt - 1:nmt, :, :]
    out_masks = masks_hq if hq_token_only else masks_sam + masks_hq
    return out_masks, iou_out


# -----------------------------------------------------------------------------
if __name__ == "__main__":
    key = jax.random.PRNGKey(0)
    kp, k1, k2, k3, k4, k5, k6 = jax.random.split(key, 7)

    td, vit_dim = 32, 64
    B, h, w = 2, 8, 8

    params = init_params(kp, td=td, vit_dim=vit_dim)

    image_embeddings = jax.random.normal(k1, (1, td, h, w), jnp.float32)
    image_pe = jax.random.normal(k2, (1, td, h, w), jnp.float32)
    sparse_prompt_embeddings = jax.random.normal(k3, (B, 2, td), jnp.float32)
    dense_prompt_embeddings = jax.random.normal(k4, (B, td, h, w), jnp.float32)
    interm_embeddings = [jax.random.normal(k5, (1, h, w, vit_dim), jnp.float32)]
    input_images = jax.random.uniform(k6, (1, 3, 16, 16), jnp.float32) * 255.0

    masks, iou_pred = mask_decoder_pa_forward(
        params, image_embeddings, image_pe, sparse_prompt_embeddings,
        dense_prompt_embeddings, multimask_output=True,
        interm_embeddings=interm_embeddings, hq_token_only=False,
        input_images=input_images)

    jax.block_until_ready((masks, iou_pred))
    assert masks.shape == (B, 1, 4 * h, 4 * w), masks.shape
    assert iou_pred.shape == (B, 1), iou_pred.shape
    print("KERNEL_OK")
</pallas_src>

<mosaic_0001>
module attributes {stable_mosaic.version = 11 : i64} {
  func.func @kernel(%arg0: i32, %arg1: memref<64x32xbf16, #tpu.memory_space<vmem>>, %arg2: memref<4x32x8xbf16, #tpu.memory_space<vmem>>, %arg3: memref<1x8xf32, #tpu.memory_space<vmem>>, %arg4: memref<1x8xf32, #tpu.memory_space<vmem>>, %arg5: memref<1x8xf32, #tpu.memory_space<vmem>>, %arg6: memref<4x8x4xbf16, #tpu.memory_space<vmem>>, %arg7: memref<1x4xf32, #tpu.memory_space<vmem>>, %arg8: memref<64x64xf32, #tpu.memory_space<vmem>>) attributes {dimension_semantics = [#tpu.dimension_semantics<parallel>], iteration_bounds = array<i64: 1>, scalar_prefetch = 0 : i64, scratch_operands = 0 : i64, tpu.core_type = #tpu.core_type<tc>, window_params = [{transform_indices = @transform_0, window_bounds = array<i64: 64, 32>}, {pipeline_mode = #tpu.pipeline_mode<synchronous>, transform_indices = @transform_1, window_bounds = array<i64: 4, 32, 8>}, {pipeline_mode = #tpu.pipeline_mode<synchronous>, transform_indices = @transform_2, window_bounds = array<i64: 1, 8>}, {pipeline_mode = #tpu.pipeline_mode<synchronous>, transform_indices = @transform_3, window_bounds = array<i64: 1, 8>}, {pipeline_mode = #tpu.pipeline_mode<synchronous>, transform_indices = @transform_4, window_bounds = array<i64: 1, 8>}, {pipeline_mode = #tpu.pipeline_mode<synchronous>, transform_indices = @transform_5, window_bounds = array<i64: 4, 8, 4>}, {pipeline_mode = #tpu.pipeline_mode<synchronous>, transform_indices = @transform_6, window_bounds = array<i64: 1, 4>}, {transform_indices = @transform_7, window_bounds = array<i64: 64, 64>}]} {
    %c0 = arith.constant 0 : index
    %c0_0 = arith.constant 0 : index
    %0 = vector.load %arg1[%c0, %c0_0] : memref<64x32xbf16, #tpu.memory_space<vmem>>, vector<64x32xbf16>
    %c0_1 = arith.constant 0 : index
    %c0_2 = arith.constant 0 : index
    %c0_3 = arith.constant 0 : index
    %1 = vector.load %arg2[%c0_1, %c0_2, %c0_3] : memref<4x32x8xbf16, #tpu.memory_space<vmem>>, vector<1x32x8xbf16>
    %2 = vector.shape_cast %1 : vector<1x32x8xbf16> to vector<32x8xbf16>
    %cst = arith.constant dense<0.000000e+00> : vector<64x8xf32>
    %3 = tpu.matmul %0, %2, %cst {dimension_numbers = #tpu.dot_dimension_numbers<[1], [0], [0], [1], [0, 0, 1, 1], [], []>} : vector<64x32xbf16>, vector<32x8xbf16>, vector<64x8xf32> -> vector<64x8xf32>
    %c0_4 = arith.constant 0 : index
    %c0_5 = arith.constant 0 : index
    %4 = vector.load %arg3[%c0_4, %c0_5] : memref<1x8xf32, #tpu.memory_space<vmem>>, vector<1x8xf32>
    %5 = vector.broadcast %4 : vector<1x8xf32> to vector<64x8xf32>
    %6 = arith.addf %3, %5 : vector<64x8xf32>
    %cst_6 = arith.constant dense<0.000000e+00> : vector<64xf32>
    %7 = vector.multi_reduction <add>, %6, %cst_6 [1] : vector<64x8xf32> to vector<64xf32>
    %8 = vector.shape_cast %7 : vector<64xf32> to vector<64x1xf32>
    %cst_7 = arith.constant 8.000000e+00 : f32
    %9 = vector.broadcast %cst_7 : f32 to vector<64x1xf32>
    %10 = arith.divf %8, %9 : vector<64x1xf32>
    %11 = vector.broadcast %10 : vector<64x1xf32> to vector<64x8xf32>
    %12 = arith.subf %6, %11 : vector<64x8xf32>
    %13 = arith.mulf %12, %12 : vector<64x8xf32>
    %cst_8 = arith.constant dense<0.000000e+00> : vector<64xf32>
    %14 = vector.multi_reduction <add>, %13, %cst_8 [1] : vector<64x8xf32> to vector<64xf32>
    %15 = vector.shape_cast %14 : vector<64xf32> to vector<64x1xf32>
    %cst_9 = arith.constant 8.000000e+00 : f32
    %16 = vector.broadcast %cst_9 : f32 to vector<64x1xf32>
    %17 = arith.divf %15, %16 : vector<64x1xf32>
    %cst_10 = arith.constant 9.99999997E-7 : f32
    %18 = vector.broadcast %cst_10 : f32 to vector<64x1xf32>
    %19 = arith.addf %17, %18 : vector<64x1xf32>
    %20 = math.rsqrt %19 : vector<64x1xf32>
    %21 = vector.broadcast %20 : vector<64x1xf32> to vector<64x8xf32>
    %22 = arith.mulf %12, %21 : vector<64x8xf32>
    %c0_11 = arith.constant 0 : index
    %c0_12 = arith.constant 0 : index
    %23 = vector.load %arg4[%c0_11, %c0_12] : memref<1x8xf32, #tpu.memory_space<vmem>>, vector<1x8xf32>
    %24 = vector.broadcast %23 : vector<1x8xf32> to vector<64x8xf32>
    %25 = arith.mulf %22, %24 : vector<64x8xf32>
    %c0_13 = arith.constant 0 : index
    %c0_14 = arith.constant 0 : index
    %26 = vector.load %arg5[%c0_13, %c0_14] : memref<1x8xf32, #tpu.memory_space<vmem>>, vector<1x8xf32>
    %27 = vector.broadcast %26 : vector<1x8xf32> to vector<64x8xf32>
    %28 = arith.addf %25, %27 : vector<64x8xf32>
    %cst_15 = arith.constant 5.000000e-01 : f32
    %29 = vector.broadcast %cst_15 : f32 to vector<64x8xf32>
    %30 = arith.mulf %29, %28 : vector<64x8xf32>
    %cst_16 = arith.constant 0.707106769 : f32
    %31 = vector.broadcast %cst_16 : f32 to vector<64x8xf32>
    %32 = arith.mulf %28, %31 : vector<64x8xf32>
    %33 = math.erf %32 : vector<64x8xf32>
    %cst_17 = arith.constant 1.000000e+00 : f32
    %34 = vector.broadcast %cst_17 : f32 to vector<64x8xf32>
    %35 = arith.addf %34, %33 : vector<64x8xf32>
    %36 = arith.mulf %30, %35 : vector<64x8xf32>
    %37 = arith.truncf %36 : vector<64x8xf32> to vector<64x8xbf16>
    %c0_18 = arith.constant 0 : index
    %c0_19 = arith.constant 0 : index
    %c0_20 = arith.constant 0 : index
    %38 = vector.load %arg6[%c0_18, %c0_19, %c0_20] : memref<4x8x4xbf16, #tpu.memory_space<vmem>>, vector<1x8x4xbf16>
    %39 = vector.shape_cast %38 : vector<1x8x4xbf16> to vector<8x4xbf16>
    %cst_21 = arith.constant dense<0.000000e+00> : vector<64x4xf32>
    %40 = tpu.matmul %37, %39, %cst_21 {dimension_numbers = #tpu.dot_dimension_numbers<[1], [0], [0], [1], [0, 0, 1, 1], [], []>} : vector<64x8xbf16>, vector<8x4xbf16>, vector<64x4xf32> -> vector<64x4xf32>
    %c0_22 = arith.constant 0 : index
    %c0_23 = arith.constant 0 : index
    %41 = vector.load %arg7[%c0_22, %c0_23] : memref<1x4xf32, #tpu.memory_space<vmem>>, vector<1x4xf32>
    %42 = vector.broadcast %41 : vector<1x4xf32> to vector<64x4xf32>
    %43 = arith.addf %40, %42 : vector<64x4xf32>
    %c1 = arith.constant 1 : index
    %c0_24 = arith.constant 0 : index
    %c0_25 = arith.constant 0 : index
    %44 = vector.load %arg6[%c1, %c0_24, %c0_25] : memref<4x8x4xbf16, #tpu.memory_space<vmem>>, vector<1x8x4xbf16>
    %45 = vector.shape_cast %44 : vector<1x8x4xbf16> to vector<8x4xbf16>
    %cst_26 = arith.constant dense<0.000000e+00> : vector<64x4xf32>
    %46 = tpu.matmul %37, %45, %cst_26 {dimension_numbers = #tpu.dot_dimension_numbers<[1], [0], [0], [1], [0, 0, 1, 1], [], []>} : vector<64x8xbf16>, vector<8x4xbf16>, vector<64x4xf32> -> vector<64x4xf32>
    %c0_27 = arith.constant 0 : index
    %c0_28 = arith.constant 0 : index
    %47 = vector.load %arg7[%c0_27, %c0_28] : memref<1x4xf32, #tpu.memory_space<vmem>>, vector<1x4xf32>
    %48 = vector.broadcast %47 : vector<1x4xf32> to vector<64x4xf32>
    %49 = arith.addf %46, %48 : vector<64x4xf32>
    %c2 = arith.constant 2 : index
    %c0_29 = arith.constant 0 : index
    %c0_30 = arith.constant 0 : index
    %50 = vector.load %arg6[%c2, %c0_29, %c0_30] : memref<4x8x4xbf16, #tpu.memory_space<vmem>>, vector<1x8x4xbf16>
    %51 = vector.shape_cast %50 : vector<1x8x4xbf16> to vector<8x4xbf16>
    %cst_31 = arith.constant dense<0.000000e+00> : vector<64x4xf32>
    %52 = tpu.matmul %37, %51, %cst_31 {dimension_numbers = #tpu.dot_dimension_numbers<[1], [0], [0], [1], [0, 0, 1, 1], [], []>} : vector<64x8xbf16>, vector<8x4xbf16>, vector<64x4xf32> -> vector<64x4xf32>
    %c0_32 = arith.constant 0 : index
    %c0_33 = arith.constant 0 : index
    %53 = vector.load %arg7[%c0_32, %c0_33] : memref<1x4xf32, #tpu.memory_space<vmem>>, vector<1x4xf32>
    %54 = vector.broadcast %53 : vector<1x4xf32> to vector<64x4xf32>
    %55 = arith.addf %52, %54 : vector<64x4xf32>
    %c3 = arith.constant 3 : index
    %c0_34 = arith.constant 0 : index
    %c0_35 = arith.constant 0 : index
    %56 = vector.load %arg6[%c3, %c0_34, %c0_35] : memref<4x8x4xbf16, #tpu.memory_space<vmem>>, vector<1x8x4xbf16>
    %57 = vector.shape_cast %56 : vector<1x8x4xbf16> to vector<8x4xbf16>
    %cst_36 = arith.constant dense<0.000000e+00> : vector<64x4xf32>
    %58 = tpu.matmul %37, %57, %cst_36 {dimension_numbers = #tpu.dot_dimension_numbers<[1], [0], [0], [1], [0, 0, 1, 1], [], []>} : vector<64x8xbf16>, vector<8x4xbf16>, vector<64x4xf32> -> vector<64x4xf32>
    %c0_37 = arith.constant 0 : index
    %c0_38 = arith.constant 0 : index
    %59 = vector.load %arg7[%c0_37, %c0_38] : memref<1x4xf32, #tpu.memory_space<vmem>>, vector<1x4xf32>
    %60 = vector.broadcast %59 : vector<1x4xf32> to vector<64x4xf32>
    %61 = arith.addf %58, %60 : vector<64x4xf32>
    %c1_39 = arith.constant 1 : index
    %c0_40 = arith.constant 0 : index
    %c0_41 = arith.constant 0 : index
    %62 = vector.load %arg2[%c1_39, %c0_40, %c0_41] : memref<4x32x8xbf16, #tpu.memory_space<vmem>>, vector<1x32x8xbf16>
    %63 = vector.shape_cast %62 : vector<1x32x8xbf16> to vector<32x8xbf16>
    %cst_42 = arith.constant dense<0.000000e+00> : vector<64x8xf32>
    %64 = tpu.matmul %0, %63, %cst_42 {dimension_numbers = #tpu.dot_dimension_numbers<[1], [0], [0], [1], [0, 0, 1, 1], [], []>} : vector<64x32xbf16>, vector<32x8xbf16>, vector<64x8xf32> -> vector<64x8xf32>
    %c0_43 = arith.constant 0 : index
    %c0_44 = arith.constant 0 : index
    %65 = vector.load %arg3[%c0_43, %c0_44] : memref<1x8xf32, #tpu.memory_space<vmem>>, vector<1x8xf32>
    %66 = vector.broadcast %65 : vector<1x8xf32> to vector<64x8xf32>
    %67 = arith.addf %64, %66 : vector<64x8xf32>
    %cst_45 = arith.constant dense<0.000000e+00> : vector<64xf32>
    %68 = vector.multi_reduction <add>, %67, %cst_45 [1] : vector<64x8xf32> to vector<64xf32>
    %69 = vector.shape_cast %68 : vector<64xf32> to vector<64x1xf32>
    %cst_46 = arith.constant 8.000000e+00 : f32
    %70 = vector.broadcast %cst_46 : f32 to vector<64x1xf32>
    %71 = arith.divf %69, %70 : vector<64x1xf32>
    %72 = vector.broadcast %71 : vector<64x1xf32> to vector<64x8xf32>
    %73 = arith.subf %67, %72 : vector<64x8xf32>
    %74 = arith.mulf %73, %73 : vector<64x8xf32>
    %cst_47 = arith.constant dense<0.000000e+00> : vector<64xf32>
    %75 = vector.multi_reduction <add>, %74, %cst_47 [1] : vector<64x8xf32> to vector<64xf32>
    %76 = vector.shape_cast %75 : vector<64xf32> to vector<64x1xf32>
    %cst_48 = arith.constant 8.000000e+00 : f32
    %77 = vector.broadcast %cst_48 : f32 to vector<64x1xf32>
    %78 = arith.divf %76, %77 : vector<64x1xf32>
    %cst_49 = arith.constant 9.99999997E-7 : f32
    %79 = vector.broadcast %cst_49 : f32 to vector<64x1xf32>
    %80 = arith.addf %78, %79 : vector<64x1xf32>
    %81 = math.rsqrt %80 : vector<64x1xf32>
    %82 = vector.broadcast %81 : vector<64x1xf32> to vector<64x8xf32>
    %83 = arith.mulf %73, %82 : vector<64x8xf32>
    %c0_50 = arith.constant 0 : index
    %c0_51 = arith.constant 0 : index
    %84 = vector.load %arg4[%c0_50, %c0_51] : memref<1x8xf32, #tpu.memory_space<vmem>>, vector<1x8xf32>
    %85 = vector.broadcast %84 : vector<1x8xf32> to vector<64x8xf32>
    %86 = arith.mulf %83, %85 : vector<64x8xf32>
    %c0_52 = arith.constant 0 : index
    %c0_53 = arith.constant 0 : index
    %87 = vector.load %arg5[%c0_52, %c0_53] : memref<1x8xf32, #tpu.memory_space<vmem>>, vector<1x8xf32>
    %88 = vector.broadcast %87 : vector<1x8xf32> to vector<64x8xf32>
    %89 = arith.addf %86, %88 : vector<64x8xf32>
    %cst_54 = arith.constant 5.000000e-01 : f32
    %90 = vector.broadcast %cst_54 : f32 to vector<64x8xf32>
    %91 = arith.mulf %90, %89 : vector<64x8xf32>
    %cst_55 = arith.constant 0.707106769 : f32
    %92 = vector.broadcast %cst_55 : f32 to vector<64x8xf32>
    %93 = arith.mulf %89, %92 : vector<64x8xf32>
    %94 = math.erf %93 : vector<64x8xf32>
    %cst_56 = arith.constant 1.000000e+00 : f32
    %95 = vector.broadcast %cst_56 : f32 to vector<64x8xf32>
    %96 = arith.addf %95, %94 : vector<64x8xf32>
    %97 = arith.mulf %91, %96 : vector<64x8xf32>
    %98 = arith.truncf %97 : vector<64x8xf32> to vector<64x8xbf16>
    %c0_57 = arith.constant 0 : index
    %c0_58 = arith.constant 0 : index
    %c0_59 = arith.constant 0 : index
    %99 = vector.load %arg6[%c0_57, %c0_58, %c0_59] : memref<4x8x4xbf16, #tpu.memory_space<vmem>>, vector<1x8x4xbf16>
    %100 = vector.shape_cast %99 : vector<1x8x4xbf16> to vector<8x4xbf16>
    %cst_60 = arith.constant dense<0.000000e+00> : vector<64x4xf32>
    %101 = tpu.matmul %98, %100, %cst_60 {dimension_numbers = #tpu.dot_dimension_numbers<[1], [0], [0], [1], [0, 0, 1, 1], [], []>} : vector<64x8xbf16>, vector<8x4xbf16>, vector<64x4xf32> -> vector<64x4xf32>
    %c0_61 = arith.constant 0 : index
    %c0_62 = arith.constant 0 : index
    %102 = vector.load %arg7[%c0_61, %c0_62] : memref<1x4xf32, #tpu.memory_space<vmem>>, vector<1x4xf32>
    %103 = vector.broadcast %102 : vector<1x4xf32> to vector<64x4xf32>
    %104 = arith.addf %101, %103 : vector<64x4xf32>
    %c1_63 = arith.constant 1 : index
    %c0_64 = arith.constant 0 : index
    %c0_65 = arith.constant 0 : index
    %105 = vector.load %arg6[%c1_63, %c0_64, %c0_65] : memref<4x8x4xbf16, #tpu.memory_space<vmem>>, vector<1x8x4xbf16>
    %106 = vector.shape_cast %105 : vector<1x8x4xbf16> to vector<8x4xbf16>
    %cst_66 = arith.constant dense<0.000000e+00> : vector<64x4xf32>
    %107 = tpu.matmul %98, %106, %cst_66 {dimension_numbers = #tpu.dot_dimension_numbers<[1], [0], [0], [1], [0, 0, 1, 1], [], []>} : vector<64x8xbf16>, vector<8x4xbf16>, vector<64x4xf32> -> vector<64x4xf32>
    %c0_67 = arith.constant 0 : index
    %c0_68 = arith.constant 0 : index
    %108 = vector.load %arg7[%c0_67, %c0_68] : memref<1x4xf32, #tpu.memory_space<vmem>>, vector<1x4xf32>
    %109 = vector.broadcast %108 : vector<1x4xf32> to vector<64x4xf32>
    %110 = arith.addf %107, %109 : vector<64x4xf32>
    %c2_69 = arith.constant 2 : index
    %c0_70 = arith.constant 0 : index
    %c0_71 = arith.constant 0 : index
    %111 = vector.load %arg6[%c2_69, %c0_70, %c0_71] : memref<4x8x4xbf16, #tpu.memory_space<vmem>>, vector<1x8x4xbf16>
    %112 = vector.shape_cast %111 : vector<1x8x4xbf16> to vector<8x4xbf16>
    %cst_72 = arith.constant dense<0.000000e+00> : vector<64x4xf32>
    %113 = tpu.matmul %98, %112, %cst_72 {dimension_numbers = #tpu.dot_dimension_numbers<[1], [0], [0], [1], [0, 0, 1, 1], [], []>} : vector<64x8xbf16>, vector<8x4xbf16>, vector<64x4xf32> -> vector<64x4xf32>
    %c0_73 = arith.constant 0 : index
    %c0_74 = arith.constant 0 : index
    %114 = vector.load %arg7[%c0_73, %c0_74] : memref<1x4xf32, #tpu.memory_space<vmem>>, vector<1x4xf32>
    %115 = vector.broadcast %114 : vector<1x4xf32> to vector<64x4xf32>
    %116 = arith.addf %113, %115 : vector<64x4xf32>
    %c3_75 = arith.constant 3 : index
    %c0_76 = arith.constant 0 : index
    %c0_77 = arith.constant 0 : index
    %117 = vector.load %arg6[%c3_75, %c0_76, %c0_77] : memref<4x8x4xbf16, #tpu.memory_space<vmem>>, vector<1x8x4xbf16>
    %118 = vector.shape_cast %117 : vector<1x8x4xbf16> to vector<8x4xbf16>
    %cst_78 = arith.constant dense<0.000000e+00> : vector<64x4xf32>
    %119 = tpu.matmul %98, %118, %cst_78 {dimension_numbers = #tpu.dot_dimension_numbers<[1], [0], [0], [1], [0, 0, 1, 1], [], []>} : vector<64x8xbf16>, vector<8x4xbf16>, vector<64x4xf32> -> vector<64x4xf32>
    %c0_79 = arith.constant 0 : index
    %c0_80 = arith.constant 0 : index
    %120 = vector.load %arg7[%c0_79, %c0_80] : memref<1x4xf32, #tpu.memory_space<vmem>>, vector<1x4xf32>
    %121 = vector.broadcast %120 : vector<1x4xf32> to vector<64x4xf32>
    %122 = arith.addf %119, %121 : vector<64x4xf32>
    %c2_81 = arith.constant 2 : index
    %c0_82 = arith.constant 0 : index
    %c0_83 = arith.constant 0 : index
    %123 = vector.load %arg2[%c2_81, %c0_82, %c0_83] : memref<4x32x8xbf16, #tpu.memory_space<vmem>>, vector<1x32x8xbf16>
    %124 = vector.shape_cast %123 : vector<1x32x8xbf16> to vector<32x8xbf16>
    %cst_84 = arith.constant dense<0.000000e+00> : vector<64x8xf32>
    %125 = tpu.matmul %0, %124, %cst_84 {dimension_numbers = #tpu.dot_dimension_numbers<[1], [0], [0], [1], [0, 0, 1, 1], [], []>} : vector<64x32xbf16>, vector<32x8xbf16>, vector<64x8xf32> -> vector<64x8xf32>
    %c0_85 = arith.constant 0 : index
    %c0_86 = arith.constant 0 : index
    %126 = vector.load %arg3[%c0_85, %c0_86] : memref<1x8xf32, #tpu.memory_space<vmem>>, vector<1x8xf32>
    %127 = vector.broadcast %126 : vector<1x8xf32> to vector<64x8xf32>
    %128 = arith.addf %125, %127 : vector<64x8xf32>
    %cst_87 = arith.constant dense<0.000000e+00> : vector<64xf32>
    %129 = vector.multi_reduction <add>, %128, %cst_87 [1] : vector<64x8xf32> to vector<64xf32>
    %130 = vector.shape_cast %129 : vector<64xf32> to vector<64x1xf32>
    %cst_88 = arith.constant 8.000000e+00 : f32
    %131 = vector.broadcast %cst_88 : f32 to vector<64x1xf32>
    %132 = arith.divf %130, %131 : vector<64x1xf32>
    %133 = vector.broadcast %132 : vector<64x1xf32> to vector<64x8xf32>
    %134 = arith.subf %128, %133 : vector<64x8xf32>
    %135 = arith.mulf %134, %134 : vector<64x8xf32>
    %cst_89 = arith.constant dense<0.000000e+00> : vector<64xf32>
    %136 = vector.multi_reduction <add>, %135, %cst_89 [1] : vector<64x8xf32> to vector<64xf32>
    %137 = vector.shape_cast %136 : vector<64xf32> to vector<64x1xf32>
    %cst_90 = arith.constant 8.000000e+00 : f32
    %138 = vector.broadcast %cst_90 : f32 to vector<64x1xf32>
    %139 = arith.divf %137, %138 : vector<64x1xf32>
    %cst_91 = arith.constant 9.99999997E-7 : f32
    %140 = vector.broadcast %cst_91 : f32 to vector<64x1xf32>
    %141 = arith.addf %139, %140 : vector<64x1xf32>
    %142 = math.rsqrt %141 : vector<64x1xf32>
    %143 = vector.broadcast %142 : vector<64x1xf32> to vector<64x8xf32>
    %144 = arith.mulf %134, %143 : vector<64x8xf32>
    %c0_92 = arith.constant 0 : index
    %c0_93 = arith.constant 0 : index
    %145 = vector.load %arg4[%c0_92, %c0_93] : memref<1x8xf32, #tpu.memory_space<vmem>>, vector<1x8xf32>
    %146 = vector.broadcast %145 : vector<1x8xf32> to vector<64x8xf32>
    %147 = arith.mulf %144, %146 : vector<64x8xf32>
    %c0_94 = arith.constant 0 : index
    %c0_95 = arith.constant 0 : index
    %148 = vector.load %arg5[%c0_94, %c0_95] : memref<1x8xf32, #tpu.memory_space<vmem>>, vector<1x8xf32>
    %149 = vector.broadcast %148 : vector<1x8xf32> to vector<64x8xf32>
    %150 = arith.addf %147, %149 : vector<64x8xf32>
    %cst_96 = arith.constant 5.000000e-01 : f32
    %151 = vector.broadcast %cst_96 : f32 to vector<64x8xf32>
    %152 = arith.mulf %151, %150 : vector<64x8xf32>
    %cst_97 = arith.constant 0.707106769 : f32
    %153 = vector.broadcast %cst_97 : f32 to vector<64x8xf32>
    %154 = arith.mulf %150, %153 : vector<64x8xf32>
    %155 = math.erf %154 : vector<64x8xf32>
    %cst_98 = arith.constant 1.000000e+00 : f32
    %156 = vector.broadcast %cst_98 : f32 to vector<64x8xf32>
    %157 = arith.addf %156, %155 : vector<64x8xf32>
    %158 = arith.mulf %152, %157 : vector<64x8xf32>
    %159 = arith.truncf %158 : vector<64x8xf32> to vector<64x8xbf16>
    %c0_99 = arith.constant 0 : index
    %c0_100 = arith.constant 0 : index
    %c0_101 = arith.constant 0 : index
    %160 = vector.load %arg6[%c0_99, %c0_100, %c0_101] : memref<4x8x4xbf16, #tpu.memory_space<vmem>>, vector<1x8x4xbf16>
    %161 = vector.shape_cast %160 : vector<1x8x4xbf16> to vector<8x4xbf16>
    %cst_102 = arith.constant dense<0.000000e+00> : vector<64x4xf32>
    %162 = tpu.matmul %159, %161, %cst_102 {dimension_numbers = #tpu.dot_dimension_numbers<[1], [0], [0], [1], [0, 0, 1, 1], [], []>} : vector<64x8xbf16>, vector<8x4xbf16>, vector<64x4xf32> -> vector<64x4xf32>
    %c0_103 = arith.constant 0 : index
    %c0_104 = arith.constant 0 : index
    %163 = vector.load %arg7[%c0_103, %c0_104] : memref<1x4xf32, #tpu.memory_space<vmem>>, vector<1x4xf32>
    %164 = vector.broadcast %163 : vector<1x4xf32> to vector<64x4xf32>
    %165 = arith.addf %162, %164 : vector<64x4xf32>
    %c1_105 = arith.constant 1 : index
    %c0_106 = arith.constant 0 : index
    %c0_107 = arith.constant 0 : index
    %166 = vector.load %arg6[%c1_105, %c0_106, %c0_107] : memref<4x8x4xbf16, #tpu.memory_space<vmem>>, vector<1x8x4xbf16>
    %167 = vector.shape_cast %166 : vector<1x8x4xbf16> to vector<8x4xbf16>
    %cst_108 = arith.constant dense<0.000000e+00> : vector<64x4xf32>
    %168 = tpu.matmul %159, %167, %cst_108 {dimension_numbers = #tpu.dot_dimension_numbers<[1], [0], [0], [1], [0, 0, 1, 1], [], []>} : vector<64x8xbf16>, vector<8x4xbf16>, vector<64x4xf32> -> vector<64x4xf32>
    %c0_109 = arith.constant 0 : index
    %c0_110 = arith.constant 0 : index
    %169 = vector.load %arg7[%c0_109, %c0_110] : memref<1x4xf32, #tpu.memory_space<vmem>>, vector<1x4xf32>
    %170 = vector.broadcast %169 : vector<1x4xf32> to vector<64x4xf32>
    %171 = arith.addf %168, %170 : vector<64x4xf32>
    %c2_111 = arith.constant 2 : index
    %c0_112 = arith.constant 0 : index
    %c0_113 = arith.constant 0 : index
    %172 = vector.load %arg6[%c2_111, %c0_112, %c0_113] : memref<4x8x4xbf16, #tpu.memory_space<vmem>>, vector<1x8x4xbf16>
    %173 = vector.shape_cast %172 : vector<1x8x4xbf16> to vector<8x4xbf16>
    %cst_114 = arith.constant dense<0.000000e+00> : vector<64x4xf32>
    %174 = tpu.matmul %159, %173, %cst_114 {dimension_numbers = #tpu.dot_dimension_numbers<[1], [0], [0], [1], [0, 0, 1, 1], [], []>} : vector<64x8xbf16>, vector<8x4xbf16>, vector<64x4xf32> -> vector<64x4xf32>
    %c0_115 = arith.constant 0 : index
    %c0_116 = arith.constant 0 : index
    %175 = vector.load %arg7[%c0_115, %c0_116] : memref<1x4xf32, #tpu.memory_space<vmem>>, vector<1x4xf32>
    %176 = vector.broadcast %175 : vector<1x4xf32> to vector<64x4xf32>
    %177 = arith.addf %174, %176 : vector<64x4xf32>
    %c3_117 = arith.constant 3 : index
    %c0_118 = arith.constant 0 : index
    %c0_119 = arith.constant 0 : index
    %178 = vector.load %arg6[%c3_117, %c0_118, %c0_119] : memref<4x8x4xbf16, #tpu.memory_space<vmem>>, vector<1x8x4xbf16>
    %179 = vector.shape_cast %178 : vector<1x8x4xbf16> to vector<8x4xbf16>
    %cst_120 = arith.constant dense<0.000000e+00> : vector<64x4xf32>
    %180 = tpu.matmul %159, %179, %cst_120 {dimension_numbers = #tpu.dot_dimension_numbers<[1], [0], [0], [1], [0, 0, 1, 1], [], []>} : vector<64x8xbf16>, vector<8x4xbf16>, vector<64x4xf32> -> vector<64x4xf32>
    %c0_121 = arith.constant 0 : index
    %c0_122 = arith.constant 0 : index
    %181 = vector.load %arg7[%c0_121, %c0_122] : memref<1x4xf32, #tpu.memory_space<vmem>>, vector<1x4xf32>
    %182 = vector.broadcast %181 : vector<1x4xf32> to vector<64x4xf32>
    %183 = arith.addf %180, %182 : vector<64x4xf32>
    %c3_123 = arith.constant 3 : index
    %c0_124 = arith.constant 0 : index
    %c0_125 = arith.constant 0 : index
    %184 = vector.load %arg2[%c3_123, %c0_124, %c0_125] : memref<4x32x8xbf16, #tpu.memory_space<vmem>>, vector<1x32x8xbf16>
    %185 = vector.shape_cast %184 : vector<1x32x8xbf16> to vector<32x8xbf16>
    %cst_126 = arith.constant dense<0.000000e+00> : vector<64x8xf32>
    %186 = tpu.matmul %0, %185, %cst_126 {dimension_numbers = #tpu.dot_dimension_numbers<[1], [0], [0], [1], [0, 0, 1, 1], [], []>} : vector<64x32xbf16>, vector<32x8xbf16>, vector<64x8xf32> -> vector<64x8xf32>
    %c0_127 = arith.constant 0 : index
    %c0_128 = arith.constant 0 : index
    %187 = vector.load %arg3[%c0_127, %c0_128] : memref<1x8xf32, #tpu.memory_space<vmem>>, vector<1x8xf32>
    %188 = vector.broadcast %187 : vector<1x8xf32> to vector<64x8xf32>
    %189 = arith.addf %186, %188 : vector<64x8xf32>
    %cst_129 = arith.constant dense<0.000000e+00> : vector<64xf32>
    %190 = vector.multi_reduction <add>, %189, %cst_129 [1] : vector<64x8xf32> to vector<64xf32>
    %191 = vector.shape_cast %190 : vector<64xf32> to vector<64x1xf32>
    %cst_130 = arith.constant 8.000000e+00 : f32
    %192 = vector.broadcast %cst_130 : f32 to vector<64x1xf32>
    %193 = arith.divf %191, %192 : vector<64x1xf32>
    %194 = vector.broadcast %193 : vector<64x1xf32> to vector<64x8xf32>
    %195 = arith.subf %189, %194 : vector<64x8xf32>
    %196 = arith.mulf %195, %195 : vector<64x8xf32>
    %cst_131 = arith.constant dense<0.000000e+00> : vector<64xf32>
    %197 = vector.multi_reduction <add>, %196, %cst_131 [1] : vector<64x8xf32> to vector<64xf32>
    %198 = vector.shape_cast %197 : vector<64xf32> to vector<64x1xf32>
    %cst_132 = arith.constant 8.000000e+00 : f32
    %199 = vector.broadcast %cst_132 : f32 to vector<64x1xf32>
    %200 = arith.divf %198, %199 : vector<64x1xf32>
    %cst_133 = arith.constant 9.99999997E-7 : f32
    %201 = vector.broadcast %cst_133 : f32 to vector<64x1xf32>
    %202 = arith.addf %200, %201 : vector<64x1xf32>
    %203 = math.rsqrt %202 : vector<64x1xf32>
    %204 = vector.broadcast %203 : vector<64x1xf32> to vector<64x8xf32>
    %205 = arith.mulf %195, %204 : vector<64x8xf32>
    %c0_134 = arith.constant 0 : index
    %c0_135 = arith.constant 0 : index
    %206 = vector.load %arg4[%c0_134, %c0_135] : memref<1x8xf32, #tpu.memory_space<vmem>>, vector<1x8xf32>
    %207 = vector.broadcast %206 : vector<1x8xf32> to vector<64x8xf32>
    %208 = arith.mulf %205, %207 : vector<64x8xf32>
    %c0_136 = arith.constant 0 : index
    %c0_137 = arith.constant 0 : index
    %209 = vector.load %arg5[%c0_136, %c0_137] : memref<1x8xf32, #tpu.memory_space<vmem>>, vector<1x8xf32>
    %210 = vector.broadcast %209 : vector<1x8xf32> to vector<64x8xf32>
    %211 = arith.addf %208, %210 : vector<64x8xf32>
    %cst_138 = arith.constant 5.000000e-01 : f32
    %212 = vector.broadcast %cst_138 : f32 to vector<64x8xf32>
    %213 = arith.mulf %212, %211 : vector<64x8xf32>
    %cst_139 = arith.constant 0.707106769 : f32
    %214 = vector.broadcast %cst_139 : f32 to vector<64x8xf32>
    %215 = arith.mulf %211, %214 : vector<64x8xf32>
    %216 = math.erf %215 : vector<64x8xf32>
    %cst_140 = arith.constant 1.000000e+00 : f32
    %217 = vector.broadcast %cst_140 : f32 to vector<64x8xf32>
    %218 = arith.addf %217, %216 : vector<64x8xf32>
    %219 = arith.mulf %213, %218 : vector<64x8xf32>
    %220 = arith.truncf %219 : vector<64x8xf32> to vector<64x8xbf16>
    %c0_141 = arith.constant 0 : index
    %c0_142 = arith.constant 0 : index
    %c0_143 = arith.constant 0 : index
    %221 = vector.load %arg6[%c0_141, %c0_142, %c0_143] : memref<4x8x4xbf16, #tpu.memory_space<vmem>>, vector<1x8x4xbf16>
    %222 = vector.shape_cast %221 : vector<1x8x4xbf16> to vector<8x4xbf16>
    %cst_144 = arith.constant dense<0.000000e+00> : vector<64x4xf32>
    %223 = tpu.matmul %220, %222, %cst_144 {dimension_numbers = #tpu.dot_dimension_numbers<[1], [0], [0], [1], [0, 0, 1, 1], [], []>} : vector<64x8xbf16>, vector<8x4xbf16>, vector<64x4xf32> -> vector<64x4xf32>
    %c0_145 = arith.constant 0 : index
    %c0_146 = arith.constant 0 : index
    %224 = vector.load %arg7[%c0_145, %c0_146] : memref<1x4xf32, #tpu.memory_space<vmem>>, vector<1x4xf32>
    %225 = vector.broadcast %224 : vector<1x4xf32> to vector<64x4xf32>
    %226 = arith.addf %223, %225 : vector<64x4xf32>
    %c1_147 = arith.constant 1 : index
    %c0_148 = arith.constant 0 : index
    %c0_149 = arith.constant 0 : index
    %227 = vector.load %arg6[%c1_147, %c0_148, %c0_149] : memref<4x8x4xbf16, #tpu.memory_space<vmem>>, vector<1x8x4xbf16>
    %228 = vector.shape_cast %227 : vector<1x8x4xbf16> to vector<8x4xbf16>
    %cst_150 = arith.constant dense<0.000000e+00> : vector<64x4xf32>
    %229 = tpu.matmul %220, %228, %cst_150 {dimension_numbers = #tpu.dot_dimension_numbers<[1], [0], [0], [1], [0, 0, 1, 1], [], []>} : vector<64x8xbf16>, vector<8x4xbf16>, vector<64x4xf32> -> vector<64x4xf32>
    %c0_151 = arith.constant 0 : index
    %c0_152 = arith.constant 0 : index
    %230 = vector.load %arg7[%c0_151, %c0_152] : memref<1x4xf32, #tpu.memory_space<vmem>>, vector<1x4xf32>
    %231 = vector.broadcast %230 : vector<1x4xf32> to vector<64x4xf32>
    %232 = arith.addf %229, %231 : vector<64x4xf32>
    %c2_153 = arith.constant 2 : index
    %c0_154 = arith.constant 0 : index
    %c0_155 = arith.constant 0 : index
    %233 = vector.load %arg6[%c2_153, %c0_154, %c0_155] : memref<4x8x4xbf16, #tpu.memory_space<vmem>>, vector<1x8x4xbf16>
    %234 = vector.shape_cast %233 : vector<1x8x4xbf16> to vector<8x4xbf16>
    %cst_156 = arith.constant dense<0.000000e+00> : vector<64x4xf32>
    %235 = tpu.matmul %220, %234, %cst_156 {dimension_numbers = #tpu.dot_dimension_numbers<[1], [0], [0], [1], [0, 0, 1, 1], [], []>} : vector<64x8xbf16>, vector<8x4xbf16>, vector<64x4xf32> -> vector<64x4xf32>
    %c0_157 = arith.constant 0 : index
    %c0_158 = arith.constant 0 : index
    %236 = vector.load %arg7[%c0_157, %c0_158] : memref<1x4xf32, #tpu.memory_space<vmem>>, vector<1x4xf32>
    %237 = vector.broadcast %236 : vector<1x4xf32> to vector<64x4xf32>
    %238 = arith.addf %235, %237 : vector<64x4xf32>
    %c3_159 = arith.constant 3 : index
    %c0_160 = arith.constant 0 : index
    %c0_161 = arith.constant 0 : index
    %239 = vector.load %arg6[%c3_159, %c0_160, %c0_161] : memref<4x8x4xbf16, #tpu.memory_space<vmem>>, vector<1x8x4xbf16>
    %240 = vector.shape_cast %239 : vector<1x8x4xbf16> to vector<8x4xbf16>
    %cst_162 = arith.constant dense<0.000000e+00> : vector<64x4xf32>
    %241 = tpu.matmul %220, %240, %cst_162 {dimension_numbers = #tpu.dot_dimension_numbers<[1], [0], [0], [1], [0, 0, 1, 1], [], []>} : vector<64x8xbf16>, vector<8x4xbf16>, vector<64x4xf32> -> vector<64x4xf32>
    %c0_163 = arith.constant 0 : index
    %c0_164 = arith.constant 0 : index
    %242 = vector.load %arg7[%c0_163, %c0_164] : memref<1x4xf32, #tpu.memory_space<vmem>>, vector<1x4xf32>
    %243 = vector.broadcast %242 : vector<1x4xf32> to vector<64x4xf32>
    %244 = arith.addf %241, %243 : vector<64x4xf32>
    %245 = tpu.concatenate %43, %49, %55, %61, %104, %110, %116, %122, %165, %171, %177, %183, %226, %232, %238, %244 in 1 : vector<64x4xf32>, vector<64x4xf32>, vector<64x4xf32>, vector<64x4xf32>, vector<64x4xf32>, vector<64x4xf32>, vector<64x4xf32>, vector<64x4xf32>, vector<64x4xf32>, vector<64x4xf32>, vector<64x4xf32>, vector<64x4xf32>, vector<64x4xf32>, vector<64x4xf32>, vector<64x4xf32>, vector<64x4xf32> -> vector<64x64xf32>
    %c0_165 = arith.constant 0 : index
    %c0_166 = arith.constant 0 : index
    %246 = vector.load %arg8[%c0_165, %c0_166] : memref<64x64xf32, #tpu.memory_space<vmem>>, vector<64x64xf32>
    tpu.vector_store %arg8[%c0_165, %c0_166], %245 {strides = array<i32>} : memref<64x64xf32, #tpu.memory_space<vmem>>, vector<64x64xf32>,
    return
  }
  func.func @transform_0(%arg0: i32) -> (i32, i32) {
    %c0_i32 = arith.constant 0 : i32
    %c0_i32_0 = arith.constant 0 : i32
    return %arg0, %c0_i32 : i32, i32
  }
  func.func @transform_1(%arg0: i32) -> (i32, i32, i32) {
    %c0_i32 = arith.constant 0 : i32
    %c0_i32_0 = arith.constant 0 : i32
    %c0_i32_1 = arith.constant 0 : i32
    %c0_i32_2 = arith.constant 0 : i32
    return %c0_i32, %c0_i32_0, %c0_i32_1 : i32, i32, i32
  }
  func.func @transform_2(%arg0: i32) -> (i32, i32) {
    %c0_i32 = arith.constant 0 : i32
    %c0_i32_0 = arith.constant 0 : i32
    %c0_i32_1 = arith.constant 0 : i32
    return %c0_i32, %c0_i32_0 : i32, i32
  }
  func.func @transform_3(%arg0: i32) -> (i32, i32) {
    %c0_i32 = arith.constant 0 : i32
    %c0_i32_0 = arith.constant 0 : i32
    %c0_i32_1 = arith.constant 0 : i32
    return %c0_i32, %c0_i32_0 : i32, i32
  }
  func.func @transform_4(%arg0: i32) -> (i32, i32) {
    %c0_i32 = arith.constant 0 : i32
    %c0_i32_0 = arith.constant 0 : i32
    %c0_i32_1 = arith.constant 0 : i32
    return %c0_i32, %c0_i32_0 : i32, i32
  }
  func.func @transform_5(%arg0: i32) -> (i32, i32, i32) {
    %c0_i32 = arith.constant 0 : i32
    %c0_i32_0 = arith.constant 0 : i32
    %c0_i32_1 = arith.constant 0 : i32
    %c0_i32_2 = arith.constant 0 : i32
    return %c0_i32, %c0_i32_0, %c0_i32_1 : i32, i32, i32
  }
  func.func @transform_6(%arg0: i32) -> (i32, i32) {
    %c0_i32 = arith.constant 0 : i32
    %c0_i32_0 = arith.constant 0 : i32
    %c0_i32_1 = arith.constant 0 : i32
    return %c0_i32, %c0_i32_0 : i32, i32
  }
  func.func @transform_7(%arg0: i32) -> (i32, i32) {
    %c0_i32 = arith.constant 0 : i32
    %c0_i32_0 = arith.constant 0 : i32
    return %arg0, %c0_i32 : i32, i32
  }
}

</mosaic_0001>

<llo_original>
// kernel: tpu_custom_call.1
$region0: #{tpu_custom_call.1}
  #allocation0 [shape = 'u32[]', space=smem, size = 0x4, offset = 0x4, fixed_abs, tag = 'smem constant byte address 0x4 - core index']
  #allocation1 [shape = 'u32[144,128]{1,0:T(1,128)}', space=vmem, size = 0x12000, scoped, tag = 'internal scratch']
  %s0 = inlined_call_operand.vmem [shape: bf16[64,32], index: 0, kind: input, shape index: {}]
  %s1 = inlined_call_operand.vmem [shape: bf16[4,32,8], index: 1, kind: input, shape index: {}]
  %s2 = inlined_call_operand.vmem [shape: f32[1,8], index: 2, kind: input, shape index: {}]
  %s3 = inlined_call_operand.vmem [shape: f32[1,8], index: 3, kind: input, shape index: {}]
  %s4 = inlined_call_operand.vmem [shape: f32[1,8], index: 4, kind: input, shape index: {}]
  %s5 = inlined_call_operand.vmem [shape: bf16[4,8,4], index: 5, kind: input, shape index: {}]
  %s6 = inlined_call_operand.vmem [shape: f32[1,4], index: 6, kind: input, shape index: {}]
  %s7 = inlined_call_operand.hbm [shape: f32[64,64], index: 7, kind: output, shape index: {}]
  %s8 = sld [smem:[#allocation0]]
  $region38: #{tpu_custom_call.1} parent=0
    _
  %s10 = ssub.s32 1, %s8
  %s11 = scalar_select 0, %s10, %s8
  $region1: #{tpu_custom_call.1} parent=0
    #allocation2 [shape = 'u8[32768]{0}', space=vmem, size = 0x8000, scoped, tag = 'output window, operand 0, single buffered']
    #allocation3 [shape = 's32[1]{0}', space=sflag, size = 0x4, scoped, tag = 'scoped memory for tpu_custom_call.1']
    %12 = vsyncpa [#allocation3], 0
    // Predicated region
    $region2: #{tpu_custom_call.1} parent=1 // pred_check
      _
    $region3: #{tpu_custom_call.1} parent=1 // pred_check_branch
      %14 = sbr.rel (0) target = $region5
    $region4: #{tpu_custom_call.1} parent=1 // pred_region
      _
    $region5: #{tpu_custom_call.1} parent=1 // pred_fallthru
      _
    // Predicated region
    $region6: #{tpu_custom_call.1} parent=1 // pred_check
      _
    $region7: #{tpu_custom_call.1} parent=1 // pred_check_branch
      %16 = sbr.rel (0) target = $region9
    $region8: #{tpu_custom_call.1} parent=1 // pred_region
      _
    $region9: #{tpu_custom_call.1} parent=1 // pred_fallthru
      _
    // Predicated region
    $region10: #{tpu_custom_call.1} parent=1 // pred_check
      _
    $region11: #{tpu_custom_call.1} parent=1 // pred_check_branch
      %18 = sbr.rel (0) target = $region13
    $region12: #{tpu_custom_call.1} parent=1 // pred_region
      _
    $region13: #{tpu_custom_call.1} parent=1 // pred_fallthru
      _
    // Predicated region
    $region14: #{tpu_custom_call.1} parent=1 // pred_check
      _
    $region15: #{tpu_custom_call.1} parent=1 // pred_check_branch
      %20 = sbr.rel (0) target = $region17
    $region16: #{tpu_custom_call.1} parent=1 // pred_region
      _
    $region17: #{tpu_custom_call.1} parent=1 // pred_fallthru
      _
    // Predicated region
    $region18: #{tpu_custom_call.1} parent=1 // pred_check
      _
    $region19: #{tpu_custom_call.1} parent=1 // pred_check_branch
      %22 = sbr.rel (0) target = $region21
    $region20: #{tpu_custom_call.1} parent=1 // pred_region
      _
    $region21: #{tpu_custom_call.1} parent=1 // pred_fallthru
      _
    // Predicated region
    $region22: #{tpu_custom_call.1} parent=1 // pred_check
      _
    $region23: #{tpu_custom_call.1} parent=1 // pred_check_branch
      %24 = sbr.rel (0) target = $region25
    $region24: #{tpu_custom_call.1} parent=1 // pred_region
      _
    $region25: #{tpu_custom_call.1} parent=1 // pred_fallthru
      _
    // Predicated region
    $region26: #{tpu_custom_call.1} parent=1 // pred_check
      _
    $region27: #{tpu_custom_call.1} parent=1 // pred_check_branch
      %26 = sbr.rel (0) target = $region29
    $region28: #{tpu_custom_call.1} parent=1 // pred_region
      _
    $region29: #{tpu_custom_call.1} parent=1 // pred_fallthru
      _
    %v28 = vld [vmem:[%s0] sm:$0xf]
    %v29 = vld [vmem:[%s0 + $0x4] sm:$0xf]
    %v30 = vld [vmem:[%s0 + $0x8] sm:$0xf]
    %v31 = vld [vmem:[%s0 + $0xc] sm:$0xf]
    %v32 = vld [vmem:[%s0 + $0x10] sm:$0xf]
    %v33 = vld [vmem:[%s0 + $0x14] sm:$0xf]
    %v34 = vld [vmem:[%s0 + $0x18] sm:$0xf]
    %v35 = vld [vmem:[%s0 + $0x1c] sm:$0xf]
    %v36 = vld [vmem:[%s1] sm:$0xf]
    %v37 = vld [vmem:[%s1 + $0x4] sm:$0xf]
    %v38 = vld [vmem:[%s1 + $0x8] sm:$0xf]
    %v39 = vld [vmem:[%s1 + $0xc] sm:$0xf]
    %v40 = vld [vmem:[%s2] sm:$0x1]
    %v42 = vlaneseq
    %v43 = vshrl.u32 %v42, 7
    %v44 = vsub.s32 0, %v43
    %v45 = vrot.slane %v40, %v44
    %v55 = vunpack.c.l.b16 %v28
    %v56 = vunpack.c.l.b16 %v29
    %v57 = vunpack.c.l.b16 %v30
    %v58 = vunpack.c.l.b16 %v31
    %v59 = vunpack.c.l.b16 %v32
    %v60 = vunpack.c.l.b16 %v33
    %v61 = vunpack.c.l.b16 %v34
    %v62 = vunpack.c.l.b16 %v35
    %v63 = vpack.c.b16 %v56, %v55
    %v64 = vpack.c.b16 %v58, %v57
    %v65 = vpack.c.b16 %v60, %v59
    %v66 = vpack.c.b16 %v62, %v61
    %v71 = vunpack.c.l.b16 %v36
    %v72 = vunpack.c.l.b16 %v37
    %v73 = vunpack.c.l.b16 %v38
    %v74 = vunpack.c.l.b16 %v39
    %v75 = vpack.c.b16 %v72, %v71
    %v76 = vpack.c.b16 %v74, %v73
    %vm79 = vcmask 261120
    %v81 = vsel %vm79, %v63, 0
    %v84 = vsel %vm79, %v64, 0
    %v87 = vsel %vm79, %v65, 0
    %v90 = vsel %vm79, %v66, 0
    %92 = vmatprep.subr.bf16.mxu0 0
    %93 = vmatpush1.bf16.msra.mxu0 %v75
    %94 = vmatprep.subr.bf16.mxu0 0
    %95 = vmatpush1.bf16.msra.mxu0 %v76
    %96 = vmatprep.subr.bf16.mxu0 0
    %97 = vmatpush1.bf16.msra.mxu0 0
    %98 = vmatprep.subr.bf16.mxu0 0
    %99 = vmatpush1.bf16.msra.mxu0 0
    %100 = vmatprep.subr.bf16.mxu0 0
    %101 = vmatpush1.bf16.msra.mxu0 0
    %102 = vmatprep.subr.bf16.mxu0 0
    %103 = vmatpush1.bf16.msra.mxu0 0
    %104 = vmatprep.subr.bf16.mxu0 0
    %105 = vmatpush1.bf16.msra.mxu0 0
    %106 = vmatprep.subr.bf16.mxu0 0
    %107 = vmatpush1.bf16.msra.mxu0 0
    %108 = vmatprep.subr.bf16.mxu0 0
    %109 = vmatpush1.bf16.msra.mxu0 0
    %110 = vmatprep.subr.bf16.mxu0 0
    %111 = vmatpush1.bf16.msra.mxu0 0
    %112 = vmatprep.subr.bf16.mxu0 0
    %113 = vmatpush1.bf16.msra.mxu0 0
    %114 = vmatprep.subr.bf16.mxu0 0
    %115 = vmatpush1.bf16.msra.mxu0 0
    %116 = vmatprep.subr.bf16.mxu0 0
    %117 = vmatpush1.bf16.msra.mxu0 0
    %118 = vmatprep.subr.bf16.mxu0 0
    %119 = vmatpush1.bf16.msra.mxu0 0
    %120 = vmatprep.subr.bf16.mxu0 0
    %121 = vmatpush1.bf16.msra.mxu0 0
    %122 = vmatprep.subr.bf16.mxu0 0
    %123 = vmatpush1.bf16.msra.mxu0 0
    %124 = vmatprep.mubr.bf16.mxu0 0
    %125 = vmatmul.mubr.bf16.gmra.mrb[0].mxu0 %v81
    %v126 = vpop.f32.mrb[0].mxu0
    %v127 = vadd.f32 %v45, %v126
    %v128 = vpop.f32.mrb[0].mxu0
    %v129 = vpop.f32.mrb[0].mxu0
    %v130 = vadd.f32 %v45, %v129
    %v131 = vpop.f32.mrb[0].mxu0
    %132 = vmatprep.mubr.bf16.mxu0 0
    %133 = vmatmul.mubr.bf16.gmra.mrb[0].mxu0 %v84
    %v134 = vpop.f32.mrb[0].mxu0
    %v135 = vadd.f32 %v45, %v134
    %v136 = vpop.f32.mrb[0].mxu0
    %v137 = vpop.f32.mrb[0].mxu0
    %v138 = vadd.f32 %v45, %v137
    %v139 = vpop.f32.mrb[0].mxu0
    %140 = vmatprep.mubr.bf16.mxu0 0
    %141 = vmatmul.mubr.bf16.gmra.mrb[0].mxu0 %v87
    %v142 = vpop.f32.mrb[0].mxu0
    %v143 = vadd.f32 %v45, %v142
    %v144 = vpop.f32.mrb[0].mxu0
    %v145 = vpop.f32.mrb[0].mxu0
    %v146 = vadd.f32 %v45, %v145
    %v147 = vpop.f32.mrb[0].mxu0
    %148 = vmatprep.mubr.bf16.mxu0 0
    %149 = vmatmul.mubr.bf16.gmra.mrb[0].mxu0 %v90
    %v150 = vpop.f32.mrb[0].mxu0
    %v151 = vadd.f32 %v45, %v150
    %v152 = vpop.f32.mrb[0].mxu0
    %v153 = vpop.f32.mrb[0].mxu0
    %v154 = vadd.f32 %v45, %v153
    %v155 = vpop.f32.mrb[0].mxu0
    %156 = vdwg.mxu0
    %vm157 = vcmask 64512
    %v158 = vsel %vm157, %v127, 0.0
    %159 = vadd.xlane.f32.xlu0 %v158
    %v160 = vpop.xlane.xlu0 %159
    %v161 = vsel %vm157, %v130, 0.0
    %162 = vadd.xlane.f32.xlu0 %v161
    %v163 = vpop.xlane.xlu0 %162
    %v164 = vsel %vm157, %v135, 0.0
    %165 = vadd.xlane.f32.xlu0 %v164
    %v166 = vpop.xlane.xlu0 %165
    %v167 = vsel %vm157, %v138, 0.0
    %168 = vadd.xlane.f32.xlu0 %v167
    %v169 = vpop.xlane.xlu0 %168
    %v170 = vsel %vm157, %v143, 0.0
    %171 = vadd.xlane.f32.xlu0 %v170
    %v172 = vpop.xlane.xlu0 %171
    %v173 = vsel %vm157, %v146, 0.0
    %174 = vadd.xlane.f32.xlu0 %v173
    %v175 = vpop.xlane.xlu0 %174
    %v176 = vsel %vm157, %v151, 0.0
    %177 = vadd.xlane.f32.xlu0 %v176
    %v178 = vpop.xlane.xlu0 %177
    %v179 = vsel %vm157, %v154, 0.0
    %180 = vadd.xlane.f32.xlu0 %v179
    %v181 = vpop.xlane.xlu0 %180
    %v182 = vrcp.pop 8.0
    %v183 = vmul.f32 %v160, %v182
    %v184 = vmul.f32 %v163, %v182
    %v185 = vmul.f32 %v166, %v182
    %v186 = vmul.f32 %v169, %v182
    %v187 = vmul.f32 %v172, %v182
    %v188 = vmul.f32 %v175, %v182
    %v189 = vmul.f32 %v178, %v182
    %v190 = vmul.f32 %v181, %v182
    %v191 = vsub.f32 %v127, %v183
    %v192 = vsub.f32 %v130, %v184
    %v193 = vsub.f32 %v135, %v185
    %v194 = vsub.f32 %v138, %v186
    %v195 = vsub.f32 %v143, %v187
    %v196 = vsub.f32 %v146, %v188
    %v197 = vsub.f32 %v151, %v189
    %v198 = vsub.f32 %v154, %v190
    %v199 = vmul.f32 %v191, %v191
    %v200 = vmul.f32 %v192, %v192
    %v201 = vmul.f32 %v193, %v193
    %v202 = vmul.f32 %v194, %v194
    %v203 = vmul.f32 %v195, %v195
    %v204 = vmul.f32 %v196, %v196
    %v205 = vmul.f32 %v197, %v197
    %v206 = vmul.f32 %v198, %v198
    %v207 = vsel %vm157, %v199, 0.0
    %208 = vadd.xlane.f32.xlu0 %v207
    %v209 = vpop.xlane.xlu0 %208
    %v210 = vsel %vm157, %v200, 0.0
    %211 = vadd.xlane.f32.xlu0 %v210
    %v212 = vpop.xlane.xlu0 %211
    %v213 = vsel %vm157, %v201, 0.0
    %214 = vadd.xlane.f32.xlu0 %v213
    %v215 = vpop.xlane.xlu0 %214
    %v216 = vsel %vm157, %v202, 0.0
    %217 = vadd.xlane.f32.xlu0 %v216
    %v218 = vpop.xlane.xlu0 %217
    %v219 = vsel %vm157, %v203, 0.0
    %220 = vadd.xlane.f32.xlu0 %v219
    %v221 = vpop.xlane.xlu0 %220
    %v222 = vsel %vm157, %v204, 0.0
    %223 = vadd.xlane.f32.xlu0 %v222
    %v224 = vpop.xlane.xlu0 %223
    %v225 = vsel %vm157, %v205, 0.0
    %226 = vadd.xlane.f32.xlu0 %v225
    %v227 = vpop.xlane.xlu0 %226
    %v228 = vsel %vm157, %v206, 0.0
    %229 = vadd.xlane.f32.xlu0 %v228
    %v230 = vpop.xlane.xlu0 %229
    %v231 = vmul.f32 %v209, %v182
    %v232 = vmul.f32 %v212, %v182
    %v233 = vmul.f32 %v215, %v182
    %v234 = vmul.f32 %v218, %v182
    %v235 = vmul.f32 %v221, %v182
    %v236 = vmul.f32 %v224, %v182
    %v237 = vmul.f32 %v227, %v182
    %v238 = vmul.f32 %v230, %v182
    %v239 = vadd.f32 %v231, 1e-06
    %v240 = vadd.f32 %v232, 1e-06
    %v241 = vadd.f32 %v233, 1e-06
    %v242 = vadd.f32 %v234, 1e-06
    %v243 = vadd.f32 %v235, 1e-06
    %v244 = vadd.f32 %v236, 1e-06
    %v245 = vadd.f32 %v237, 1e-06
    %v246 = vadd.f32 %v238, 1e-06
    %v247 = vrsqrt.pop %v239
    %v248 = vrsqrt.pop %v240
    %v249 = vrsqrt.pop %v241
    %v250 = vrsqrt.pop %v242
    %v251 = vrsqrt.pop %v243
    %v252 = vrsqrt.pop %v244
    %v253 = vrsqrt.pop %v245
    %v254 = vrsqrt.pop %v246
    %v255 = vmul.f32 %v191, %v247
    %v256 = vmul.f32 %v192, %v248
    %v257 = vmul.f32 %v193, %v249
    %v258 = vmul.f32 %v194, %v250
    %v259 = vmul.f32 %v195, %v251
    %v260 = vmul.f32 %v196, %v252
    %v261 = vmul.f32 %v197, %v253
    %v262 = vmul.f32 %v198, %v254
    %v263 = vld [vmem:[%s3] sm:$0x1]
    %v265 = vlaneseq
    %v266 = vshrl.u32 %v265, 7
    %v267 = vsub.s32 0, %v266
    %v268 = vrot.slane %v263, %v267
    %v270 = vmul.f32 %v255, %v268
    %v271 = vmul.f32 %v256, %v268
    %v272 = vmul.f32 %v257, %v268
    %v273 = vmul.f32 %v258, %v268
    %v274 = vmul.f32 %v259, %v268
    %v275 = vmul.f32 %v260, %v268
    %v276 = vmul.f32 %v261, %v268
    %v277 = vmul.f32 %v262, %v268
    %v278 = vld [vmem:[%s4] sm:$0x1]
    %v280 = vlaneseq
    %v281 = vshrl.u32 %v280, 7
    %v282 = vsub.s32 0, %v281
    %v283 = vrot.slane %v278, %v282
    %v285 = vadd.f32 %v270, %v283
    %v286 = vadd.f32 %v271, %v283
    %v287 = vadd.f32 %v272, %v283
    %v288 = vadd.f32 %v273, %v283
    %v289 = vadd.f32 %v274, %v283
    %v290 = vadd.f32 %v275, %v283
    %v291 = vadd.f32 %v276, %v283
    %v292 = vadd.f32 %v277, %v283
    %v293 = vmul.f32 %v285, 0.5
    %v294 = vmul.f32 %v286, 0.5
    %v295 = vmul.f32 %v287, 0.5
    %v296 = vmul.f32 %v288, 0.5
    %v297 = vmul.f32 %v289, 0.5
    %v298 = vmul.f32 %v290, 0.5
    %v299 = vmul.f32 %v291, 0.5
    %v300 = vmul.f32 %v292, 0.5
    %v301 = vmul.f32 %v285, 0.70710677
    %v302 = vmul.f32 %v286, 0.70710677
    %v303 = vmul.f32 %v287, 0.70710677
    %v304 = vmul.f32 %v288, 0.70710677
    %v305 = vmul.f32 %v289, 0.70710677
    %v306 = vmul.f32 %v290, 0.70710677
    %v307 = vmul.f32 %v291, 0.70710677
    %v308 = vmul.f32 %v292, 0.70710677
    %v309 = verf.f32.pop %v301
    %v310 = verf.f32.pop %v302
    %v311 = verf.f32.pop %v303
    %v312 = verf.f32.pop %v304
    %v313 = verf.f32.pop %v305
    %v314 = verf.f32.pop %v306
    %v315 = verf.f32.pop %v307
    %v316 = verf.f32.pop %v308
    %v317 = vadd.f32 %v309, 1.0
    %v318 = vadd.f32 %v310, 1.0
    %v319 = vadd.f32 %v311, 1.0
    %v320 = vadd.f32 %v312, 1.0
    %v321 = vadd.f32 %v313, 1.0
    %v322 = vadd.f32 %v314, 1.0
    %v323 = vadd.f32 %v315, 1.0
    %v324 = vadd.f32 %v316, 1.0
    %v325 = vmul.f32 %v293, %v317
    %v326 = vmul.f32 %v294, %v318
    %v327 = vmul.f32 %v295, %v319
    %v328 = vmul.f32 %v296, %v320
    %v329 = vmul.f32 %v297, %v321
    %v330 = vmul.f32 %v298, %v322
    %v331 = vmul.f32 %v299, %v323
    %v332 = vmul.f32 %v300, %v324
    %v333 = vpack.c.bf16 %v326, %v325
    %v334 = vpack.c.bf16 %v328, %v327
    %v335 = vpack.c.bf16 %v330, %v329
    %v336 = vpack.c.bf16 %v332, %v331
    %v337 = vld [vmem:[%s5] sm:$0xf]
    %v338 = vld [vmem:[%s6] sm:$0x1]
    %v340 = vlaneseq
    %v341 = vshrl.u32 %v340, 7
    %v342 = vsub.s32 0, %v341
    %v343 = vrot.slane %v338, %v342
    %v346 = vsel %vm157, %v333, 0
    %v349 = vsel %vm157, %v334, 0
    %v352 = vsel %vm157, %v335, 0
    %v355 = vsel %vm157, %v336, 0
    %vm357 = vcmask 1043456
    %v359 = vsel %vm357, %v337, 0
    %361 = vmatprep.subr.bf16.mxu0 0
    %362 = vmatpush1.bf16.msra.mxu0 %v359
    %363 = vmatprep.subr.bf16.mxu0 0
    %364 = vmatpush1.bf16.msra.mxu0 0
    %365 = vmatprep.subr.bf16.mxu0 0
    %366 = vmatpush1.bf16.msra.mxu0 0
    %367 = vmatprep.subr.bf16.mxu0 0
    %368 = vmatpush1.bf16.msra.mxu0 0
    %369 = vmatprep.subr.bf16.mxu0 0
    %370 = vmatpush1.bf16.msra.mxu0 0
    %371 = vmatprep.subr.bf16.mxu0 0
    %372 = vmatpush1.bf16.msra.mxu0 0
    %373 = vmatprep.subr.bf16.mxu0 0
    %374 = vmatpush1.bf16.msra.mxu0 0
    %375 = vmatprep.subr.bf16.mxu0 0
    %376 = vmatpush1.bf16.msra.mxu0 0
    %377 = vmatprep.subr.bf16.mxu0 0
    %378 = vmatpush1.bf16.msra.mxu0 0
    %379 = vmatprep.subr.bf16.mxu0 0
    %380 = vmatpush1.bf16.msra.mxu0 0
    %381 = vmatprep.subr.bf16.mxu0 0
    %382 = vmatpush1.bf16.msra.mxu0 0
    %383 = vmatprep.subr.bf16.mxu0 0
    %384 = vmatpush1.bf16.msra.mxu0 0
    %385 = vmatprep.subr.bf16.mxu0 0
    %386 = vmatpush1.bf16.msra.mxu0 0
    %387 = vmatprep.subr.bf16.mxu0 0
    %388 = vmatpush1.bf16.msra.mxu0 0
    %389 = vmatprep.subr.bf16.mxu0 0
    %390 = vmatpush1.bf16.msra.mxu0 0
    %391 = vmatprep.subr.bf16.mxu0 0
    %392 = vmatpush1.bf16.msra.mxu0 0
    %393 = vmatprep.mubr.bf16.mxu0 0
    %394 = vmatmul.mubr.bf16.gmra.mrb[0].mxu0 %v346
    %v395 = vpop.f32.mrb[0].mxu0
    %v396 = vadd.f32 %v343, %v395
    %v397 = vpop.f32.mrb[0].mxu0
    %v398 = vpop.f32.mrb[0].mxu0
    %v399 = vadd.f32 %v343, %v398
    %v400 = vpop.f32.mrb[0].mxu0
    %401 = vmatprep.mubr.bf16.mxu0 0
    %402 = vmatmul.mubr.bf16.gmra.mrb[0].mxu0 %v349
    %v403 = vpop.f32.mrb[0].mxu0
    %v404 = vadd.f32 %v343, %v403
    %v405 = vpop.f32.mrb[0].mxu0
    %v406 = vpop.f32.mrb[0].mxu0
    %v407 = vadd.f32 %v343, %v406
    %v408 = vpop.f32.mrb[0].mxu0
    %409 = vmatprep.mubr.bf16.mxu0 0
    %410 = vmatmul.mubr.bf16.gmra.mrb[0].mxu0 %v352
    %v411 = vpop.f32.mrb[0].mxu0
    %v412 = vadd.f32 %v343, %v411
    %v413 = vpop.f32.mrb[0].mxu0
    %v414 = vpop.f32.mrb[0].mxu0
    %v415 = vadd.f32 %v343, %v414
    %v416 = vpop.f32.mrb[0].mxu0
    %417 = vmatprep.mubr.bf16.mxu0 0
    %418 = vmatmul.mubr.bf16.gmra.mrb[0].mxu0 %v355
    %v419 = vpop.f32.mrb[0].mxu0
    %v420 = vadd.f32 %v343, %v419
    %v421 = vpop.f32.mrb[0].mxu0
    %v422 = vpop.f32.mrb[0].mxu0
    %v423 = vadd.f32 %v343, %v422
    %v424 = vpop.f32.mrb[0].mxu0
    %425 = vdwg.mxu0
    %s426 = scalar_lea.vmem %s5, 4
    %v427 = vld [vmem:[%s426] sm:$0xf]
    %v429 = vsel %vm357, %v427, 0
    %431 = vmatprep.subr.bf16.mxu0 0
    %432 = vmatpush1.bf16.msra.mxu0 %v429
    %433 = vmatprep.subr.bf16.mxu0 0
    %434 = vmatpush1.bf16.msra.mxu0 0
    %435 = vmatprep.subr.bf16.mxu0 0
    %436 = vmatpush1.bf16.msra.mxu0 0
    %437 = vmatprep.subr.bf16.mxu0 0
    %438 = vmatpush1.bf16.msra.mxu0 0
    %439 = vmatprep.subr.bf16.mxu0 0
    %440 = vmatpush1.bf16.msra.mxu0 0
    %441 = vmatprep.subr.bf16.mxu0 0
    %442 = vmatpush1.bf16.msra.mxu0 0
    %443 = vmatprep.subr.bf16.mxu0 0
    %444 = vmatpush1.bf16.msra.mxu0 0
    %445 = vmatprep.subr.bf16.mxu0 0
    %446 = vmatpush1.bf16.msra.mxu0 0
    %447 = vmatprep.subr.bf16.mxu0 0
    %448 = vmatpush1.bf16.msra.mxu0 0
    %449 = vmatprep.subr.bf16.mxu0 0
    %450 = vmatpush1.bf16.msra.mxu0 0
    %451 = vmatprep.subr.bf16.mxu0 0
    %452 = vmatpush1.bf16.msra.mxu0 0
    %453 = vmatprep.subr.bf16.mxu0 0
    %454 = vmatpush1.bf16.msra.mxu0 0
    %455 = vmatprep.subr.bf16.mxu0 0
    %456 = vmatpush1.bf16.msra.mxu0 0
    %457 = vmatprep.subr.bf16.mxu0 0
    %458 = vmatpush1.bf16.msra.mxu0 0
    %459 = vmatprep.subr.bf16.mxu0 0
    %460 = vmatpush1.bf16.msra.mxu0 0
    %461 = vmatprep.subr.bf16.mxu0 0
    %462 = vmatpush1.bf16.msra.mxu0 0
    %463 = vmatprep.mubr.bf16.mxu0 0
    %464 = vmatmul.mubr.bf16.gmra.mrb[0].mxu0 %v346
    %v465 = vpop.f32.mrb[0].mxu0
    %v466 = vadd.f32 %v343, %v465
    %v467 = vpop.f32.mrb[0].mxu0
    %v468 = vpop.f32.mrb[0].mxu0
    %v469 = vadd.f32 %v343, %v468
    %v470 = vpop.f32.mrb[0].mxu0
    %471 = vmatprep.mubr.bf16.mxu0 0
    %472 = vmatmul.mubr.bf16.gmra.mrb[0].mxu0 %v349
    %v473 = vpop.f32.mrb[0].mxu0
    %v474 = vadd.f32 %v343, %v473
    %v475 = vpop.f32.mrb[0].mxu0
    %v476 = vpop.f32.mrb[0].mxu0
    %v477 = vadd.f32 %v343, %v476
    %v478 = vpop.f32.mrb[0].mxu0
    %479 = vmatprep.mubr.bf16.mxu0 0
    %480 = vmatmul.mubr.bf16.gmra.mrb[0].mxu0 %v352
    %v481 = vpop.f32.mrb[0].mxu0
    %v482 = vadd.f32 %v343, %v481
    %v483 = vpop.f32.mrb[0].mxu0
    %v484 = vpop.f32.mrb[0].mxu0
    %v485 = vadd.f32 %v343, %v484
    %v486 = vpop.f32.mrb[0].mxu0
    %487 = vmatprep.mubr.bf16.mxu0 0
    %488 = vmatmul.mubr.bf16.gmra.mrb[0].mxu0 %v355
    %v489 = vpop.f32.mrb[0].mxu0
    %v490 = vadd.f32 %v343, %v489
    %v491 = vpop.f32.mrb[0].mxu0
    %v492 = vpop.f32.mrb[0].mxu0
    %v493 = vadd.f32 %v343, %v492
    %v494 = vpop.f32.mrb[0].mxu0
    %495 = vdwg.mxu0
    %s496 = scalar_lea.vmem %s5, 8
    %v497 = vld [vmem:[%s496] sm:$0xf]
    %v499 = vsel %vm357, %v497, 0
    %501 = vmatprep.subr.bf16.mxu0 0
    %502 = vmatpush1.bf16.msra.mxu0 %v499
    %503 = vmatprep.subr.bf16.mxu0 0
    %504 = vmatpush1.bf16.msra.mxu0 0
    %505 = vmatprep.subr.bf16.mxu0 0
    %506 = vmatpush1.bf16.msra.mxu0 0
    %507 = vmatprep.subr.bf16.mxu0 0
    %508 = vmatpush1.bf16.msra.mxu0 0
    %509 = vmatprep.subr.bf16.mxu0 0
    %510 = vmatpush1.bf16.msra.mxu0 0
    %511 = vmatprep.subr.bf16.mxu0 0
    %512 = vmatpush1.bf16.msra.mxu0 0
    %513 = vmatprep.subr.bf16.mxu0 0
    %514 = vmatpush1.bf16.msra.mxu0 0
    %515 = vmatprep.subr.bf16.mxu0 0
    %516 = vmatpush1.bf16.msra.mxu0 0
    %517 = vmatprep.subr.bf16.mxu0 0
    %518 = vmatpush1.bf16.msra.mxu0 0
    %519 = vmatprep.subr.bf16.mxu0 0
    %520 = vmatpush1.bf16.msra.mxu0 0
    %521 = vmatprep.subr.bf16.mxu0 0
    %522 = vmatpush1.bf16.msra.mxu0 0
    %523 = vmatprep.subr.bf16.mxu0 0
    %524 = vmatpush1.bf16.msra.mxu0 0
    %525 = vmatprep.subr.bf16.mxu0 0
    %526 = vmatpush1.bf16.msra.mxu0 0
    %527 = vmatprep.subr.bf16.mxu0 0
    %528 = vmatpush1.bf16.msra.mxu0 0
    %529 = vmatprep.subr.bf16.mxu0 0
    %530 = vmatpush1.bf16.msra.mxu0 0
    %531 = vmatprep.subr.bf16.mxu0 0
    %532 = vmatpush1.bf16.msra.mxu0 0
    %533 = vmatprep.mubr.bf16.mxu0 0
    %534 = vmatmul.mubr.bf16.gmra.mrb[0].mxu0 %v346
    %v535 = vpop.f32.mrb[0].mxu0
    %v536 = vadd.f32 %v343, %v535
    %v537 = vpop.f32.mrb[0].mxu0
    %v538 = vpop.f32.mrb[0].mxu0
    %v539 = vadd.f32 %v343, %v538
    %v540 = vpop.f32.mrb[0].mxu0
    %541 = vmatprep.mubr.bf16.mxu0 0
    %542 = vmatmul.mubr.bf16.gmra.mrb[0].mxu0 %v349
    %v543 = vpop.f32.mrb[0].mxu0
    %v544 = vadd.f32 %v343, %v543
    %v545 = vpop.f32.mrb[0].mxu0
    %v546 = vpop.f32.mrb[0].mxu0
    %v547 = vadd.f32 %v343, %v546
    %v548 = vpop.f32.mrb[0].mxu0
    %549 = vmatprep.mubr.bf16.mxu0 0
    %550 = vmatmul.mubr.bf16.gmra.mrb[0].mxu0 %v352
    %v551 = vpop.f32.mrb[0].mxu0
    %v552 = vadd.f32 %v343, %v551
    %v553 = vpop.f32.mrb[0].mxu0
    %v554 = vpop.f32.mrb[0].mxu0
    %v555 = vadd.f32 %v343, %v554
    %v556 = vpop.f32.mrb[0].mxu0
    %557 = vmatprep.mubr.bf16.mxu0 0
    %558 = vmatmul.mubr.bf16.gmra.mrb[0].mxu0 %v355
    %v559 = vpop.f32.mrb[0].mxu0
    %v560 = vadd.f32 %v343, %v559
    %v561 = vpop.f32.mrb[0].mxu0
    %v562 = vpop.f32.mrb[0].mxu0
    %v563 = vadd.f32 %v343, %v562
    %v564 = vpop.f32.mrb[0].mxu0
    %565 = vdwg.mxu0
    %s566 = scalar_lea.vmem %s5, 12
    %v567 = vld [vmem:[%s566] sm:$0xf]
    %v569 = vsel %vm357, %v567, 0
    %571 = vmatprep.subr.bf16.mxu0 0
    %572 = vmatpush1.bf16.msra.mxu0 %v569
    %573 = vmatprep.subr.bf16.mxu0 0
    %574 = vmatpush1.bf16.msra.mxu0 0
    %575 = vmatprep.subr.bf16.mxu0 0
    %576 = vmatpush1.bf16.msra.mxu0 0
    %577 = vmatprep.subr.bf16.mxu0 0
    %578 = vmatpush1.bf16.msra.mxu0 0
    %579 = vmatprep.subr.bf16.mxu0 0
    %580 = vmatpush1.bf16.msra.mxu0 0
    %581 = vmatprep.subr.bf16.mxu0 0
    %582 = vmatpush1.bf16.msra.mxu0 0
    %583 = vmatprep.subr.bf16.mxu0 0
    %584 = vmatpush1.bf16.msra.mxu0 0
    %585 = vmatprep.subr.bf16.mxu0 0
    %586 = vmatpush1.bf16.msra.mxu0 0
    %587 = vmatprep.subr.bf16.mxu0 0
    %588 = vmatpush1.bf16.msra.mxu0 0
    %589 = vmatprep.subr.bf16.mxu0 0
    %590 = vmatpush1.bf16.msra.mxu0 0
    %591 = vmatprep.subr.bf16.mxu0 0
    %592 = vmatpush1.bf16.msra.mxu0 0
    %593 = vmatprep.subr.bf16.mxu0 0
    %594 = vmatpush1.bf16.msra.mxu0 0
    %595 = vmatprep.subr.bf16.mxu0 0
    %596 = vmatpush1.bf16.msra.mxu0 0
    %597 = vmatprep.subr.bf16.mxu0 0
    %598 = vmatpush1.bf16.msra.mxu0 0
    %599 = vmatprep.subr.bf16.mxu0 0
    %600 = vmatpush1.bf16.msra.mxu0 0
    %601 = vmatprep.subr.bf16.mxu0 0
    %602 = vmatpush1.bf16.msra.mxu0 0
    %603 = vmatprep.mubr.bf16.mxu0 0
    %604 = vmatmul.mubr.bf16.gmra.mrb[0].mxu0 %v346
    %v605 = vpop.f32.mrb[0].mxu0
    %v606 = vadd.f32 %v343, %v605
    %v607 = vpop.f32.mrb[0].mxu0
    %v608 = vpop.f32.mrb[0].mxu0
    %v609 = vadd.f32 %v343, %v608
    %v610 = vpop.f32.mrb[0].mxu0
    %611 = vmatprep.mubr.bf16.mxu0 0
    %612 = vmatmul.mubr.bf16.gmra.mrb[0].mxu0 %v349
    %v613 = vpop.f32.mrb[0].mxu0
    %v614 = vadd.f32 %v343, %v613
    %v615 = vpop.f32.mrb[0].mxu0
    %v616 = vpop.f32.mrb[0].mxu0
    %v617 = vadd.f32 %v343, %v616
    %v618 = vpop.f32.mrb[0].mxu0
    %619 = vmatprep.mubr.bf16.mxu0 0
    %620 = vmatmul.mubr.bf16.gmra.mrb[0].mxu0 %v352
    %v621 = vpop.f32.mrb[0].mxu0
    %v622 = vadd.f32 %v343, %v621
    %v623 = vpop.f32.mrb[0].mxu0
    %v624 = vpop.f32.mrb[0].mxu0
    %v625 = vadd.f32 %v343, %v624
    %v626 = vpop.f32.mrb[0].mxu0
    %627 = vmatprep.mubr.bf16.mxu0 0
    %628 = vmatmul.mubr.bf16.gmra.mrb[0].mxu0 %v355
    %v629 = vpop.f32.mrb[0].mxu0
    %v630 = vadd.f32 %v343, %v629
    %v631 = vpop.f32.mrb[0].mxu0
    %v632 = vpop.f32.mrb[0].mxu0
    %v633 = vadd.f32 %v343, %v632
    %v634 = vpop.f32.mrb[0].mxu0
    %635 = vdwg.mxu0
    %s636 = scalar_lea.vmem %s1, 16
    %v637 = vld [vmem:[%s636] sm:$0xf]
    %v638 = vld [vmem:[%s636 + $0x4] sm:$0xf]
    %v639 = vld [vmem:[%s636 + $0x8] sm:$0xf]
    %v640 = vld [vmem:[%s636 + $0xc] sm:$0xf]
    %v645 = vunpack.c.l.b16 %v637
    %v646 = vunpack.c.l.b16 %v638
    %v647 = vunpack.c.l.b16 %v639
    %v648 = vunpack.c.l.b16 %v640
    %v649 = vpack.c.b16 %v646, %v645
    %v650 = vpack.c.b16 %v648, %v647
    %653 = vmatprep.subr.bf16.mxu0 0
    %654 = vmatpush1.bf16.msra.mxu0 %v649
    %655 = vmatprep.subr.bf16.mxu0 0
    %656 = vmatpush1.bf16.msra.mxu0 %v650
    %657 = vmatprep.subr.bf16.mxu0 0
    %658 = vmatpush1.bf16.msra.mxu0 0
    %659 = vmatprep.subr.bf16.mxu0 0
    %660 = vmatpush1.bf16.msra.mxu0 0
    %661 = vmatprep.subr.bf16.mxu0 0
    %662 = vmatpush1.bf16.msra.mxu0 0
    %663 = vmatprep.subr.bf16.mxu0 0
    %664 = vmatpush1.bf16.msra.mxu0 0
    %665 = vmatprep.subr.bf16.mxu0 0
    %666 = vmatpush1.bf16.msra.mxu0 0
    %667 = vmatprep.subr.bf16.mxu0 0
    %668 = vmatpush1.bf16.msra.mxu0 0
    %669 = vmatprep.subr.bf16.mxu0 0
    %670 = vmatpush1.bf16.msra.mxu0 0
    %671 = vmatprep.subr.bf16.mxu0 0
    %672 = vmatpush1.bf16.msra.mxu0 0
    %673 = vmatprep.subr.bf16.mxu0 0
    %674 = vmatpush1.bf16.msra.mxu0 0
    %675 = vmatprep.subr.bf16.mxu0 0
    %676 = vmatpush1.bf16.msra.mxu0 0
    %677 = vmatprep.subr.bf16.mxu0 0
    %678 = vmatpush1.bf16.msra.mxu0 0
    %679 = vmatprep.subr.bf16.mxu0 0
    %680 = vmatpush1.bf16.msra.mxu0 0
    %681 = vmatprep.subr.bf16.mxu0 0
    %682 = vmatpush1.bf16.msra.mxu0 0
    %683 = vmatprep.subr.bf16.mxu0 0
    %684 = vmatpush1.bf16.msra.mxu0 0
    %685 = vmatprep.mubr.bf16.mxu0 0
    %686 = vmatmul.mubr.bf16.gmra.mrb[0].mxu0 %v81
    %v687 = vpop.f32.mrb[0].mxu0
    %v688 = vadd.f32 %v45, %v687
    %v689 = vpop.f32.mrb[0].mxu0
    %v690 = vpop.f32.mrb[0].mxu0
    %v691 = vadd.f32 %v45, %v690
    %v692 = vpop.f32.mrb[0].mxu0
    %693 = vmatprep.mubr.bf16.mxu0 0
    %694 = vmatmul.mubr.bf16.gmra.mrb[0].mxu0 %v84
    %v695 = vpop.f32.mrb[0].mxu0
    %v696 = vadd.f32 %v45, %v695
    %v697 = vpop.f32.mrb[0].mxu0
    %v698 = vpop.f32.mrb[0].mxu0
    %v699 = vadd.f32 %v45, %v698
    %v700 = vpop.f32.mrb[0].mxu0
    %701 = vmatprep.mubr.bf16.mxu0 0
    %702 = vmatmul.mubr.bf16.gmra.mrb[0].mxu0 %v87
    %v703 = vpop.f32.mrb[0].mxu0
    %v704 = vadd.f32 %v45, %v703
    %v705 = vpop.f32.mrb[0].mxu0
    %v706 = vpop.f32.mrb[0].mxu0
    %v707 = vadd.f32 %v45, %v706
    %v708 = vpop.f32.mrb[0].mxu0
    %709 = vmatprep.mubr.bf16.mxu0 0
    %710 = vmatmul.mubr.bf16.gmra.mrb[0].mxu0 %v90
    %v711 = vpop.f32.mrb[0].mxu0
    %v712 = vadd.f32 %v45, %v711
    %v713 = vpop.f32.mrb[0].mxu0
    %v714 = vpop.f32.mrb[0].mxu0
    %v715 = vadd.f32 %v45, %v714
    %v716 = vpop.f32.mrb[0].mxu0
    %717 = vdwg.mxu0
    %v718 = vsel %vm157, %v688, 0.0
    %719 = vadd.xlane.f32.xlu0 %v718
    %v720 = vpop.xlane.xlu0 %719
    %v721 = vsel %vm157, %v691, 0.0
    %722 = vadd.xlane.f32.xlu0 %v721
    %v723 = vpop.xlane.xlu0 %722
    %v724 = vsel %vm157, %v696, 0.0
    %725 = vadd.xlane.f32.xlu0 %v724
    %v726 = vpop.xlane.xlu0 %725
    %v727 = vsel %vm157, %v699, 0.0
    %728 = vadd.xlane.f32.xlu0 %v727
    %v729 = vpop.xlane.xlu0 %728
    %v730 = vsel %vm157, %v704, 0.0
    %731 = vadd.xlane.f32.xlu0 %v730
    %v732 = vpop.xlane.xlu0 %731
    %v733 = vsel %vm157, %v707, 0.0
    %734 = vadd.xlane.f32.xlu0 %v733
    %v735 = vpop.xlane.xlu0 %734
    %v736 = vsel %vm157, %v712, 0.0
    %737 = vadd.xlane.f32.xlu0 %v736
    %v738 = vpop.xlane.xlu0 %737
    %v739 = vsel %vm157, %v715, 0.0
    %740 = vadd.xlane.f32.xlu0 %v739
    %v741 = vpop.xlane.xlu0 %740
    %v742 = vmul.f32 %v720, %v182
    %v743 = vmul.f32 %v723, %v182
    %v744 = vmul.f32 %v726, %v182
    %v745 = vmul.f32 %v729, %v182
    %v746 = vmul.f32 %v732, %v182
    %v747 = vmul.f32 %v735, %v182
    %v748 = vmul.f32 %v738, %v182
    %v749 = vmul.f32 %v741, %v182
    %v750 = vsub.f32 %v688, %v742
    %v751 = vsub.f32 %v691, %v743
    %v752 = vsub.f32 %v696, %v744
    %v753 = vsub.f32 %v699, %v745
    %v754 = vsub.f32 %v704, %v746
    %v755 = vsub.f32 %v707, %v747
    %v756 = vsub.f32 %v712, %v748
    %v757 = vsub.f32 %v715, %v749
    %v758 = vmul.f32 %v750, %v750
    %v759 = vmul.f32 %v751, %v751
    %v760 = vmul.f32 %v752, %v752
    %v761 = vmul.f32 %v753, %v753
    %v762 = vmul.f32 %v754, %v754
    %v763 = vmul.f32 %v755, %v755
    %v764 = vmul.f32 %v756, %v756
    %v765 = vmul.f32 %v757, %v757
    %v766 = vsel %vm157, %v758, 0.0
    %767 = vadd.xlane.f32.xlu0 %v766
    %v768 = vpop.xlane.xlu0 %767
    %v769 = vsel %vm157, %v759, 0.0
    %770 = vadd.xlane.f32.xlu0 %v769
    %v771 = vpop.xlane.xlu0 %770
    %v772 = vsel %vm157, %v760, 0.0
    %773 = vadd.xlane.f32.xlu0 %v772
    %v774 = vpop.xlane.xlu0 %773
    %v775 = vsel %vm157, %v761, 0.0
    %776 = vadd.xlane.f32.xlu0 %v775
    %v777 = vpop.xlane.xlu0 %776
    %v778 = vsel %vm157, %v762, 0.0
    %779 = vadd.xlane.f32.xlu0 %v778
    %v780 = vpop.xlane.xlu0 %779
    %v781 = vsel %vm157, %v763, 0.0
    %782 = vadd.xlane.f32.xlu0 %v781
    %v783 = vpop.xlane.xlu0 %782
    %v784 = vsel %vm157, %v764, 0.0
    %785 = vadd.xlane.f32.xlu0 %v784
    %v786 = vpop.xlane.xlu0 %785
    %v787 = vsel %vm157, %v765, 0.0
    %788 = vadd.xlane.f32.xlu0 %v787
    %v789 = vpop.xlane.xlu0 %788
    %v790 = vmul.f32 %v768, %v182
    %v791 = vmul.f32 %v771, %v182
    %v792 = vmul.f32 %v774, %v182
    %v793 = vmul.f32 %v777, %v182
    %v794 = vmul.f32 %v780, %v182
    %v795 = vmul.f32 %v783, %v182
    %v796 = vmul.f32 %v786, %v182
    %v797 = vmul.f32 %v789, %v182
    %v798 = vadd.f32 %v790, 1e-06
    %v799 = vadd.f32 %v791, 1e-06
    %v800 = vadd.f32 %v792, 1e-06
    %v801 = vadd.f32 %v793, 1e-06
    %v802 = vadd.f32 %v794, 1e-06
    %v803 = vadd.f32 %v795, 1e-06
    %v804 = vadd.f32 %v796, 1e-06
    %v805 = vadd.f32 %v797, 1e-06
    %v806 = vrsqrt.pop %v798
    %v807 = vrsqrt.pop %v799
    %v808 = vrsqrt.pop %v800
    %v809 = vrsqrt.pop %v801
    %v810 = vrsqrt.pop %v802
    %v811 = vrsqrt.pop %v803
    %v812 = vrsqrt.pop %v804
    %v813 = vrsqrt.pop %v805
    %v814 = vmul.f32 %v750, %v806
    %v815 = vmul.f32 %v751, %v807
    %v816 = vmul.f32 %v752, %v808
    %v817 = vmul.f32 %v753, %v809
    %v818 = vmul.f32 %v754, %v810
    %v819 = vmul.f32 %v755, %v811
    %v820 = vmul.f32 %v756, %v812
    %v821 = vmul.f32 %v757, %v813
    %v822 = vmul.f32 %v814, %v268
    %v823 = vmul.f32 %v815, %v268
    %v824 = vmul.f32 %v816, %v268
    %v825 = vmul.f32 %v817, %v268
    %v826 = vmul.f32 %v818, %v268
    %v827 = vmul.f32 %v819, %v268
    %v828 = vmul.f32 %v820, %v268
    %v829 = vmul.f32 %v821, %v268
    %v830 = vadd.f32 %v822, %v283
    %v831 = vadd.f32 %v823, %v283
    %v832 = vadd.f32 %v824, %v283
    %v833 = vadd.f32 %v825, %v283
    %v834 = vadd.f32 %v826, %v283
    %v835 = vadd.f32 %v827, %v283
    %v836 = vadd.f32 %v828, %v283
    %v837 = vadd.f32 %v829, %v283
    %v838 = vmul.f32 %v830, 0.5
    %v839 = vmul.f32 %v831, 0.5
    %v840 = vmul.f32 %v832, 0.5
    %v841 = vmul.f32 %v833, 0.5
    %v842 = vmul.f32 %v834, 0.5
    %v843 = vmul.f32 %v835, 0.5
    %v844 = vmul.f32 %v836, 0.5
    %v845 = vmul.f32 %v837, 0.5
    %v846 = vmul.f32 %v830, 0.70710677
    %v847 = vmul.f32 %v831, 0.70710677
    %v848 = vmul.f32 %v832, 0.70710677
    %v849 = vmul.f32 %v833, 0.70710677
    %v850 = vmul.f32 %v834, 0.70710677
    %v851 = vmul.f32 %v835, 0.70710677
    %v852 = vmul.f32 %v836, 0.70710677
    %v853 = vmul.f32 %v837, 0.70710677
    %v854 = verf.f32.pop %v846
    %v855 = verf.f32.pop %v847
    %v856 = verf.f32.pop %v848
    %v857 = verf.f32.pop %v849
    %v858 = verf.f32.pop %v850
    %v859 = verf.f32.pop %v851
    %v860 = verf.f32.pop %v852
    %v861 = verf.f32.pop %v853
    %v862 = vadd.f32 %v854, 1.0
    %v863 = vadd.f32 %v855, 1.0
    %v864 = vadd.f32 %v856, 1.0
    %v865 = vadd.f32 %v857, 1.0
    %v866 = vadd.f32 %v858, 1.0
    %v867 = vadd.f32 %v859, 1.0
    %v868 = vadd.f32 %v860, 1.0
    %v869 = vadd.f32 %v861, 1.0
    %v870 = vmul.f32 %v838, %v862
    %v871 = vmul.f32 %v839, %v863
    %v872 = vmul.f32 %v840, %v864
    %v873 = vmul.f32 %v841, %v865
    %v874 = vmul.f32 %v842, %v866
    %v875 = vmul.f32 %v843, %v867
    %v876 = vmul.f32 %v844, %v868
    %v877 = vmul.f32 %v845, %v869
    %v878 = vpack.c.bf16 %v871, %v870
    %v879 = vpack.c.bf16 %v873, %v872
    %v880 = vpack.c.bf16 %v875, %v874
    %v881 = vpack.c.bf16 %v877, %v876
    %v883 = vsel %vm157, %v878, 0
    %v886 = vsel %vm157, %v879, 0
    %v889 = vsel %vm157, %v880, 0
    %v892 = vsel %vm157, %v881, 0
    %894 = vmatprep.subr.bf16.mxu0 0
    %895 = vmatpush1.bf16.msra.mxu0 %v359
    %896 = vmatprep.subr.bf16.mxu0 0
    %897 = vmatpush1.bf16.msra.mxu0 0
    %898 = vmatprep.subr.bf16.mxu0 0
    %899 = vmatpush1.bf16.msra.mxu0 0
    %900 = vmatprep.subr.bf16.mxu0 0
    %901 = vmatpush1.bf16.msra.mxu0 0
    %902 = vmatprep.subr.bf16.mxu0 0
    %903 = vmatpush1.bf16.msra.mxu0 0
    %904 = vmatprep.subr.bf16.mxu0 0
    %905 = vmatpush1.bf16.msra.mxu0 0
    %906 = vmatprep.subr.bf16.mxu0 0
    %907 = vmatpush1.bf16.msra.mxu0 0
    %908 = vmatprep.subr.bf16.mxu0 0
    %909 = vmatpush1.bf16.msra.mxu0 0
    %910 = vmatprep.subr.bf16.mxu0 0
    %911 = vmatpush1.bf16.msra.mxu0 0
    %912 = vmatprep.subr.bf16.mxu0 0
    %913 = vmatpush1.bf16.msra.mxu0 0
    %914 = vmatprep.subr.bf16.mxu0 0
    %915 = vmatpush1.bf16.msra.mxu0 0
    %916 = vmatprep.subr.bf16.mxu0 0
    %917 = vmatpush1.bf16.msra.mxu0 0
    %918 = vmatprep.subr.bf16.mxu0 0
    %919 = vmatpush1.bf16.msra.mxu0 0
    %920 = vmatprep.subr.bf16.mxu0 0
    %921 = vmatpush1.bf16.msra.mxu0 0
    %922 = vmatprep.subr.bf16.mxu0 0
    %923 = vmatpush1.bf16.msra.mxu0 0
    %924 = vmatprep.subr.bf16.mxu0 0
    %925 = vmatpush1.bf16.msra.mxu0 0
    %926 = vmatprep.mubr.bf16.mxu0 0
    %927 = vmatmul.mubr.bf16.gmra.mrb[0].mxu0 %v883
    %v928 = vpop.f32.mrb[0].mxu0
    %v929 = vadd.f32 %v343, %v928
    %v930 = vpop.f32.mrb[0].mxu0
    %v931 = vpop.f32.mrb[0].mxu0
    %v932 = vadd.f32 %v343, %v931
    %v933 = vpop.f32.mrb[0].mxu0
    %934 = vmatprep.mubr.bf16.mxu0 0
    %935 = vmatmul.mubr.bf16.gmra.mrb[0].mxu0 %v886
    %v936 = vpop.f32.mrb[0].mxu0
    %v937 = vadd.f32 %v343, %v936
    %v938 = vpop.f32.mrb[0].mxu0
    %v939 = vpop.f32.mrb[0].mxu0
    %v940 = vadd.f32 %v343, %v939
    %v941 = vpop.f32.mrb[0].mxu0
    %942 = vmatprep.mubr.bf16.mxu0 0
    %943 = vmatmul.mubr.bf16.gmra.mrb[0].mxu0 %v889
    %v944 = vpop.f32.mrb[0].mxu0
    %v945 = vadd.f32 %v343, %v944
    %v946 = vpop.f32.mrb[0].mxu0
    %v947 = vpop.f32.mrb[0].mxu0
    %v948 = vadd.f32 %v343, %v947
    %v949 = vpop.f32.mrb[0].mxu0
    %950 = vmatprep.mubr.bf16.mxu0 0
    %951 = vmatmul.mubr.bf16.gmra.mrb[0].mxu0 %v892
    %v952 = vpop.f32.mrb[0].mxu0
    %v953 = vadd.f32 %v343, %v952
    %v954 = vpop.f32.mrb[0].mxu0
    %v955 = vpop.f32.mrb[0].mxu0
    %v956 = vadd.f32 %v343, %v955
    %v957 = vpop.f32.mrb[0].mxu0
    %958 = vdwg.mxu0
    %959 = vmatprep.subr.bf16.mxu0 0
    %960 = vmatpush1.bf16.msra.mxu0 %v429
    %961 = vmatprep.subr.bf16.mxu0 0
    %962 = vmatpush1.bf16.msra.mxu0 0
    %963 = vmatprep.subr.bf16.mxu0 0
    %964 = vmatpush1.bf16.msra.mxu0 0
    %965 = vmatprep.subr.bf16.mxu0 0
    %966 = vmatpush1.bf16.msra.mxu0 0
    %967 = vmatprep.subr.bf16.mxu0 0
    %968 = vmatpush1.bf16.msra.mxu0 0
    %969 = vmatprep.subr.bf16.mxu0 0
    %970 = vmatpush1.bf16.msra.mxu0 0
    %971 = vmatprep.subr.bf16.mxu0 0
    %972 = vmatpush1.bf16.msra.mxu0 0
    %973 = vmatprep.subr.bf16.mxu0 0
    %974 = vmatpush1.bf16.msra.mxu0 0
    %975 = vmatprep.subr.bf16.mxu0 0
    %976 = vmatpush1.bf16.msra.mxu0 0
    %977 = vmatprep.subr.bf16.mxu0 0
    %978 = vmatpush1.bf16.msra.mxu0 0
    %979 = vmatprep.subr.bf16.mxu0 0
    %980 = vmatpush1.bf16.msra.mxu0 0
    %981 = vmatprep.subr.bf16.mxu0 0
    %982 = vmatpush1.bf16.msra.mxu0 0
    %983 = vmatprep.subr.bf16.mxu0 0
    %984 = vmatpush1.bf16.msra.mxu0 0
    %985 = vmatprep.subr.bf16.mxu0 0
    %986 = vmatpush1.bf16.msra.mxu0 0
    %987 = vmatprep.subr.bf16.mxu0 0
    %988 = vmatpush1.bf16.msra.mxu0 0
    %989 = vmatprep.subr.bf16.mxu0 0
    %990 = vmatpush1.bf16.msra.mxu0 0
    %991 = vmatprep.mubr.bf16.mxu0 0
    %992 = vmatmul.mubr.bf16.gmra.mrb[0].mxu0 %v883
    %v993 = vpop.f32.mrb[0].mxu0
    %v994 = vadd.f32 %v343, %v993
    %v995 = vpop.f32.mrb[0].mxu0
    %v996 = vpop.f32.mrb[0].mxu0
    %v997 = vadd.f32 %v343, %v996
    %v998 = vpop.f32.mrb[0].mxu0
    %999 = vmatprep.mubr.bf16.mxu0 0
    %1000 = vmatmul.mubr.bf16.gmra.mrb[0].mxu0 %v886
    %v1001 = vpop.f32.mrb[0].mxu0
    %v1002 = vadd.f32 %v343, %v1001
    %v1003 = vpop.f32.mrb[0].mxu0
    %v1004 = vpop.f32.mrb[0].mxu0
    %v1005 = vadd.f32 %v343, %v1004
    %v1006 = vpop.f32.mrb[0].mxu0
    %1007 = vmatprep.mubr.bf16.mxu0 0
    %1008 = vmatmul.mubr.bf16.gmra.mrb[0].mxu0 %v889
    %v1009 = vpop.f32.mrb[0].mxu0
    %v1010 = vadd.f32 %v343, %v1009
    %v1011 = vpop.f32.mrb[0].mxu0
    %v1012 = vpop.f32.mrb[0].mxu0
    %v1013 = vadd.f32 %v343, %v1012
    %v1014 = vpop.f32.mrb[0].mxu0
    %1015 = vmatprep.mubr.bf16.mxu0 0
    %1016 = vmatmul.mubr.bf16.gmra.mrb[0].mxu0 %v892
    %v1017 = vpop.f32.mrb[0].mxu0
    %v1018 = vadd.f32 %v343, %v1017
    %v1019 = vpop.f32.mrb[0].mxu0
    %v1020 = vpop.f32.mrb[0].mxu0
    %v1021 = vadd.f32 %v343, %v1020
    %v1022 = vpop.f32.mrb[0].mxu0
    %1023 = vdwg.mxu0
    %1024 = vmatprep.subr.bf16.mxu0 0
    %1025 = vmatpush1.bf16.msra.mxu0 %v499
    %1026 = vmatprep.subr.bf16.mxu0 0
    %1027 = vmatpush1.bf16.msra.mxu0 0
    %1028 = vmatprep.subr.bf16.mxu0 0
    %1029 = vmatpush1.bf16.msra.mxu0 0
    %1030 = vmatprep.subr.bf16.mxu0 0
    %1031 = vmatpush1.bf16.msra.mxu0 0
    %1032 = vmatprep.subr.bf16.mxu0 0
    %1033 = vmatpush1.bf16.msra.mxu0 0
    %1034 = vmatprep.subr.bf16.mxu0 0
    %1035 = vmatpush1.bf16.msra.mxu0 0
    %1036 = vmatprep.subr.bf16.mxu0 0
    %1037 = vmatpush1.bf16.msra.mxu0 0
    %1038 = vmatprep.subr.bf16.mxu0 0
    %1039 = vmatpush1.bf16.msra.mxu0 0
    %1040 = vmatprep.subr.bf16.mxu0 0
    %1041 = vmatpush1.bf16.msra.mxu0 0
    %1042 = vmatprep.subr.bf16.mxu0 0
    %1043 = vmatpush1.bf16.msra.mxu0 0
    %1044 = vmatprep.subr.bf16.mxu0 0
    %1045 = vmatpush1.bf16.msra.mxu0 0
    %1046 = vmatprep.subr.bf16.mxu0 0
    %1047 = vmatpush1.bf16.msra.mxu0 0
    %1048 = vmatprep.subr.bf16.mxu0 0
    %1049 = vmatpush1.bf16.msra.mxu0 0
    %1050 = vmatprep.subr.bf16.mxu0 0
    %1051 = vmatpush1.bf16.msra.mxu0 0
    %1052 = vmatprep.subr.bf16.mxu0 0
    %1053 = vmatpush1.bf16.msra.mxu0 0
    %1054 = vmatprep.subr.bf16.mxu0 0
    %1055 = vmatpush1.bf16.msra.mxu0 0
    %1056 = vmatprep.mubr.bf16.mxu0 0
    %1057 = vmatmul.mubr.bf16.gmra.mrb[0].mxu0 %v883
    %v1058 = vpop.f32.mrb[0].mxu0
    %v1059 = vadd.f32 %v343, %v1058
    %v1060 = vpop.f32.mrb[0].mxu0
    %v1061 = vpop.f32.mrb[0].mxu0
    %v1062 = vadd.f32 %v343, %v1061
    %v1063 = vpop.f32.mrb[0].mxu0
    %1064 = vmatprep.mubr.bf16.mxu0 0
    %1065 = vmatmul.mubr.bf16.gmra.mrb[0].mxu0 %v886
    %v1066 = vpop.f32.mrb[0].mxu0
    %v1067 = vadd.f32 %v343, %v1066
    %v1068 = vpop.f32.mrb[0].mxu0
    %v1069 = vpop.f32.mrb[0].mxu0
    %v1070 = vadd.f32 %v343, %v1069
    %v1071 = vpop.f32.mrb[0].mxu0
    %1072 = vmatprep.mubr.bf16.mxu0 0
    %1073 = vmatmul.mubr.bf16.gmra.mrb[0].mxu0 %v889
    %v1074 = vpop.f32.mrb[0].mxu0
    %v1075 = vadd.f32 %v343, %v1074
    %v1076 = vpop.f32.mrb[0].mxu0
    %v1077 = vpop.f32.mrb[0].mxu0
    %v1078 = vadd.f32 %v343, %v1077
    %v1079 = vpop.f32.mrb[0].mxu0
    %1080 = vmatprep.mubr.bf16.mxu0 0
    %1081 = vmatmul.mubr.bf16.gmra.mrb[0].mxu0 %v892
    %v1082 = vpop.f32.mrb[0].mxu0
    %v1083 = vadd.f32 %v343, %v1082
    %v1084 = vpop.f32.mrb[0].mxu0
    %v1085 = vpop.f32.mrb[0].mxu0
    %v1086 = vadd.f32 %v343, %v1085
    %v1087 = vpop.f32.mrb[0].mxu0
    %1088 = vdwg.mxu0
    %1089 = vmatprep.subr.bf16.mxu0 0
    %1090 = vmatpush1.bf16.msra.mxu0 %v569
    %1091 = vmatprep.subr.bf16.mxu0 0
    %1092 = vmatpush1.bf16.msra.mxu0 0
    %1093 = vmatprep.subr.bf16.mxu0 0
    %1094 = vmatpush1.bf16.msra.mxu0 0
    %1095 = vmatprep.subr.bf16.mxu0 0
    %1096 = vmatpush1.bf16.msra.mxu0 0
    %1097 = vmatprep.subr.bf16.mxu0 0
    %1098 = vmatpush1.bf16.msra.mxu0 0
    %1099 = vmatprep.subr.bf16.mxu0 0
    %1100 = vmatpush1.bf16.msra.mxu0 0
    %1101 = vmatprep.subr.bf16.mxu0 0
    %1102 = vmatpush1.bf16.msra.mxu0 0
    %1103 = vmatprep.subr.bf16.mxu0 0
    %1104 = vmatpush1.bf16.msra.mxu0 0
    %1105 = vmatprep.subr.bf16.mxu0 0
    %1106 = vmatpush1.bf16.msra.mxu0 0
    %1107 = vmatprep.subr.bf16.mxu0 0
    %1108 = vmatpush1.bf16.msra.mxu0 0
    %1109 = vmatprep.subr.bf16.mxu0 0
    %1110 = vmatpush1.bf16.msra.mxu0 0
    %1111 = vmatprep.subr.bf16.mxu0 0
    %1112 = vmatpush1.bf16.msra.mxu0 0
    %1113 = vmatprep.subr.bf16.mxu0 0
    %1114 = vmatpush1.bf16.msra.mxu0 0
    %1115 = vmatprep.subr.bf16.mxu0 0
    %1116 = vmatpush1.bf16.msra.mxu0 0
    %1117 = vmatprep.subr.bf16.mxu0 0
    %1118 = vmatpush1.bf16.msra.mxu0 0
    %1119 = vmatprep.subr.bf16.mxu0 0
    %1120 = vmatpush1.bf16.msra.mxu0 0
    %1121 = vmatprep.mubr.bf16.mxu0 0
    %1122 = vmatmul.mubr.bf16.gmra.mrb[0].mxu0 %v883
    %v1123 = vpop.f32.mrb[0].mxu0
    %v1124 = vadd.f32 %v343, %v1123
    %v1125 = vpop.f32.mrb[0].mxu0
    %v1126 = vpop.f32.mrb[0].mxu0
    %v1127 = vadd.f32 %v343, %v1126
    %v1128 = vpop.f32.mrb[0].mxu0
    %1129 = vmatprep.mubr.bf16.mxu0 0
    %1130 = vmatmul.mubr.bf16.gmra.mrb[0].mxu0 %v886
    %v1131 = vpop.f32.mrb[0].mxu0
    %v1132 = vadd.f32 %v343, %v1131
    %v1133 = vpop.f32.mrb[0].mxu0
    %v1134 = vpop.f32.mrb[0].mxu0
    %v1135 = vadd.f32 %v343, %v1134
    %v1136 = vpop.f32.mrb[0].mxu0
    %1137 = vmatprep.mubr.bf16.mxu0 0
    %1138 = vmatmul.mubr.bf16.gmra.mrb[0].mxu0 %v889
    %v1139 = vpop.f32.mrb[0].mxu0
    %v1140 = vadd.f32 %v343, %v1139
    %v1141 = vpop.f32.mrb[0].mxu0
    %v1142 = vpop.f32.mrb[0].mxu0
    %v1143 = vadd.f32 %v343, %v1142
    %v1144 = vpop.f32.mrb[0].mxu0
    %1145 = vmatprep.mubr.bf16.mxu0 0
    %1146 = vmatmul.mubr.bf16.gmra.mrb[0].mxu0 %v892
    %v1147 = vpop.f32.mrb[0].mxu0
    %v1148 = vadd.f32 %v343, %v1147
    %v1149 = vpop.f32.mrb[0].mxu0
    %v1150 = vpop.f32.mrb[0].mxu0
    %v1151 = vadd.f32 %v343, %v1150
    %v1152 = vpop.f32.mrb[0].mxu0
    %1153 = vdwg.mxu0
    %s1154 = scalar_lea.vmem %s1, 32
    %v1155 = vld [vmem:[%s1154] sm:$0xf]
    %v1156 = vld [vmem:[%s1154 + $0x4] sm:$0xf]
    %v1157 = vld [vmem:[%s1154 + $0x8] sm:$0xf]
    %v1158 = vld [vmem:[%s1154 + $0xc] sm:$0xf]
    %v1163 = vunpack.c.l.b16 %v1155
    %v1164 = vunpack.c.l.b16 %v1156
    %v1165 = vunpack.c.l.b16 %v1157
    %v1166 = vunpack.c.l.b16 %v1158
    %v1167 = vpack.c.b16 %v1164, %v1163
    %v1168 = vpack.c.b16 %v1166, %v1165
    %1171 = vmatprep.subr.bf16.mxu0 0
    %1172 = vmatpush1.bf16.msra.mxu0 %v1167
    %1173 = vmatprep.subr.bf16.mxu0 0
    %1174 = vmatpush1.bf16.msra.mxu0 %v1168
    %1175 = vmatprep.subr.bf16.mxu0 0
    %1176 = vmatpush1.bf16.msra.mxu0 0
    %1177 = vmatprep.subr.bf16.mxu0 0
    %1178 = vmatpush1.bf16.msra.mxu0 0
    %1179 = vmatprep.subr.bf16.mxu0 0
    %1180 = vmatpush1.bf16.msra.mxu0 0
    %1181 = vmatprep.subr.bf16.mxu0 0
    %1182 = vmatpush1.bf16.msra.mxu0 0
    %1183 = vmatprep.subr.bf16.mxu0 0
    %1184 = vmatpush1.bf16.msra.mxu0 0
    %1185 = vmatprep.subr.bf16.mxu0 0
    %1186 = vmatpush1.bf16.msra.mxu0 0
    %1187 = vmatprep.subr.bf16.mxu0 0
    %1188 = vmatpush1.bf16.msra.mxu0 0
    %1189 = vmatprep.subr.bf16.mxu0 0
    %1190 = vmatpush1.bf16.msra.mxu0 0
    %1191 = vmatprep.subr.bf16.mxu0 0
    %1192 = vmatpush1.bf16.msra.mxu0 0
    %1193 = vmatprep.subr.bf16.mxu0 0
    %1194 = vmatpush1.bf16.msra.mxu0 0
    %1195 = vmatprep.subr.bf16.mxu0 0
    %1196 = vmatpush1.bf16.msra.mxu0 0
    %1197 = vmatprep.subr.bf16.mxu0 0
    %1198 = vmatpush1.bf16.msra.mxu0 0
    %1199 = vmatprep.subr.bf16.mxu0 0
    %1200 = vmatpush1.bf16.msra.mxu0 0
    %1201 = vmatprep.subr.bf16.mxu0 0
    %1202 = vmatpush1.bf16.msra.mxu0 0
    %1203 = vmatprep.mubr.bf16.mxu0 0
    %1204 = vmatmul.mubr.bf16.gmra.mrb[0].mxu0 %v81
    %v1205 = vpop.f32.mrb[0].mxu0
    %v1206 = vadd.f32 %v45, %v1205
    %v1207 = vpop.f32.mrb[0].mxu0
    %v1208 = vpop.f32.mrb[0].mxu0
    %v1209 = vadd.f32 %v45, %v1208
    %v1210 = vpop.f32.mrb[0].mxu0
    %1211 = vmatprep.mubr.bf16.mxu0 0
    %1212 = vmatmul.mubr.bf16.gmra.mrb[0].mxu0 %v84
    %v1213 = vpop.f32.mrb[0].mxu0
    %v1214 = vadd.f32 %v45, %v1213
    %v1215 = vpop.f32.mrb[0].mxu0
    %v1216 = vpop.f32.mrb[0].mxu0
    %v1217 = vadd.f32 %v45, %v1216
    %v1218 = vpop.f32.mrb[0].mxu0
    %1219 = vmatprep.mubr.bf16.mxu0 0
    %1220 = vmatmul.mubr.bf16.gmra.mrb[0].mxu0 %v87
    %v1221 = vpop.f32.mrb[0].mxu0
    %v1222 = vadd.f32 %v45, %v1221
    %v1223 = vpop.f32.mrb[0].mxu0
    %v1224 = vpop.f32.mrb[0].mxu0
    %v1225 = vadd.f32 %v45, %v1224
    %v1226 = vpop.f32.mrb[0].mxu0
    %1227 = vmatprep.mubr.bf16.mxu0 0
    %1228 = vmatmul.mubr.bf16.gmra.mrb[0].mxu0 %v90
    %v1229 = vpop.f32.mrb[0].mxu0
    %v1230 = vadd.f32 %v45, %v1229
    %v1231 = vpop.f32.mrb[0].mxu0
    %v1232 = vpop.f32.mrb[0].mxu0
    %v1233 = vadd.f32 %v45, %v1232
    %v1234 = vpop.f32.mrb[0].mxu0
    %1235 = vdwg.mxu0
    %v1236 = vsel %vm157, %v1206, 0.0
    %1237 = vadd.xlane.f32.xlu0 %v1236
    %v1238 = vpop.xlane.xlu0 %1237
    %v1239 = vsel %vm157, %v1209, 0.0
    %1240 = vadd.xlane.f32.xlu0 %v1239
    %v1241 = vpop.xlane.xlu0 %1240
    %v1242 = vsel %vm157, %v1214, 0.0
    %1243 = vadd.xlane.f32.xlu0 %v1242
    %v1244 = vpop.xlane.xlu0 %1243
    %v1245 = vsel %vm157, %v1217, 0.0
    %1246 = vadd.xlane.f32.xlu0 %v1245
    %v1247 = vpop.xlane.xlu0 %1246
    %v1248 = vsel %vm157, %v1222, 0.0
    %1249 = vadd.xlane.f32.xlu0 %v1248
    %v1250 = vpop.xlane.xlu0 %1249
    %v1251 = vsel %vm157, %v1225, 0.0
    %1252 = vadd.xlane.f32.xlu0 %v1251
    %v1253 = vpop.xlane.xlu0 %1252
    %v1254 = vsel %vm157, %v1230, 0.0
    %1255 = vadd.xlane.f32.xlu0 %v1254
    %v1256 = vpop.xlane.xlu0 %1255
    %v1257 = vsel %vm157, %v1233, 0.0
    %1258 = vadd.xlane.f32.xlu0 %v1257
    %v1259 = vpop.xlane.xlu0 %1258
    %v1260 = vmul.f32 %v1238, %v182
    %v1261 = vmul.f32 %v1241, %v182
    %v1262 = vmul.f32 %v1244, %v182
    %v1263 = vmul.f32 %v1247, %v182
    %v1264 = vmul.f32 %v1250, %v182
    %v1265 = vmul.f32 %v1253, %v182
    %v1266 = vmul.f32 %v1256, %v182
    %v1267 = vmul.f32 %v1259, %v182
    %v1268 = vsub.f32 %v1206, %v1260
    %v1269 = vsub.f32 %v1209, %v1261
    %v1270 = vsub.f32 %v1214, %v1262
    %v1271 = vsub.f32 %v1217, %v1263
    %v1272 = vsub.f32 %v1222, %v1264
    %v1273 = vsub.f32 %v1225, %v1265
    %v1274 = vsub.f32 %v1230, %v1266
    %v1275 = vsub.f32 %v1233, %v1267
    %v1276 = vmul.f32 %v1268, %v1268
    %v1277 = vmul.f32 %v1269, %v1269
    %v1278 = vmul.f32 %v1270, %v1270
    %v1279 = vmul.f32 %v1271, %v1271
    %v1280 = vmul.f32 %v1272, %v1272
    %v1281 = vmul.f32 %v1273, %v1273
    %v1282 = vmul.f32 %v1274, %v1274
    %v1283 = vmul.f32 %v1275, %v1275
    %v1284 = vsel %vm157, %v1276, 0.0
    %1285 = vadd.xlane.f32.xlu0 %v1284
    %v1286 = vpop.xlane.xlu0 %1285
    %v1287 = vsel %vm157, %v1277, 0.0
    %1288 = vadd.xlane.f32.xlu0 %v1287
    %v1289 = vpop.xlane.xlu0 %1288
    %v1290 = vsel %vm157, %v1278, 0.0
    %1291 = vadd.xlane.f32.xlu0 %v1290
    %v1292 = vpop.xlane.xlu0 %1291
    %v1293 = vsel %vm157, %v1279, 0.0
    %1294 = vadd.xlane.f32.xlu0 %v1293
    %v1295 = vpop.xlane.xlu0 %1294
    %v1296 = vsel %vm157, %v1280, 0.0
    %1297 = vadd.xlane.f32.xlu0 %v1296
    %v1298 = vpop.xlane.xlu0 %1297
    %v1299 = vsel %vm157, %v1281, 0.0
    %1300 = vadd.xlane.f32.xlu0 %v1299
    %v1301 = vpop.xlane.xlu0 %1300
    %v1302 = vsel %vm157, %v1282, 0.0
    %1303 = vadd.xlane.f32.xlu0 %v1302
    %v1304 = vpop.xlane.xlu0 %1303
    %v1305 = vsel %vm157, %v1283, 0.0
    %1306 = vadd.xlane.f32.xlu0 %v1305
    %v1307 = vpop.xlane.xlu0 %1306
    %v1308 = vmul.f32 %v1286, %v182
    %v1309 = vmul.f32 %v1289, %v182
    %v1310 = vmul.f32 %v1292, %v182
    %v1311 = vmul.f32 %v1295, %v182
    %v1312 = vmul.f32 %v1298, %v182
    %v1313 = vmul.f32 %v1301, %v182
    %v1314 = vmul.f32 %v1304, %v182
    %v1315 = vmul.f32 %v1307, %v182
    %v1316 = vadd.f32 %v1308, 1e-06
    %v1317 = vadd.f32 %v1309, 1e-06
    %v1318 = vadd.f32 %v1310, 1e-06
    %v1319 = vadd.f32 %v1311, 1e-06
    %v1320 = vadd.f32 %v1312, 1e-06
    %v1321 = vadd.f32 %v1313, 1e-06
    %v1322 = vadd.f32 %v1314, 1e-06
    %v1323 = vadd.f32 %v1315, 1e-06
    %v1324 = vrsqrt.pop %v1316
    %v1325 = vrsqrt.pop %v1317
    %v1326 = vrsqrt.pop %v1318
    %v1327 = vrsqrt.pop %v1319
    %v1328 = vrsqrt.pop %v1320
    %v1329 = vrsqrt.pop %v1321
    %v1330 = vrsqrt.pop %v1322
    %v1331 = vrsqrt.pop %v1323
    %v1332 = vmul.f32 %v1268, %v1324
    %v1333 = vmul.f32 %v1269, %v1325
    %v1334 = vmul.f32 %v1270, %v1326
    %v1335 = vmul.f32 %v1271, %v1327
    %v1336 = vmul.f32 %v1272, %v1328
    %v1337 = vmul.f32 %v1273, %v1329
    %v1338 = vmul.f32 %v1274, %v1330
    %v1339 = vmul.f32 %v1275, %v1331
    %v1340 = vmul.f32 %v1332, %v268
    %v1341 = vmul.f32 %v1333, %v268
    %v1342 = vmul.f32 %v1334, %v268
    %v1343 = vmul.f32 %v1335, %v268
    %v1344 = vmul.f32 %v1336, %v268
    %v1345 = vmul.f32 %v1337, %v268
    %v1346 = vmul.f32 %v1338, %v268
    %v1347 = vmul.f32 %v1339, %v268
    %v1348 = vadd.f32 %v1340, %v283
    %v1349 = vadd.f32 %v1341, %v283
    %v1350 = vadd.f32 %v1342, %v283
    %v1351 = vadd.f32 %v1343, %v283
    %v1352 = vadd.f32 %v1344, %v283
    %v1353 = vadd.f32 %v1345, %v283
    %v1354 = vadd.f32 %v1346, %v283
    %v1355 = vadd.f32 %v1347, %v283
    %v1356 = vmul.f32 %v1348, 0.5
    %v1357 = vmul.f32 %v1349, 0.5
    %v1358 = vmul.f32 %v1350, 0.5
    %v1359 = vmul.f32 %v1351, 0.5
    %v1360 = vmul.f32 %v1352, 0.5
    %v1361 = vmul.f32 %v1353, 0.5
    %v1362 = vmul.f32 %v1354, 0.5
    %v1363 = vmul.f32 %v1355, 0.5
    %v1364 = vmul.f32 %v1348, 0.70710677
    %v1365 = vmul.f32 %v1349, 0.70710677
    %v1366 = vmul.f32 %v1350, 0.70710677
    %v1367 = vmul.f32 %v1351, 0.70710677
    %v1368 = vmul.f32 %v1352, 0.70710677
    %v1369 = vmul.f32 %v1353, 0.70710677
    %v1370 = vmul.f32 %v1354, 0.70710677
    %v1371 = vmul.f32 %v1355, 0.70710677
    %v1372 = verf.f32.pop %v1364
    %v1373 = verf.f32.pop %v1365
    %v1374 = verf.f32.pop %v1366
    %v1375 = verf.f32.pop %v1367
    %v1376 = verf.f32.pop %v1368
    %v1377 = verf.f32.pop %v1369
    %v1378 = verf.f32.pop %v1370
    %v1379 = verf.f32.pop %v1371
    %v1380 = vadd.f32 %v1372, 1.0
    %v1381 = vadd.f32 %v1373, 1.0
    %v1382 = vadd.f32 %v1374, 1.0
    %v1383 = vadd.f32 %v1375, 1.0
    %v1384 = vadd.f32 %v1376, 1.0
    %v1385 = vadd.f32 %v1377, 1.0
    %v1386 = vadd.f32 %v1378, 1.0
    %v1387 = vadd.f32 %v1379, 1.0
    %v1388 = vmul.f32 %v1356, %v1380
    %v1389 = vmul.f32 %v1357, %v1381
    %v1390 = vmul.f32 %v1358, %v1382
    %v1391 = vmul.f32 %v1359, %v1383
    %v1392 = vmul.f32 %v1360, %v1384
    %v1393 = vmul.f32 %v1361, %v1385
    %v1394 = vmul.f32 %v1362, %v1386
    %v1395 = vmul.f32 %v1363, %v1387
    %v1396 = vpack.c.bf16 %v1389, %v1388
    %v1397 = vpack.c.bf16 %v1391, %v1390
    %v1398 = vpack.c.bf16 %v1393, %v1392
    %v1399 = vpack.c.bf16 %v1395, %v1394
    %v1401 = vsel %vm157, %v1396, 0
    %v1404 = vsel %vm157, %v1397, 0
    %v1407 = vsel %vm157, %v1398, 0
    %v1410 = vsel %vm157, %v1399, 0
    %1412 = vmatprep.subr.bf16.mxu0 0
    %1413 = vmatpush1.bf16.msra.mxu0 %v359
    %1414 = vmatprep.subr.bf16.mxu0 0
    %1415 = vmatpush1.bf16.msra.mxu0 0
    %1416 = vmatprep.subr.bf16.mxu0 0
    %1417 = vmatpush1.bf16.msra.mxu0 0
    %1418 = vmatprep.subr.bf16.mxu0 0
    %1419 = vmatpush1.bf16.msra.mxu0 0
    %1420 = vmatprep.subr.bf16.mxu0 0
    %1421 = vmatpush1.bf16.msra.mxu0 0
    %1422 = vmatprep.subr.bf16.mxu0 0
    %1423 = vmatpush1.bf16.msra.mxu0 0
    %1424 = vmatprep.subr.bf16.mxu0 0
    %1425 = vmatpush1.bf16.msra.mxu0 0
    %1426 = vmatprep.subr.bf16.mxu0 0
    %1427 = vmatpush1.bf16.msra.mxu0 0
    %1428 = vmatprep.subr.bf16.mxu0 0
    %1429 = vmatpush1.bf16.msra.mxu0 0
    %1430 = vmatprep.subr.bf16.mxu0 0
    %1431 = vmatpush1.bf16.msra.mxu0 0
    %1432 = vmatprep.subr.bf16.mxu0 0
    %1433 = vmatpush1.bf16.msra.mxu0 0
    %1434 = vmatprep.subr.bf16.mxu0 0
    %1435 = vmatpush1.bf16.msra.mxu0 0
    %1436 = vmatprep.subr.bf16.mxu0 0
    %1437 = vmatpush1.bf16.msra.mxu0 0
    %1438 = vmatprep.subr.bf16.mxu0 0
    %1439 = vmatpush1.bf16.msra.mxu0 0
    %1440 = vmatprep.subr.bf16.mxu0 0
    %1441 = vmatpush1.bf16.msra.mxu0 0
    %1442 = vmatprep.subr.bf16.mxu0 0
    %1443 = vmatpush1.bf16.msra.mxu0 0
    %1444 = vmatprep.mubr.bf16.mxu0 0
    %1445 = vmatmul.mubr.bf16.gmra.mrb[0].mxu0 %v1401
    %v1446 = vpop.f32.mrb[0].mxu0
    %v1447 = vadd.f32 %v343, %v1446
    %v1448 = vpop.f32.mrb[0].mxu0
    %v1449 = vpop.f32.mrb[0].mxu0
    %v1450 = vadd.f32 %v343, %v1449
    %v1451 = vpop.f32.mrb[0].mxu0
    %1452 = vmatprep.mubr.bf16.mxu0 0
    %1453 = vmatmul.mubr.bf16.gmra.mrb[0].mxu0 %v1404
    %v1454 = vpop.f32.mrb[0].mxu0
    %v1455 = vadd.f32 %v343, %v1454
    %v1456 = vpop.f32.mrb[0].mxu0
    %v1457 = vpop.f32.mrb[0].mxu0
    %v1458 = vadd.f32 %v343, %v1457
    %v1459 = vpop.f32.mrb[0].mxu0
    %1460 = vmatprep.mubr.bf16.mxu0 0
    %1461 = vmatmul.mubr.bf16.gmra.mrb[0].mxu0 %v1407
    %v1462 = vpop.f32.mrb[0].mxu0
    %v1463 = vadd.f32 %v343, %v1462
    %v1464 = vpop.f32.mrb[0].mxu0
    %v1465 = vpop.f32.mrb[0].mxu0
    %v1466 = vadd.f32 %v343, %v1465
    %v1467 = vpop.f32.mrb[0].mxu0
    %1468 = vmatprep.mubr.bf16.mxu0 0
    %1469 = vmatmul.mubr.bf16.gmra.mrb[0].mxu0 %v1410
    %v1470 = vpop.f32.mrb[0].mxu0
    %v1471 = vadd.f32 %v343, %v1470
    %v1472 = vpop.f32.mrb[0].mxu0
    %v1473 = vpop.f32.mrb[0].mxu0
    %v1474 = vadd.f32 %v343, %v1473
    %v1475 = vpop.f32.mrb[0].mxu0
    %1476 = vdwg.mxu0
    %1477 = vmatprep.subr.bf16.mxu0 0
    %1478 = vmatpush1.bf16.msra.mxu0 %v429
    %1479 = vmatprep.subr.bf16.mxu0 0
    %1480 = vmatpush1.bf16.msra.mxu0 0
    %1481 = vmatprep.subr.bf16.mxu0 0
    %1482 = vmatpush1.bf16.msra.mxu0 0
    %1483 = vmatprep.subr.bf16.mxu0 0
    %1484 = vmatpush1.bf16.msra.mxu0 0
    %1485 = vmatprep.subr.bf16.mxu0 0
    %1486 = vmatpush1.bf16.msra.mxu0 0
    %1487 = vmatprep.subr.bf16.mxu0 0
    %1488 = vmatpush1.bf16.msra.mxu0 0
    %1489 = vmatprep.subr.bf16.mxu0 0
    %1490 = vmatpush1.bf16.msra.mxu0 0
    %1491 = vmatprep.subr.bf16.mxu0 0
    %1492 = vmatpush1.bf16.msra.mxu0 0
    %1493 = vmatprep.subr.bf16.mxu0 0
    %1494 = vmatpush1.bf16.msra.mxu0 0
    %1495 = vmatprep.subr.bf16.mxu0 0
    %1496 = vmatpush1.bf16.msra.mxu0 0
    %1497 = vmatprep.subr.bf16.mxu0 0
    %1498 = vmatpush1.bf16.msra.mxu0 0
    %1499 = vmatprep.subr.bf16.mxu0 0
    %1500 = vmatpush1.bf16.msra.mxu0 0
    %1501 = vmatprep.subr.bf16.mxu0 0
    %1502 = vmatpush1.bf16.msra.mxu0 0
    %1503 = vmatprep.subr.bf16.mxu0 0
    %1504 = vmatpush1.bf16.msra.mxu0 0
    %1505 = vmatprep.subr.bf16.mxu0 0
    %1506 = vmatpush1.bf16.msra.mxu0 0
    %1507 = vmatprep.subr.bf16.mxu0 0
    %1508 = vmatpush1.bf16.msra.mxu0 0
    %1509 = vmatprep.mubr.bf16.mxu0 0
    %1510 = vmatmul.mubr.bf16.gmra.mrb[0].mxu0 %v1401
    %v1511 = vpop.f32.mrb[0].mxu0
    %v1512 = vadd.f32 %v343, %v1511
    %v1513 = vpop.f32.mrb[0].mxu0
    %v1514 = vpop.f32.mrb[0].mxu0
    %v1515 = vadd.f32 %v343, %v1514
    %v1516 = vpop.f32.mrb[0].mxu0
    %1517 = vmatprep.mubr.bf16.mxu0 0
    %1518 = vmatmul.mubr.bf16.gmra.mrb[0].mxu0 %v1404
    %v1519 = vpop.f32.mrb[0].mxu0
    %v1520 = vadd.f32 %v343, %v1519
    %v1521 = vpop.f32.mrb[0].mxu0
    %v1522 = vpop.f32.mrb[0].mxu0
    %v1523 = vadd.f32 %v343, %v1522
    %v1524 = vpop.f32.mrb[0].mxu0
    %1525 = vmatprep.mubr.bf16.mxu0 0
    %1526 = vmatmul.mubr.bf16.gmra.mrb[0].mxu0 %v1407
    %v1527 = vpop.f32.mrb[0].mxu0
    %v1528 = vadd.f32 %v343, %v1527
    %v1529 = vpop.f32.mrb[0].mxu0
    %v1530 = vpop.f32.mrb[0].mxu0
    %v1531 = vadd.f32 %v343, %v1530
    %v1532 = vpop.f32.mrb[0].mxu0
    %1533 = vmatprep.mubr.bf16.mxu0 0
    %1534 = vmatmul.mubr.bf16.gmra.mrb[0].mxu0 %v1410
    %v1535 = vpop.f32.mrb[0].mxu0
    %v1536 = vadd.f32 %v343, %v1535
    %v1537 = vpop.f32.mrb[0].mxu0
    %v1538 = vpop.f32.mrb[0].mxu0
    %v1539 = vadd.f32 %v343, %v1538
    %v1540 = vpop.f32.mrb[0].mxu0
    %1541 = vdwg.mxu0
    %1542 = vmatprep.subr.bf16.mxu0 0
    %1543 = vmatpush1.bf16.msra.mxu0 %v499
    %1544 = vmatprep.subr.bf16.mxu0 0
    %1545 = vmatpush1.bf16.msra.mxu0 0
    %1546 = vmatprep.subr.bf16.mxu0 0
    %1547 = vmatpush1.bf16.msra.mxu0 0
    %1548 = vmatprep.subr.bf16.mxu0 0
    %1549 = vmatpush1.bf16.msra.mxu0 0
    %1550 = vmatprep.subr.bf16.mxu0 0
    %1551 = vmatpush1.bf16.msra.mxu0 0
    %1552 = vmatprep.subr.bf16.mxu0 0
    %1553 = vmatpush1.bf16.msra.mxu0 0
    %1554 = vmatprep.subr.bf16.mxu0 0
    %1555 = vmatpush1.bf16.msra.mxu0 0
    %1556 = vmatprep.subr.bf16.mxu0 0
    %1557 = vmatpush1.bf16.msra.mxu0 0
    %1558 = vmatprep.subr.bf16.mxu0 0
    %1559 = vmatpush1.bf16.msra.mxu0 0
    %1560 = vmatprep.subr.bf16.mxu0 0
    %1561 = vmatpush1.bf16.msra.mxu0 0
    %1562 = vmatprep.subr.bf16.mxu0 0
    %1563 = vmatpush1.bf16.msra.mxu0 0
    %1564 = vmatprep.subr.bf16.mxu0 0
    %1565 = vmatpush1.bf16.msra.mxu0 0
    %1566 = vmatprep.subr.bf16.mxu0 0
    %1567 = vmatpush1.bf16.msra.mxu0 0
    %1568 = vmatprep.subr.bf16.mxu0 0
    %1569 = vmatpush1.bf16.msra.mxu0 0
    %1570 = vmatprep.subr.bf16.mxu0 0
    %1571 = vmatpush1.bf16.msra.mxu0 0
    %1572 = vmatprep.subr.bf16.mxu0 0
    %1573 = vmatpush1.bf16.msra.mxu0 0
    %1574 = vmatprep.mubr.bf16.mxu0 0
    %1575 = vmatmul.mubr.bf16.gmra.mrb[0].mxu0 %v1401
    %v1576 = vpop.f32.mrb[0].mxu0
    %v1577 = vadd.f32 %v343, %v1576
    %v1578 = vpop.f32.mrb[0].mxu0
    %v1579 = vpop.f32.mrb[0].mxu0
    %v1580 = vadd.f32 %v343, %v1579
    %v1581 = vpop.f32.mrb[0].mxu0
    %1582 = vmatprep.mubr.bf16.mxu0 0
    %1583 = vmatmul.mubr.bf16.gmra.mrb[0].mxu0 %v1404
    %v1584 = vpop.f32.mrb[0].mxu0
    %v1585 = vadd.f32 %v343, %v1584
    %v1586 = vpop.f32.mrb[0].mxu0
    %v1587 = vpop.f32.mrb[0].mxu0
    %v1588 = vadd.f32 %v343, %v1587
    %v1589 = vpop.f32.mrb[0].mxu0
    %1590 = vmatprep.mubr.bf16.mxu0 0
    %1591 = vmatmul.mubr.bf16.gmra.mrb[0].mxu0 %v1407
    %v1592 = vpop.f32.mrb[0].mxu0
    %v1593 = vadd.f32 %v343, %v1592
    %v1594 = vpop.f32.mrb[0].mxu0
    %v1595 = vpop.f32.mrb[0].mxu0
    %v1596 = vadd.f32 %v343, %v1595
    %v1597 = vpop.f32.mrb[0].mxu0
    %1598 = vmatprep.mubr.bf16.mxu0 0
    %1599 = vmatmul.mubr.bf16.gmra.mrb[0].mxu0 %v1410
    %v1600 = vpop.f32.mrb[0].mxu0
    %v1601 = vadd.f32 %v343, %v1600
    %v1602 = vpop.f32.mrb[0].mxu0
    %v1603 = vpop.f32.mrb[0].mxu0
    %v1604 = vadd.f32 %v343, %v1603
    %v1605 = vpop.f32.mrb[0].mxu0
    %1606 = vdwg.mxu0
    %1607 = vmatprep.subr.bf16.mxu0 0
    %1608 = vmatpush1.bf16.msra.mxu0 %v569
    %1609 = vmatprep.subr.bf16.mxu0 0
    %1610 = vmatpush1.bf16.msra.mxu0 0
    %1611 = vmatprep.subr.bf16.mxu0 0
    %1612 = vmatpush1.bf16.msra.mxu0 0
    %1613 = vmatprep.subr.bf16.mxu0 0
    %1614 = vmatpush1.bf16.msra.mxu0 0
    %1615 = vmatprep.subr.bf16.mxu0 0
    %1616 = vmatpush1.bf16.msra.mxu0 0
    %1617 = vmatprep.subr.bf16.mxu0 0
    %1618 = vmatpush1.bf16.msra.mxu0 0
    %1619 = vmatprep.subr.bf16.mxu0 0
    %1620 = vmatpush1.bf16.msra.mxu0 0
    %1621 = vmatprep.subr.bf16.mxu0 0
    %1622 = vmatpush1.bf16.msra.mxu0 0
    %1623 = vmatprep.subr.bf16.mxu0 0
    %1624 = vmatpush1.bf16.msra.mxu0 0
    %1625 = vmatprep.subr.bf16.mxu0 0
    %1626 = vmatpush1.bf16.msra.mxu0 0
    %1627 = vmatprep.subr.bf16.mxu0 0
    %1628 = vmatpush1.bf16.msra.mxu0 0
    %1629 = vmatprep.subr.bf16.mxu0 0
    %1630 = vmatpush1.bf16.msra.mxu0 0
    %1631 = vmatprep.subr.bf16.mxu0 0
    %1632 = vmatpush1.bf16.msra.mxu0 0
    %1633 = vmatprep.subr.bf16.mxu0 0
    %1634 = vmatpush1.bf16.msra.mxu0 0
    %1635 = vmatprep.subr.bf16.mxu0 0
    %1636 = vmatpush1.bf16.msra.mxu0 0
    %1637 = vmatprep.subr.bf16.mxu0 0
    %1638 = vmatpush1.bf16.msra.mxu0 0
    %1639 = vmatprep.mubr.bf16.mxu0 0
    %1640 = vmatmul.mubr.bf16.gmra.mrb[0].mxu0 %v1401
    %v1641 = vpop.f32.mrb[0].mxu0
    %v1642 = vadd.f32 %v343, %v1641
    %v1643 = vpop.f32.mrb[0].mxu0
    %v1644 = vpop.f32.mrb[0].mxu0
    %v1645 = vadd.f32 %v343, %v1644
    %v1646 = vpop.f32.mrb[0].mxu0
    %1647 = vmatprep.mubr.bf16.mxu0 0
    %1648 = vmatmul.mubr.bf16.gmra.mrb[0].mxu0 %v1404
    %v1649 = vpop.f32.mrb[0].mxu0
    %v1650 = vadd.f32 %v343, %v1649
    %v1651 = vpop.f32.mrb[0].mxu0
    %v1652 = vpop.f32.mrb[0].mxu0
    %v1653 = vadd.f32 %v343, %v1652
    %v1654 = vpop.f32.mrb[0].mxu0
    %1655 = vmatprep.mubr.bf16.mxu0 0
    %1656 = vmatmul.mubr.bf16.gmra.mrb[0].mxu0 %v1407
    %v1657 = vpop.f32.mrb[0].mxu0
    %v1658 = vadd.f32 %v343, %v1657
    %v1659 = vpop.f32.mrb[0].mxu0
    %v1660 = vpop.f32.mrb[0].mxu0
    %v1661 = vadd.f32 %v343, %v1660
    %v1662 = vpop.f32.mrb[0].mxu0
    %1663 = vmatprep.mubr.bf16.mxu0 0
    %1664 = vmatmul.mubr.bf16.gmra.mrb[0].mxu0 %v1410
    %v1665 = vpop.f32.mrb[0].mxu0
    %v1666 = vadd.f32 %v343, %v1665
    %v1667 = vpop.f32.mrb[0].mxu0
    %v1668 = vpop.f32.mrb[0].mxu0
    %v1669 = vadd.f32 %v343, %v1668
    %v1670 = vpop.f32.mrb[0].mxu0
    %1671 = vdwg.mxu0
    %s1672 = scalar_lea.vmem %s1, 48
    %v1673 = vld [vmem:[%s1672] sm:$0xf]
    %v1674 = vld [vmem:[%s1672 + $0x4] sm:$0xf]
    %v1675 = vld [vmem:[%s1672 + $0x8] sm:$0xf]
    %v1676 = vld [vmem:[%s1672 + $0xc] sm:$0xf]
    %v1681 = vunpack.c.l.b16 %v1673
    %v1682 = vunpack.c.l.b16 %v1674
    %v1683 = vunpack.c.l.b16 %v1675
    %v1684 = vunpack.c.l.b16 %v1676
    %v1685 = vpack.c.b16 %v1682, %v1681
    %v1686 = vpack.c.b16 %v1684, %v1683
    %1689 = vmatprep.subr.bf16.mxu0 0
    %1690 = vmatpush1.bf16.msra.mxu0 %v1685
    %1691 = vmatprep.subr.bf16.mxu0 0
    %1692 = vmatpush1.bf16.msra.mxu0 %v1686
    %1693 = vmatprep.subr.bf16.mxu0 0
    %1694 = vmatpush1.bf16.msra.mxu0 0
    %1695 = vmatprep.subr.bf16.mxu0 0
    %1696 = vmatpush1.bf16.msra.mxu0 0
    %1697 = vmatprep.subr.bf16.mxu0 0
    %1698 = vmatpush1.bf16.msra.mxu0 0
    %1699 = vmatprep.subr.bf16.mxu0 0
    %1700 = vmatpush1.bf16.msra.mxu0 0
    %1701 = vmatprep.subr.bf16.mxu0 0
    %1702 = vmatpush1.bf16.msra.mxu0 0
    %1703 = vmatprep.subr.bf16.mxu0 0
    %1704 = vmatpush1.bf16.msra.mxu0 0
    %1705 = vmatprep.subr.bf16.mxu0 0
    %1706 = vmatpush1.bf16.msra.mxu0 0
    %1707 = vmatprep.subr.bf16.mxu0 0
    %1708 = vmatpush1.bf16.msra.mxu0 0
    %1709 = vmatprep.subr.bf16.mxu0 0
    %1710 = vmatpush1.bf16.msra.mxu0 0
    %1711 = vmatprep.subr.bf16.mxu0 0
    %1712 = vmatpush1.bf16.msra.mxu0 0
    %1713 = vmatprep.subr.bf16.mxu0 0
    %1714 = vmatpush1.bf16.msra.mxu0 0
    %1715 = vmatprep.subr.bf16.mxu0 0
    %1716 = vmatpush1.bf16.msra.mxu0 0
    %1717 = vmatprep.subr.bf16.mxu0 0
    %1718 = vmatpush1.bf16.msra.mxu0 0
    %1719 = vmatprep.subr.bf16.mxu0 0
    %1720 = vmatpush1.bf16.msra.mxu0 0
    %1721 = vmatprep.mubr.bf16.mxu0 0
    %1722 = vmatmul.mubr.bf16.gmra.mrb[0].mxu0 %v81
    %v1723 = vpop.f32.mrb[0].mxu0
    %v1724 = vadd.f32 %v45, %v1723
    %v1725 = vpop.f32.mrb[0].mxu0
    %v1726 = vpop.f32.mrb[0].mxu0
    %v1727 = vadd.f32 %v45, %v1726
    %v1728 = vpop.f32.mrb[0].mxu0
    %1729 = vmatprep.mubr.bf16.mxu0 0
    %1730 = vmatmul.mubr.bf16.gmra.mrb[0].mxu0 %v84
    %v1731 = vpop.f32.mrb[0].mxu0
    %v1732 = vadd.f32 %v45, %v1731
    %v1733 = vpop.f32.mrb[0].mxu0
    %v1734 = vpop.f32.mrb[0].mxu0
    %v1735 = vadd.f32 %v45, %v1734
    %v1736 = vpop.f32.mrb[0].mxu0
    %1737 = vmatprep.mubr.bf16.mxu0 0
    %1738 = vmatmul.mubr.bf16.gmra.mrb[0].mxu0 %v87
    %v1739 = vpop.f32.mrb[0].mxu0
    %v1740 = vadd.f32 %v45, %v1739
    %v1741 = vpop.f32.mrb[0].mxu0
    %v1742 = vpop.f32.mrb[0].mxu0
    %v1743 = vadd.f32 %v45, %v1742
    %v1744 = vpop.f32.mrb[0].mxu0
    %1745 = vmatprep.mubr.bf16.mxu0 0
    %1746 = vmatmul.mubr.bf16.gmra.mrb[0].mxu0 %v90
    %v1747 = vpop.f32.mrb[0].mxu0
    %v1748 = vadd.f32 %v45, %v1747
    %v1749 = vpop.f32.mrb[0].mxu0
    %v1750 = vpop.f32.mrb[0].mxu0
    %v1751 = vadd.f32 %v45, %v1750
    %v1752 = vpop.f32.mrb[0].mxu0
    %1753 = vdwg.mxu0
    %v1754 = vsel %vm157, %v1724, 0.0
    %1755 = vadd.xlane.f32.xlu0 %v1754
    %v1756 = vpop.xlane.xlu0 %1755
    %v1757 = vsel %vm157, %v1727, 0.0
    %1758 = vadd.xlane.f32.xlu0 %v1757
    %v1759 = vpop.xlane.xlu0 %1758
    %v1760 = vsel %vm157, %v1732, 0.0
    %1761 = vadd.xlane.f32.xlu0 %v1760
    %v1762 = vpop.xlane.xlu0 %1761
    %v1763 = vsel %vm157, %v1735, 0.0
    %1764 = vadd.xlane.f32.xlu0 %v1763
    %v1765 = vpop.xlane.xlu0 %1764
    %v1766 = vsel %vm157, %v1740, 0.0
    %1767 = vadd.xlane.f32.xlu0 %v1766
    %v1768 = vpop.xlane.xlu0 %1767
    %v1769 = vsel %vm157, %v1743, 0.0
    %1770 = vadd.xlane.f32.xlu0 %v1769
    %v1771 = vpop.xlane.xlu0 %1770
    %v1772 = vsel %vm157, %v1748, 0.0
    %1773 = vadd.xlane.f32.xlu0 %v1772
    %v1774 = vpop.xlane.xlu0 %1773
    %v1775 = vsel %vm157, %v1751, 0.0
    %1776 = vadd.xlane.f32.xlu0 %v1775
    %v1777 = vpop.xlane.xlu0 %1776
    %v1778 = vmul.f32 %v1756, %v182
    %v1779 = vmul.f32 %v1759, %v182
    %v1780 = vmul.f32 %v1762, %v182
    %v1781 = vmul.f32 %v1765, %v182
    %v1782 = vmul.f32 %v1768, %v182
    %v1783 = vmul.f32 %v1771, %v182
    %v1784 = vmul.f32 %v1774, %v182
    %v1785 = vmul.f32 %v1777, %v182
    %v1786 = vsub.f32 %v1724, %v1778
    %v1787 = vsub.f32 %v1727, %v1779
    %v1788 = vsub.f32 %v1732, %v1780
    %v1789 = vsub.f32 %v1735, %v1781
    %v1790 = vsub.f32 %v1740, %v1782
    %v1791 = vsub.f32 %v1743, %v1783
    %v1792 = vsub.f32 %v1748, %v1784
    %v1793 = vsub.f32 %v1751, %v1785
    %v1794 = vmul.f32 %v1786, %v1786
    %v1795 = vmul.f32 %v1787, %v1787
    %v1796 = vmul.f32 %v1788, %v1788
    %v1797 = vmul.f32 %v1789, %v1789
    %v1798 = vmul.f32 %v1790, %v1790
    %v1799 = vmul.f32 %v1791, %v1791
    %v1800 = vmul.f32 %v1792, %v1792
    %v1801 = vmul.f32 %v1793, %v1793
    %v1802 = vsel %vm157, %v1794, 0.0
    %1803 = vadd.xlane.f32.xlu0 %v1802
    %v1804 = vpop.xlane.xlu0 %1803
    %v1805 = vsel %vm157, %v1795, 0.0
    %1806 = vadd.xlane.f32.xlu0 %v1805
    %v1807 = vpop.xlane.xlu0 %1806
    %v1808 = vsel %vm157, %v1796, 0.0
    %1809 = vadd.xlane.f32.xlu0 %v1808
    %v1810 = vpop.xlane.xlu0 %1809
    %v1811 = vsel %vm157, %v1797, 0.0
    %1812 = vadd.xlane.f32.xlu0 %v1811
    %v1813 = vpop.xlane.xlu0 %1812
    %v1814 = vsel %vm157, %v1798, 0.0
    %1815 = vadd.xlane.f32.xlu0 %v1814
    %v1816 = vpop.xlane.xlu0 %1815
    %v1817 = vsel %vm157, %v1799, 0.0
    %1818 = vadd.xlane.f32.xlu0 %v1817
    %v1819 = vpop.xlane.xlu0 %1818
    %v1820 = vsel %vm157, %v1800, 0.0
    %1821 = vadd.xlane.f32.xlu0 %v1820
    %v1822 = vpop.xlane.xlu0 %1821
    %v1823 = vsel %vm157, %v1801, 0.0
    %1824 = vadd.xlane.f32.xlu0 %v1823
    %v1825 = vpop.xlane.xlu0 %1824
    %v1826 = vmul.f32 %v1804, %v182
    %v1827 = vmul.f32 %v1807, %v182
    %v1828 = vmul.f32 %v1810, %v182
    %v1829 = vmul.f32 %v1813, %v182
    %v1830 = vmul.f32 %v1816, %v182
    %v1831 = vmul.f32 %v1819, %v182
    %v1832 = vmul.f32 %v1822, %v182
    %v1833 = vmul.f32 %v1825, %v182
    %v1834 = vadd.f32 %v1826, 1e-06
    %v1835 = vadd.f32 %v1827, 1e-06
    %v1836 = vadd.f32 %v1828, 1e-06
    %v1837 = vadd.f32 %v1829, 1e-06
    %v1838 = vadd.f32 %v1830, 1e-06
    %v1839 = vadd.f32 %v1831, 1e-06
    %v1840 = vadd.f32 %v1832, 1e-06
    %v1841 = vadd.f32 %v1833, 1e-06
    %v1842 = vrsqrt.pop %v1834
    %v1843 = vrsqrt.pop %v1835
    %v1844 = vrsqrt.pop %v1836
    %v1845 = vrsqrt.pop %v1837
    %v1846 = vrsqrt.pop %v1838
    %v1847 = vrsqrt.pop %v1839
    %v1848 = vrsqrt.pop %v1840
    %v1849 = vrsqrt.pop %v1841
    %v1850 = vmul.f32 %v1786, %v1842
    %v1851 = vmul.f32 %v1787, %v1843
    %v1852 = vmul.f32 %v1788, %v1844
    %v1853 = vmul.f32 %v1789, %v1845
    %v1854 = vmul.f32 %v1790, %v1846
    %v1855 = vmul.f32 %v1791, %v1847
    %v1856 = vmul.f32 %v1792, %v1848
    %v1857 = vmul.f32 %v1793, %v1849
    %v1858 = vmul.f32 %v1850, %v268
    %v1859 = vmul.f32 %v1851, %v268
    %v1860 = vmul.f32 %v1852, %v268
    %v1861 = vmul.f32 %v1853, %v268
    %v1862 = vmul.f32 %v1854, %v268
    %v1863 = vmul.f32 %v1855, %v268
    %v1864 = vmul.f32 %v1856, %v268
    %v1865 = vmul.f32 %v1857, %v268
    %v1866 = vadd.f32 %v1858, %v283
    %v1867 = vadd.f32 %v1859, %v283
    %v1868 = vadd.f32 %v1860, %v283
    %v1869 = vadd.f32 %v1861, %v283
    %v1870 = vadd.f32 %v1862, %v283
    %v1871 = vadd.f32 %v1863, %v283
    %v1872 = vadd.f32 %v1864, %v283
    %v1873 = vadd.f32 %v1865, %v283
    %v1874 = vmul.f32 %v1866, 0.5
    %v1875 = vmul.f32 %v1867, 0.5
    %v1876 = vmul.f32 %v1868, 0.5
    %v1877 = vmul.f32 %v1869, 0.5
    %v1878 = vmul.f32 %v1870, 0.5
    %v1879 = vmul.f32 %v1871, 0.5
    %v1880 = vmul.f32 %v1872, 0.5
    %v1881 = vmul.f32 %v1873, 0.5
    %v1882 = vmul.f32 %v1866, 0.70710677
    %v1883 = vmul.f32 %v1867, 0.70710677
    %v1884 = vmul.f32 %v1868, 0.70710677
    %v1885 = vmul.f32 %v1869, 0.70710677
    %v1886 = vmul.f32 %v1870, 0.70710677
    %v1887 = vmul.f32 %v1871, 0.70710677
    %v1888 = vmul.f32 %v1872, 0.70710677
    %v1889 = vmul.f32 %v1873, 0.70710677
    %v1890 = verf.f32.pop %v1882
    %v1891 = verf.f32.pop %v1883
    %v1892 = verf.f32.pop %v1884
    %v1893 = verf.f32.pop %v1885
    %v1894 = verf.f32.pop %v1886
    %v1895 = verf.f32.pop %v1887
    %v1896 = verf.f32.pop %v1888
    %v1897 = verf.f32.pop %v1889
    %v1898 = vadd.f32 %v1890, 1.0
    %v1899 = vadd.f32 %v1891, 1.0
    %v1900 = vadd.f32 %v1892, 1.0
    %v1901 = vadd.f32 %v1893, 1.0
    %v1902 = vadd.f32 %v1894, 1.0
    %v1903 = vadd.f32 %v1895, 1.0
    %v1904 = vadd.f32 %v1896, 1.0
    %v1905 = vadd.f32 %v1897, 1.0
    %v1906 = vmul.f32 %v1874, %v1898
    %v1907 = vmul.f32 %v1875, %v1899
    %v1908 = vmul.f32 %v1876, %v1900
    %v1909 = vmul.f32 %v1877, %v1901
    %v1910 = vmul.f32 %v1878, %v1902
    %v1911 = vmul.f32 %v1879, %v1903
    %v1912 = vmul.f32 %v1880, %v1904
    %v1913 = vmul.f32 %v1881, %v1905
    %v1914 = vpack.c.bf16 %v1907, %v1906
    %v1915 = vpack.c.bf16 %v1909, %v1908
    %v1916 = vpack.c.bf16 %v1911, %v1910
    %v1917 = vpack.c.bf16 %v1913, %v1912
    %v1919 = vsel %vm157, %v1914, 0
    %v1922 = vsel %vm157, %v1915, 0
    %v1925 = vsel %vm157, %v1916, 0
    %v1928 = vsel %vm157, %v1917, 0
    %1930 = vmatprep.subr.bf16.mxu0 0
    %1931 = vmatpush1.bf16.msra.mxu0 %v359
    %1932 = vmatprep.subr.bf16.mxu0 0
    %1933 = vmatpush1.bf16.msra.mxu0 0
    %1934 = vmatprep.subr.bf16.mxu0 0
    %1935 = vmatpush1.bf16.msra.mxu0 0
    %1936 = vmatprep.subr.bf16.mxu0 0
    %1937 = vmatpush1.bf16.msra.mxu0 0
    %1938 = vmatprep.subr.bf16.mxu0 0
    %1939 = vmatpush1.bf16.msra.mxu0 0
    %1940 = vmatprep.subr.bf16.mxu0 0
    %1941 = vmatpush1.bf16.msra.mxu0 0
    %1942 = vmatprep.subr.bf16.mxu0 0
    %1943 = vmatpush1.bf16.msra.mxu0 0
    %1944 = vmatprep.subr.bf16.mxu0 0
    %1945 = vmatpush1.bf16.msra.mxu0 0
    %1946 = vmatprep.subr.bf16.mxu0 0
    %1947 = vmatpush1.bf16.msra.mxu0 0
    %1948 = vmatprep.subr.bf16.mxu0 0
    %1949 = vmatpush1.bf16.msra.mxu0 0
    %1950 = vmatprep.subr.bf16.mxu0 0
    %1951 = vmatpush1.bf16.msra.mxu0 0
    %1952 = vmatprep.subr.bf16.mxu0 0
    %1953 = vmatpush1.bf16.msra.mxu0 0
    %1954 = vmatprep.subr.bf16.mxu0 0
    %1955 = vmatpush1.bf16.msra.mxu0 0
    %1956 = vmatprep.subr.bf16.mxu0 0
    %1957 = vmatpush1.bf16.msra.mxu0 0
    %1958 = vmatprep.subr.bf16.mxu0 0
    %1959 = vmatpush1.bf16.msra.mxu0 0
    %1960 = vmatprep.subr.bf16.mxu0 0
    %1961 = vmatpush1.bf16.msra.mxu0 0
    %1962 = vmatprep.mubr.bf16.mxu0 0
    %1963 = vmatmul.mubr.bf16.gmra.mrb[0].mxu0 %v1919
    %v1964 = vpop.f32.mrb[0].mxu0
    %v1965 = vadd.f32 %v343, %v1964
    %v1966 = vpop.f32.mrb[0].mxu0
    %v1967 = vpop.f32.mrb[0].mxu0
    %v1968 = vadd.f32 %v343, %v1967
    %v1969 = vpop.f32.mrb[0].mxu0
    %1970 = vmatprep.mubr.bf16.mxu0 0
    %1971 = vmatmul.mubr.bf16.gmra.mrb[0].mxu0 %v1922
    %v1972 = vpop.f32.mrb[0].mxu0
    %v1973 = vadd.f32 %v343, %v1972
    %v1974 = vpop.f32.mrb[0].mxu0
    %v1975 = vpop.f32.mrb[0].mxu0
    %v1976 = vadd.f32 %v343, %v1975
    %v1977 = vpop.f32.mrb[0].mxu0
    %1978 = vmatprep.mubr.bf16.mxu0 0
    %1979 = vmatmul.mubr.bf16.gmra.mrb[0].mxu0 %v1925
    %v1980 = vpop.f32.mrb[0].mxu0
    %v1981 = vadd.f32 %v343, %v1980
    %v1982 = vpop.f32.mrb[0].mxu0
    %v1983 = vpop.f32.mrb[0].mxu0
    %v1984 = vadd.f32 %v343, %v1983
    %v1985 = vpop.f32.mrb[0].mxu0
    %1986 = vmatprep.mubr.bf16.mxu0 0
    %1987 = vmatmul.mubr.bf16.gmra.mrb[0].mxu0 %v1928
    %v1988 = vpop.f32.mrb[0].mxu0
    %v1989 = vadd.f32 %v343, %v1988
    %v1990 = vpop.f32.mrb[0].mxu0
    %v1991 = vpop.f32.mrb[0].mxu0
    %v1992 = vadd.f32 %v343, %v1991
    %v1993 = vpop.f32.mrb[0].mxu0
    %1994 = vdwg.mxu0
    %1995 = vmatprep.subr.bf16.mxu0 0
    %1996 = vmatpush1.bf16.msra.mxu0 %v429
    %1997 = vmatprep.subr.bf16.mxu0 0
    %1998 = vmatpush1.bf16.msra.mxu0 0
    %1999 = vmatprep.subr.bf16.mxu0 0
    %2000 = vmatpush1.bf16.msra.mxu0 0
    %2001 = vmatprep.subr.bf16.mxu0 0
    %2002 = vmatpush1.bf16.msra.mxu0 0
    %2003 = vmatprep.subr.bf16.mxu0 0
    %2004 = vmatpush1.bf16.msra.mxu0 0
    %2005 = vmatprep.subr.bf16.mxu0 0
    %2006 = vmatpush1.bf16.msra.mxu0 0
    %2007 = vmatprep.subr.bf16.mxu0 0
    %2008 = vmatpush1.bf16.msra.mxu0 0
    %2009 = vmatprep.subr.bf16.mxu0 0
    %2010 = vmatpush1.bf16.msra.mxu0 0
    %2011 = vmatprep.subr.bf16.mxu0 0
    %2012 = vmatpush1.bf16.msra.mxu0 0
    %2013 = vmatprep.subr.bf16.mxu0 0
    %2014 = vmatpush1.bf16.msra.mxu0 0
    %2015 = vmatprep.subr.bf16.mxu0 0
    %2016 = vmatpush1.bf16.msra.mxu0 0
    %2017 = vmatprep.subr.bf16.mxu0 0
    %2018 = vmatpush1.bf16.msra.mxu0 0
    %2019 = vmatprep.subr.bf16.mxu0 0
    %2020 = vmatpush1.bf16.msra.mxu0 0
    %2021 = vmatprep.subr.bf16.mxu0 0
    %2022 = vmatpush1.bf16.msra.mxu0 0
    %2023 = vmatprep.subr.bf16.mxu0 0
    %2024 = vmatpush1.bf16.msra.mxu0 0
    %2025 = vmatprep.subr.bf16.mxu0 0
    %2026 = vmatpush1.bf16.msra.mxu0 0
    %2027 = vmatprep.mubr.bf16.mxu0 0
    %2028 = vmatmul.mubr.bf16.gmra.mrb[0].mxu0 %v1919
    %v2029 = vpop.f32.mrb[0].mxu0
    %v2030 = vadd.f32 %v343, %v2029
    %v2031 = vpop.f32.mrb[0].mxu0
    %v2032 = vpop.f32.mrb[0].mxu0
    %v2033 = vadd.f32 %v343, %v2032
    %v2034 = vpop.f32.mrb[0].mxu0
    %2035 = vmatprep.mubr.bf16.mxu0 0
    %2036 = vmatmul.mubr.bf16.gmra.mrb[0].mxu0 %v1922
    %v2037 = vpop.f32.mrb[0].mxu0
    %v2038 = vadd.f32 %v343, %v2037
    %v2039 = vpop.f32.mrb[0].mxu0
    %v2040 = vpop.f32.mrb[0].mxu0
    %v2041 = vadd.f32 %v343, %v2040
    %v2042 = vpop.f32.mrb[0].mxu0
    %2043 = vmatprep.mubr.bf16.mxu0 0
    %2044 = vmatmul.mubr.bf16.gmra.mrb[0].mxu0 %v1925
    %v2045 = vpop.f32.mrb[0].mxu0
    %v2046 = vadd.f32 %v343, %v2045
    %v2047 = vpop.f32.mrb[0].mxu0
    %v2048 = vpop.f32.mrb[0].mxu0
    %v2049 = vadd.f32 %v343, %v2048
    %v2050 = vpop.f32.mrb[0].mxu0
    %2051 = vmatprep.mubr.bf16.mxu0 0
    %2052 = vmatmul.mubr.bf16.gmra.mrb[0].mxu0 %v1928
    %v2053 = vpop.f32.mrb[0].mxu0
    %v2054 = vadd.f32 %v343, %v2053
    %v2055 = vpop.f32.mrb[0].mxu0
    %v2056 = vpop.f32.mrb[0].mxu0
    %v2057 = vadd.f32 %v343, %v2056
    %v2058 = vpop.f32.mrb[0].mxu0
    %2059 = vdwg.mxu0
    %2060 = vmatprep.subr.bf16.mxu0 0
    %2061 = vmatpush1.bf16.msra.mxu0 %v499
    %2062 = vmatprep.subr.bf16.mxu0 0
    %2063 = vmatpush1.bf16.msra.mxu0 0
    %2064 = vmatprep.subr.bf16.mxu0 0
    %2065 = vmatpush1.bf16.msra.mxu0 0
    %2066 = vmatprep.subr.bf16.mxu0 0
    %2067 = vmatpush1.bf16.msra.mxu0 0
    %2068 = vmatprep.subr.bf16.mxu0 0
    %2069 = vmatpush1.bf16.msra.mxu0 0
    %2070 = vmatprep.subr.bf16.mxu0 0
    %2071 = vmatpush1.bf16.msra.mxu0 0
    %2072 = vmatprep.subr.bf16.mxu0 0
    %2073 = vmatpush1.bf16.msra.mxu0 0
    %2074 = vmatprep.subr.bf16.mxu0 0
    %2075 = vmatpush1.bf16.msra.mxu0 0
    %2076 = vmatprep.subr.bf16.mxu0 0
    %2077 = vmatpush1.bf16.msra.mxu0 0
    %2078 = vmatprep.subr.bf16.mxu0 0
    %2079 = vmatpush1.bf16.msra.mxu0 0
    %2080 = vmatprep.subr.bf16.mxu0 0
    %2081 = vmatpush1.bf16.msra.mxu0 0
    %2082 = vmatprep.subr.bf16.mxu0 0
    %2083 = vmatpush1.bf16.msra.mxu0 0
    %2084 = vmatprep.subr.bf16.mxu0 0
    %2085 = vmatpush1.bf16.msra.mxu0 0
    %2086 = vmatprep.subr.bf16.mxu0 0
    %2087 = vmatpush1.bf16.msra.mxu0 0
    %2088 = vmatprep.subr.bf16.mxu0 0
    %2089 = vmatpush1.bf16.msra.mxu0 0
    %2090 = vmatprep.subr.bf16.mxu0 0
    %2091 = vmatpush1.bf16.msra.mxu0 0
    %2092 = vmatprep.mubr.bf16.mxu0 0
    %2093 = vmatmul.mubr.bf16.gmra.mrb[0].mxu0 %v1919
    %v2094 = vpop.f32.mrb[0].mxu0
    %v2095 = vadd.f32 %v343, %v2094
    %v2096 = vpop.f32.mrb[0].mxu0
    %v2097 = vpop.f32.mrb[0].mxu0
    %v2098 = vadd.f32 %v343, %v2097
    %v2099 = vpop.f32.mrb[0].mxu0
    %2100 = vmatprep.mubr.bf16.mxu0 0
    %2101 = vmatmul.mubr.bf16.gmra.mrb[0].mxu0 %v1922
    %v2102 = vpop.f32.mrb[0].mxu0
    %v2103 = vadd.f32 %v343, %v2102
    %v2104 = vpop.f32.mrb[0].mxu0
    %v2105 = vpop.f32.mrb[0].mxu0
    %v2106 = vadd.f32 %v343, %v2105
    %v2107 = vpop.f32.mrb[0].mxu0
    %2108 = vmatprep.mubr.bf16.mxu0 0
    %2109 = vmatmul.mubr.bf16.gmra.mrb[0].mxu0 %v1925
    %v2110 = vpop.f32.mrb[0].mxu0
    %v2111 = vadd.f32 %v343, %v2110
    %v2112 = vpop.f32.mrb[0].mxu0
    %v2113 = vpop.f32.mrb[0].mxu0
    %v2114 = vadd.f32 %v343, %v2113
    %v2115 = vpop.f32.mrb[0].mxu0
    %2116 = vmatprep.mubr.bf16.mxu0 0
    %2117 = vmatmul.mubr.bf16.gmra.mrb[0].mxu0 %v1928
    %v2118 = vpop.f32.mrb[0].mxu0
    %v2119 = vadd.f32 %v343, %v2118
    %v2120 = vpop.f32.mrb[0].mxu0
    %v2121 = vpop.f32.mrb[0].mxu0
    %v2122 = vadd.f32 %v343, %v2121
    %v2123 = vpop.f32.mrb[0].mxu0
    %2124 = vdwg.mxu0
    %2125 = vmatprep.subr.bf16.mxu0 0
    %2126 = vmatpush1.bf16.msra.mxu0 %v569
    %2127 = vmatprep.subr.bf16.mxu0 0
    %2128 = vmatpush1.bf16.msra.mxu0 0
    %2129 = vmatprep.subr.bf16.mxu0 0
    %2130 = vmatpush1.bf16.msra.mxu0 0
    %2131 = vmatprep.subr.bf16.mxu0 0
    %2132 = vmatpush1.bf16.msra.mxu0 0
    %2133 = vmatprep.subr.bf16.mxu0 0
    %2134 = vmatpush1.bf16.msra.mxu0 0
    %2135 = vmatprep.subr.bf16.mxu0 0
    %2136 = vmatpush1.bf16.msra.mxu0 0
    %2137 = vmatprep.subr.bf16.mxu0 0
    %2138 = vmatpush1.bf16.msra.mxu0 0
    %2139 = vmatprep.subr.bf16.mxu0 0
    %2140 = vmatpush1.bf16.msra.mxu0 0
    %2141 = vmatprep.subr.bf16.mxu0 0
    %2142 = vmatpush1.bf16.msra.mxu0 0
    %2143 = vmatprep.subr.bf16.mxu0 0
    %2144 = vmatpush1.bf16.msra.mxu0 0
    %2145 = vmatprep.subr.bf16.mxu0 0
    %2146 = vmatpush1.bf16.msra.mxu0 0
    %2147 = vmatprep.subr.bf16.mxu0 0
    %2148 = vmatpush1.bf16.msra.mxu0 0
    %2149 = vmatprep.subr.bf16.mxu0 0
    %2150 = vmatpush1.bf16.msra.mxu0 0
    %2151 = vmatprep.subr.bf16.mxu0 0
    %2152 = vmatpush1.bf16.msra.mxu0 0
    %2153 = vmatprep.subr.bf16.mxu0 0
    %2154 = vmatpush1.bf16.msra.mxu0 0
    %2155 = vmatprep.subr.bf16.mxu0 0
    %2156 = vmatpush1.bf16.msra.mxu0 0
    %2157 = vmatprep.mubr.bf16.mxu0 0
    %2158 = vmatmul.mubr.bf16.gmra.mrb[0].mxu0 %v1919
    %v2159 = vpop.f32.mrb[0].mxu0
    %v2160 = vadd.f32 %v343, %v2159
    %v2161 = vpop.f32.mrb[0].mxu0
    %v2162 = vpop.f32.mrb[0].mxu0
    %v2163 = vadd.f32 %v343, %v2162
    %v2164 = vpop.f32.mrb[0].mxu0
    %2165 = vmatprep.mubr.bf16.mxu0 0
    %2166 = vmatmul.mubr.bf16.gmra.mrb[0].mxu0 %v1922
    %v2167 = vpop.f32.mrb[0].mxu0
    %v2168 = vadd.f32 %v343, %v2167
    %v2169 = vpop.f32.mrb[0].mxu0
    %v2170 = vpop.f32.mrb[0].mxu0
    %v2171 = vadd.f32 %v343, %v2170
    %v2172 = vpop.f32.mrb[0].mxu0
    %2173 = vmatprep.mubr.bf16.mxu0 0
    %2174 = vmatmul.mubr.bf16.gmra.mrb[0].mxu0 %v1925
    %v2175 = vpop.f32.mrb[0].mxu0
    %v2176 = vadd.f32 %v343, %v2175
    %v2177 = vpop.f32.mrb[0].mxu0
    %v2178 = vpop.f32.mrb[0].mxu0
    %v2179 = vadd.f32 %v343, %v2178
    %v2180 = vpop.f32.mrb[0].mxu0
    %2181 = vmatprep.mubr.bf16.mxu0 0
    %2182 = vmatmul.mubr.bf16.gmra.mrb[0].mxu0 %v1928
    %v2183 = vpop.f32.mrb[0].mxu0
    %v2184 = vadd.f32 %v343, %v2183
    %v2185 = vpop.f32.mrb[0].mxu0
    %v2186 = vpop.f32.mrb[0].mxu0
    %v2187 = vadd.f32 %v343, %v2186
    %v2188 = vpop.f32.mrb[0].mxu0
    %2189 = vdwg.mxu0
    %2198 = vrot.lane.b32.xlu0 %v466, 4
    %v2199 = vpop.permute.xlu0 %2198
    %2200 = vrot.lane.b32.xlu0 %v469, 4
    %v2201 = vpop.permute.xlu0 %2200
    %2202 = vrot.lane.b32.xlu0 %v474, 4
    %v2203 = vpop.permute.xlu0 %2202
    %2204 = vrot.lane.b32.xlu0 %v477, 4
    %v2205 = vpop.permute.xlu0 %2204
    %2206 = vrot.lane.b32.xlu0 %v482, 4
    %v2207 = vpop.permute.xlu0 %2206
    %2208 = vrot.lane.b32.xlu0 %v485, 4
    %v2209 = vpop.permute.xlu0 %2208
    %2210 = vrot.lane.b32.xlu0 %v490, 4
    %v2211 = vpop.permute.xlu0 %2210
    %2212 = vrot.lane.b32.xlu0 %v493, 4
    %v2213 = vpop.permute.xlu0 %2212
    %2230 = vrot.lane.b32.xlu0 %v536, 8
    %v2231 = vpop.permute.xlu0 %2230
    %2232 = vrot.lane.b32.xlu0 %v539, 8
    %v2233 = vpop.permute.xlu0 %2232
    %2234 = vrot.lane.b32.xlu0 %v544, 8
    %v2235 = vpop.permute.xlu0 %2234
    %2236 = vrot.lane.b32.xlu0 %v547, 8
    %v2237 = vpop.permute.xlu0 %2236
    %2238 = vrot.lane.b32.xlu0 %v552, 8
    %v2239 = vpop.permute.xlu0 %2238
    %2240 = vrot.lane.b32.xlu0 %v555, 8
    %v2241 = vpop.permute.xlu0 %2240
    %2242 = vrot.lane.b32.xlu0 %v560, 8
    %v2243 = vpop.permute.xlu0 %2242
    %2244 = vrot.lane.b32.xlu0 %v563, 8
    %v2245 = vpop.permute.xlu0 %2244
    %2262 = vrot.lane.b32.xlu0 %v606, 12
    %v2263 = vpop.permute.xlu0 %2262
    %2264 = vrot.lane.b32.xlu0 %v609, 12
    %v2265 = vpop.permute.xlu0 %2264
    %2266 = vrot.lane.b32.xlu0 %v614, 12
    %v2267 = vpop.permute.xlu0 %2266
    %2268 = vrot.lane.b32.xlu0 %v617, 12
    %v2269 = vpop.permute.xlu0 %2268
    %2270 = vrot.lane.b32.xlu0 %v622, 12
    %v2271 = vpop.permute.xlu0 %2270
    %2272 = vrot.lane.b32.xlu0 %v625, 12
    %v2273 = vpop.permute.xlu0 %2272
    %2274 = vrot.lane.b32.xlu0 %v630, 12
    %v2275 = vpop.permute.xlu0 %2274
    %2276 = vrot.lane.b32.xlu0 %v633, 12
    %v2277 = vpop.permute.xlu0 %2276
    %2294 = vrot.lane.b32.xlu0 %v929, 16
    %v2295 = vpop.permute.xlu0 %2294
    %2296 = vrot.lane.b32.xlu0 %v932, 16
    %v2297 = vpop.permute.xlu0 %2296
    %2298 = vrot.lane.b32.xlu0 %v937, 16
    %v2299 = vpop.permute.xlu0 %2298
    %2300 = vrot.lane.b32.xlu0 %v940, 16
    %v2301 = vpop.permute.xlu0 %2300
    %2302 = vrot.lane.b32.xlu0 %v945, 16
    %v2303 = vpop.permute.xlu0 %2302
    %2304 = vrot.lane.b32.xlu0 %v948, 16
    %v2305 = vpop.permute.xlu0 %2304
    %2306 = vrot.lane.b32.xlu0 %v953, 16
    %v2307 = vpop.permute.xlu0 %2306
    %2308 = vrot.lane.b32.xlu0 %v956, 16
    %v2309 = vpop.permute.xlu0 %2308
    %2326 = vrot.lane.b32.xlu0 %v994, 20
    %v2327 = vpop.permute.xlu0 %2326
    %2328 = vrot.lane.b32.xlu0 %v997, 20
    %v2329 = vpop.permute.xlu0 %2328
    %2330 = vrot.lane.b32.xlu0 %v1002, 20
    %v2331 = vpop.permute.xlu0 %2330
    %2332 = vrot.lane.b32.xlu0 %v1005, 20
    %v2333 = vpop.permute.xlu0 %2332
    %2334 = vrot.lane.b32.xlu0 %v1010, 20
    %v2335 = vpop.permute.xlu0 %2334
    %2336 = vrot.lane.b32.xlu0 %v1013, 20
    %v2337 = vpop.permute.xlu0 %2336
    %2338 = vrot.lane.b32.xlu0 %v1018, 20
    %v2339 = vpop.permute.xlu0 %2338
    %2340 = vrot.lane.b32.xlu0 %v1021, 20
    %v2341 = vpop.permute.xlu0 %2340
    %2358 = vrot.lane.b32.xlu0 %v1059, 24
    %v2359 = vpop.permute.xlu0 %2358
    %2360 = vrot.lane.b32.xlu0 %v1062, 24
    %v2361 = vpop.permute.xlu0 %2360
    %2362 = vrot.lane.b32.xlu0 %v1067, 24
    %v2363 = vpop.permute.xlu0 %2362
    %2364 = vrot.lane.b32.xlu0 %v1070, 24
    %v2365 = vpop.permute.xlu0 %2364
    %2366 = vrot.lane.b32.xlu0 %v1075, 24
    %v2367 = vpop.permute.xlu0 %2366
    %2368 = vrot.lane.b32.xlu0 %v1078, 24
    %v2369 = vpop.permute.xlu0 %2368
    %2370 = vrot.lane.b32.xlu0 %v1083, 24
    %v2371 = vpop.permute.xlu0 %2370
    %2372 = vrot.lane.b32.xlu0 %v1086, 24
    %v2373 = vpop.permute.xlu0 %2372
    %2390 = vrot.lane.b32.xlu0 %v1124, 28
    %v2391 = vpop.permute.xlu0 %2390
    %2392 = vrot.lane.b32.xlu0 %v1127, 28
    %v2393 = vpop.permute.xlu0 %2392
    %2394 = vrot.lane.b32.xlu0 %v1132, 28
    %v2395 = vpop.permute.xlu0 %2394
    %2396 = vrot.lane.b32.xlu0 %v1135, 28
    %v2397 = vpop.permute.xlu0 %2396
    %2398 = vrot.lane.b32.xlu0 %v1140, 28
    %v2399 = vpop.permute.xlu0 %2398
    %2400 = vrot.lane.b32.xlu0 %v1143, 28
    %v2401 = vpop.permute.xlu0 %2400
    %2402 = vrot.lane.b32.xlu0 %v1148, 28
    %v2403 = vpop.permute.xlu0 %2402
    %2404 = vrot.lane.b32.xlu0 %v1151, 28
    %v2405 = vpop.permute.xlu0 %2404
    %2422 = vrot.lane.b32.xlu0 %v1447, 32
    %v2423 = vpop.permute.xlu0 %2422
    %2424 = vrot.lane.b32.xlu0 %v1450, 32
    %v2425 = vpop.permute.xlu0 %2424
    %2426 = vrot.lane.b32.xlu0 %v1455, 32
    %v2427 = vpop.permute.xlu0 %2426
    %2428 = vrot.lane.b32.xlu0 %v1458, 32
    %v2429 = vpop.permute.xlu0 %2428
    %2430 = vrot.lane.b32.xlu0 %v1463, 32
    %v2431 = vpop.permute.xlu0 %2430
    %2432 = vrot.lane.b32.xlu0 %v1466, 32
    %v2433 = vpop.permute.xlu0 %2432
    %2434 = vrot.lane.b32.xlu0 %v1471, 32
    %v2435 = vpop.permute.xlu0 %2434
    %2436 = vrot.lane.b32.xlu0 %v1474, 32
    %v2437 = vpop.permute.xlu0 %2436
    %2454 = vrot.lane.b32.xlu0 %v1512, 36
    %v2455 = vpop.permute.xlu0 %2454
    %2456 = vrot.lane.b32.xlu0 %v1515, 36
    %v2457 = vpop.permute.xlu0 %2456
    %2458 = vrot.lane.b32.xlu0 %v1520, 36
    %v2459 = vpop.permute.xlu0 %2458
    %2460 = vrot.lane.b32.xlu0 %v1523, 36
    %v2461 = vpop.permute.xlu0 %2460
    %2462 = vrot.lane.b32.xlu0 %v1528, 36
    %v2463 = vpop.permute.xlu0 %2462
    %2464 = vrot.lane.b32.xlu0 %v1531, 36
    %v2465 = vpop.permute.xlu0 %2464
    %2466 = vrot.lane.b32.xlu0 %v1536, 36
    %v2467 = vpop.permute.xlu0 %2466
    %2468 = vrot.lane.b32.xlu0 %v1539, 36
    %v2469 = vpop.permute.xlu0 %2468
    %2486 = vrot.lane.b32.xlu0 %v1577, 40
    %v2487 = vpop.permute.xlu0 %2486
    %2488 = vrot.lane.b32.xlu0 %v1580, 40
    %v2489 = vpop.permute.xlu0 %2488
    %2490 = vrot.lane.b32.xlu0 %v1585, 40
    %v2491 = vpop.permute.xlu0 %2490
    %2492 = vrot.lane.b32.xlu0 %v1588, 40
    %v2493 = vpop.permute.xlu0 %2492
    %2494 = vrot.lane.b32.xlu0 %v1593, 40
    %v2495 = vpop.permute.xlu0 %2494
    %2496 = vrot.lane.b32.xlu0 %v1596, 40
    %v2497 = vpop.permute.xlu0 %2496
    %2498 = vrot.lane.b32.xlu0 %v1601, 40
    %v2499 = vpop.permute.xlu0 %2498
    %2500 = vrot.lane.b32.xlu0 %v1604, 40
    %v2501 = vpop.permute.xlu0 %2500
    %2518 = vrot.lane.b32.xlu0 %v1642, 44
    %v2519 = vpop.permute.xlu0 %2518
    %2520 = vrot.lane.b32.xlu0 %v1645, 44
    %v2521 = vpop.permute.xlu0 %2520
    %2522 = vrot.lane.b32.xlu0 %v1650, 44
    %v2523 = vpop.permute.xlu0 %2522
    %2524 = vrot.lane.b32.xlu0 %v1653, 44
    %v2525 = vpop.permute.xlu0 %2524
    %2526 = vrot.lane.b32.xlu0 %v1658, 44
    %v2527 = vpop.permute.xlu0 %2526
    %2528 = vrot.lane.b32.xlu0 %v1661, 44
    %v2529 = vpop.permute.xlu0 %2528
    %2530 = vrot.lane.b32.xlu0 %v1666, 44
    %v2531 = vpop.permute.xlu0 %2530
    %2532 = vrot.lane.b32.xlu0 %v1669, 44
    %v2533 = vpop.permute.xlu0 %2532
    %2550 = vrot.lane.b32.xlu0 %v1965, 48
    %v2551 = vpop.permute.xlu0 %2550
    %2552 = vrot.lane.b32.xlu0 %v1968, 48
    %v2553 = vpop.permute.xlu0 %2552
    %2554 = vrot.lane.b32.xlu0 %v1973, 48
    %v2555 = vpop.permute.xlu0 %2554
    %2556 = vrot.lane.b32.xlu0 %v1976, 48
    %v2557 = vpop.permute.xlu0 %2556
    %2558 = vrot.lane.b32.xlu0 %v1981, 48
    %v2559 = vpop.permute.xlu0 %2558
    %2560 = vrot.lane.b32.xlu0 %v1984, 48
    %v2561 = vpop.permute.xlu0 %2560
    %2562 = vrot.lane.b32.xlu0 %v1989, 48
    %v2563 = vpop.permute.xlu0 %2562
    %2564 = vrot.lane.b32.xlu0 %v1992, 48
    %v2565 = vpop.permute.xlu0 %2564
    %2582 = vrot.lane.b32.xlu0 %v2030, 52
    %v2583 = vpop.permute.xlu0 %2582
    %2584 = vrot.lane.b32.xlu0 %v2033, 52
    %v2585 = vpop.permute.xlu0 %2584
    %2586 = vrot.lane.b32.xlu0 %v2038, 52
    %v2587 = vpop.permute.xlu0 %2586
    %2588 = vrot.lane.b32.xlu0 %v2041, 52
    %v2589 = vpop.permute.xlu0 %2588
    %2590 = vrot.lane.b32.xlu0 %v2046, 52
    %v2591 = vpop.permute.xlu0 %2590
    %2592 = vrot.lane.b32.xlu0 %v2049, 52
    %v2593 = vpop.permute.xlu0 %2592
    %2594 = vrot.lane.b32.xlu0 %v2054, 52
    %v2595 = vpop.permute.xlu0 %2594
    %2596 = vrot.lane.b32.xlu0 %v2057, 52
    %v2597 = vpop.permute.xlu0 %2596
    %2614 = vrot.lane.b32.xlu0 %v2095, 56
    %v2615 = vpop.permute.xlu0 %2614
    %2616 = vrot.lane.b32.xlu0 %v2098, 56
    %v2617 = vpop.permute.xlu0 %2616
    %2618 = vrot.lane.b32.xlu0 %v2103, 56
    %v2619 = vpop.permute.xlu0 %2618
    %2620 = vrot.lane.b32.xlu0 %v2106, 56
    %v2621 = vpop.permute.xlu0 %2620
    %2622 = vrot.lane.b32.xlu0 %v2111, 56
    %v2623 = vpop.permute.xlu0 %2622
    %2624 = vrot.lane.b32.xlu0 %v2114, 56
    %v2625 = vpop.permute.xlu0 %2624
    %2626 = vrot.lane.b32.xlu0 %v2119, 56
    %v2627 = vpop.permute.xlu0 %2626
    %2628 = vrot.lane.b32.xlu0 %v2122, 56
    %v2629 = vpop.permute.xlu0 %2628
    %2646 = vrot.lane.b32.xlu0 %v2160, 60
    %v2647 = vpop.permute.xlu0 %2646
    %2648 = vrot.lane.b32.xlu0 %v2163, 60
    %v2649 = vpop.permute.xlu0 %2648
    %2650 = vrot.lane.b32.xlu0 %v2168, 60
    %v2651 = vpop.permute.xlu0 %2650
    %2652 = vrot.lane.b32.xlu0 %v2171, 60
    %v2653 = vpop.permute.xlu0 %2652
    %2654 = vrot.lane.b32.xlu0 %v2176, 60
    %v2655 = vpop.permute.xlu0 %2654
    %2656 = vrot.lane.b32.xlu0 %v2179, 60
    %v2657 = vpop.permute.xlu0 %2656
    %2658 = vrot.lane.b32.xlu0 %v2184, 60
    %v2659 = vpop.permute.xlu0 %2658
    %2660 = vrot.lane.b32.xlu0 %v2187, 60
    %v2661 = vpop.permute.xlu0 %2660
    %vm2670 = vcmask 31744
    %v2671 = vsel %vm2670, %v396, %v2199
    %v2672 = vsel %vm2670, %v399, %v2201
    %v2673 = vsel %vm2670, %v404, %v2203
    %v2674 = vsel %vm2670, %v407, %v2205
    %v2675 = vsel %vm2670, %v412, %v2207
    %v2676 = vsel %vm2670, %v415, %v2209
    %v2677 = vsel %vm2670, %v420, %v2211
    %v2678 = vsel %vm2670, %v423, %v2213
    %v2679 = vsel %vm157, %v2671, %v2231
    %v2680 = vsel %vm157, %v2672, %v2233
    %v2681 = vsel %vm157, %v2673, %v2235
    %v2682 = vsel %vm157, %v2674, %v2237
    %v2683 = vsel %vm157, %v2675, %v2239
    %v2684 = vsel %vm157, %v2676, %v2241
    %v2685 = vsel %vm157, %v2677, %v2243
    %v2686 = vsel %vm157, %v2678, %v2245
    %vm2687 = vcmask 97280
    %v2688 = vsel %vm2687, %v2679, %v2263
    %v2689 = vsel %vm2687, %v2680, %v2265
    %v2690 = vsel %vm2687, %v2681, %v2267
    %v2691 = vsel %vm2687, %v2682, %v2269
    %v2692 = vsel %vm2687, %v2683, %v2271
    %v2693 = vsel %vm2687, %v2684, %v2273
    %v2694 = vsel %vm2687, %v2685, %v2275
    %v2695 = vsel %vm2687, %v2686, %v2277
    %vm2696 = vcmask 130048
    %v2697 = vsel %vm2696, %v2688, %v2295
    %v2698 = vsel %vm2696, %v2689, %v2297
    %v2699 = vsel %vm2696, %v2690, %v2299
    %v2700 = vsel %vm2696, %v2691, %v2301
    %v2701 = vsel %vm2696, %v2692, %v2303
    %v2702 = vsel %vm2696, %v2693, %v2305
    %v2703 = vsel %vm2696, %v2694, %v2307
    %v2704 = vsel %vm2696, %v2695, %v2309
    %vm2705 = vcmask 162816
    %v2706 = vsel %vm2705, %v2697, %v2327
    %v2707 = vsel %vm2705, %v2698, %v2329
    %v2708 = vsel %vm2705, %v2699, %v2331
    %v2709 = vsel %vm2705, %v2700, %v2333
    %v2710 = vsel %vm2705, %v2701, %v2335
    %v2711 = vsel %vm2705, %v2702, %v2337
    %v2712 = vsel %vm2705, %v2703, %v2339
    %v2713 = vsel %vm2705, %v2704, %v2341
    %vm2714 = vcmask 195584
    %v2715 = vsel %vm2714, %v2706, %v2359
    %v2716 = vsel %vm2714, %v2707, %v2361
    %v2717 = vsel %vm2714, %v2708, %v2363
    %v2718 = vsel %vm2714, %v2709, %v2365
    %v2719 = vsel %vm2714, %v2710, %v2367
    %v2720 = vsel %vm2714, %v2711, %v2369
    %v2721 = vsel %vm2714, %v2712, %v2371
    %v2722 = vsel %vm2714, %v2713, %v2373
    %vm2723 = vcmask 228352
    %v2724 = vsel %vm2723, %v2715, %v2391
    %v2725 = vsel %vm2723, %v2716, %v2393
    %v2726 = vsel %vm2723, %v2717, %v2395
    %v2727 = vsel %vm2723, %v2718, %v2397
    %v2728 = vsel %vm2723, %v2719, %v2399
    %v2729 = vsel %vm2723, %v2720, %v2401
    %v2730 = vsel %vm2723, %v2721, %v2403
    %v2731 = vsel %vm2723, %v2722, %v2405
    %v2732 = vsel %vm79, %v2724, %v2423
    %v2733 = vsel %vm79, %v2725, %v2425
    %v2734 = vsel %vm79, %v2726, %v2427
    %v2735 = vsel %vm79, %v2727, %v2429
    %v2736 = vsel %vm79, %v2728, %v2431
    %v2737 = vsel %vm79, %v2729, %v2433
    %v2738 = vsel %vm79, %v2730, %v2435
    %v2739 = vsel %vm79, %v2731, %v2437
    %vm2740 = vcmask 293888
    %v2741 = vsel %vm2740, %v2732, %v2455
    %v2742 = vsel %vm2740, %v2733, %v2457
    %v2743 = vsel %vm2740, %v2734, %v2459
    %v2744 = vsel %vm2740, %v2735, %v2461
    %v2745 = vsel %vm2740, %v2736, %v2463
    %v2746 = vsel %vm2740, %v2737, %v2465
    %v2747 = vsel %vm2740, %v2738, %v2467
    %v2748 = vsel %vm2740, %v2739, %v2469
    %vm2749 = vcmask 326656
    %v2750 = vsel %vm2749, %v2741, %v2487
    %v2751 = vsel %vm2749, %v2742, %v2489
    %v2752 = vsel %vm2749, %v2743, %v2491
    %v2753 = vsel %vm2749, %v2744, %v2493
    %v2754 = vsel %vm2749, %v2745, %v2495
    %v2755 = vsel %vm2749, %v2746, %v2497
    %v2756 = vsel %vm2749, %v2747, %v2499
    %v2757 = vsel %vm2749, %v2748, %v2501
    %vm2758 = vcmask 359424
    %v2759 = vsel %vm2758, %v2750, %v2519
    %v2760 = vsel %vm2758, %v2751, %v2521
    %v2761 = vsel %vm2758, %v2752, %v2523
    %v2762 = vsel %vm2758, %v2753, %v2525
    %v2763 = vsel %vm2758, %v2754, %v2527
    %v2764 = vsel %vm2758, %v2755, %v2529
    %v2765 = vsel %vm2758, %v2756, %v2531
    %v2766 = vsel %vm2758, %v2757, %v2533
    %vm2767 = vcmask 392192
    %v2768 = vsel %vm2767, %v2759, %v2551
    %v2769 = vsel %vm2767, %v2760, %v2553
    %v2770 = vsel %vm2767, %v2761, %v2555
    %v2771 = vsel %vm2767, %v2762, %v2557
    %v2772 = vsel %vm2767, %v2763, %v2559
    %v2773 = vsel %vm2767, %v2764, %v2561
    %v2774 = vsel %vm2767, %v2765, %v2563
    %v2775 = vsel %vm2767, %v2766, %v2565
    %vm2776 = vcmask 424960
    %v2777 = vsel %vm2776, %v2768, %v2583
    %v2778 = vsel %vm2776, %v2769, %v2585
    %v2779 = vsel %vm2776, %v2770, %v2587
    %v2780 = vsel %vm2776, %v2771, %v2589
    %v2781 = vsel %vm2776, %v2772, %v2591
    %v2782 = vsel %vm2776, %v2773, %v2593
    %v2783 = vsel %vm2776, %v2774, %v2595
    %v2784 = vsel %vm2776, %v2775, %v2597
    %vm2785 = vcmask 457728
    %v2786 = vsel %vm2785, %v2777, %v2615
    %v2787 = vsel %vm2785, %v2778, %v2617
    %v2788 = vsel %vm2785, %v2779, %v2619
    %v2789 = vsel %vm2785, %v2780, %v2621
    %v2790 = vsel %vm2785, %v2781, %v2623
    %v2791 = vsel %vm2785, %v2782, %v2625
    %v2792 = vsel %vm2785, %v2783, %v2627
    %v2793 = vsel %vm2785, %v2784, %v2629
    %vm2794 = vcmask 490496
    %v2795 = vsel %vm2794, %v2786, %v2647
    %v2796 = vsel %vm2794, %v2787, %v2649
    %v2797 = vsel %vm2794, %v2788, %v2651
    %v2798 = vsel %vm2794, %v2789, %v2653
    %v2799 = vsel %vm2794, %v2790, %v2655
    %v2800 = vsel %vm2794, %v2791, %v2657
    %v2801 = vsel %vm2794, %v2792, %v2659
    %v2802 = vsel %vm2794, %v2793, %v2661
    %vm2803 = vcmask 523264
    %2804 = vst.msk [vmem:[#allocation2] sm:$0xff] %vm2803, %v2795
    %2805 = vst.msk [vmem:[#allocation2 + $0x8] sm:$0xff] %vm2803, %v2796
    %2806 = vst.msk [vmem:[#allocation2 + $0x10] sm:$0xff] %vm2803, %v2797
    %2807 = vst.msk [vmem:[#allocation2 + $0x18] sm:$0xff] %vm2803, %v2798
    %2808 = vst.msk [vmem:[#allocation2 + $0x20] sm:$0xff] %vm2803, %v2799
    %2809 = vst.msk [vmem:[#allocation2 + $0x28] sm:$0xff] %vm2803, %v2800
    %2810 = vst.msk [vmem:[#allocation2 + $0x30] sm:$0xff] %vm2803, %v2801
    %2811 = vst.msk [vmem:[#allocation2 + $0x38] sm:$0xff] %vm2803, %v2802
    // Predicated region
    $region30: #{tpu_custom_call.1} parent=1 // pred_check
      _
    $region31: #{tpu_custom_call.1} parent=1 // pred_check_branch
      %2813 = sbr.rel (0) target = $region33
    $region32: #{tpu_custom_call.1} parent=1 // pred_region
      %s2815 = ssub.s32 1024, 1024
      %2816 = vsyncadd [#allocation3], %s2815
      %s2817 = sshll.u32 [#allocation2], 4
      %s2818 = int_to_ptr.vmem [resolvable:$true] %s2817
      %2823 = dma.vmem_to_hbm [thread:$0]  %s2818, 1024, %s7, [#allocation3], 128, 128, 8
    $region33: #{tpu_custom_call.1} parent=1 // pred_fallthru
      _
    // Predicated region
    $region34: #{tpu_custom_call.1} parent=1 // pred_check
      _
    $region35: #{tpu_custom_call.1} parent=1 // pred_check_branch
      %2825 = sbr.rel (0) target = $region37
    $region36: #{tpu_custom_call.1} parent=1 // pred_region
      %2826 = dma.done [#allocation3], 1024
    $region37: #{tpu_custom_call.1} parent=1 // pred_fallthru
      _
    %2827 = vsyncpa [#allocation3], 1

</llo_original>
